<compile_context>
chip_gen: v7x
topology: tpu7x:2x2x1
jax: 0.10.0
libtpu: 0.0.40
codegen_flags: <defaults>
</compile_context>

<pallas_src>
import jax
import jax.numpy as jnp
from jax.experimental import pallas as pl
from jax.experimental.pallas import tpu as pltpu


def encoder_kernel(x_ref, wih1_ref, whh1_ref, b1_ref,
                   wih2_ref, whh2_ref, b2_ref,
                   out_ref):
    T = x_ref.shape[0]
    H1 = whh1_ref.shape[0]   # hidden_dim = 2 * embedding_dim
    H2 = whh2_ref.shape[0]   # embedding_dim

    f32 = jnp.float32
    bf16 = jnp.bfloat16

    def mm(a, b):
        # bf16 operands into the MXU, f32 accumulation.
        return jnp.dot(a.astype(bf16), b, preferred_element_type=f32)

    # Fused-gate lane masks (gate order [i, f, o, g]): sigmoid over the first
    # 3H lanes, tanh over the last H lanes.  Hoisted out of the time loop.
    def sigmoid_mask(n):
        lane = jax.lax.broadcasted_iota(jnp.int32, (1, 4 * n), 1)
        return lane < 3 * n

    m1 = sigmoid_mask(H1)
    m2 = sigmoid_mask(H2)

    def gate_act(pre, mask):
        # sigmoid(x) = 0.5*tanh(0.5*x) + 0.5 -> a single EUP tanh over the
        # whole fused (1, 4H) gate slab; the scale/affine fixups are VPU ops.
        t = jnp.tanh(jnp.where(mask, 0.5 * pre, pre))
        return jnp.where(mask, 0.5 * t + 0.5, t)

    # ---- Layer-1 input projections for all timesteps: ONE wide matmul -------
    # (T, F) x (F, 4*H1) -> (8, 512) f32 = 4 vregs, kept as a value.
    xg1 = mm(x_ref[...], wih1_ref[...]) + b1_ref[...]

    b2 = b2_ref[...]          # (1, 4*H2) layer-2 bias, hoisted.

    h1 = jnp.zeros((1, H1), f32)
    c1 = jnp.zeros((1, H1), f32)
    h2 = jnp.zeros((1, H2), f32)
    c2 = jnp.zeros((1, H2), f32)

    # ---- Fused, fully unrolled recurrence over time --------------------------
    # Layer-2 step t uses layer-1's output h1_t from the same iteration
    # (stacked-LSTM semantics); static Python unroll is the right structure at
    # T=8 (switch to a partially-unrolled fori_loop if seq_len grows).
    for t in range(T):
        # Layer 1, step t: one fused (1,H1) x (H1,4H1) recurrent matmul.
        pre1 = xg1[t:t + 1, :] + mm(h1, whh1_ref[...])
        a1 = gate_act(pre1, m1)
        i1 = a1[:, 0:H1]
        f1 = a1[:, H1:2 * H1]
        o1 = a1[:, 2 * H1:3 * H1]
        g1 = a1[:, 3 * H1:4 * H1]
        c1 = f1 * c1 + i1 * g1
        h1 = o1 * jnp.tanh(c1)

        # Layer 2, step t: consumes h1_t immediately; 2 fused matmuls + 1 add.
        pre2 = mm(h1, wih2_ref[...]) + mm(h2, whh2_ref[...]) + b2
        a2 = gate_act(pre2, m2)
        i2 = a2[:, 0:H2]
        f2 = a2[:, H2:2 * H2]
        o2 = a2[:, 2 * H2:3 * H2]
        g2 = a2[:, 3 * H2:4 * H2]
        c2 = f2 * c2 + i2 * g2
        h2 = o2 * jnp.tanh(c2)

    # Final hidden state of layer 2 == hidden_states[0].reshape(-1, embedding_dim).
    out_ref[...] = h2


def encoder_forward(x, params, seq_len, n_features, embedding_dim):
    """x: array with seq_len*n_features elements. Returns (1, embedding_dim)."""
    H2 = embedding_dim
    bf16 = jnp.bfloat16
    x_seq = x.reshape(seq_len, n_features)

    fn = pl.pallas_call(
        encoder_kernel,
        out_shape=jax.ShapeDtypeStruct((1, H2), jnp.float32),
        in_specs=[pl.BlockSpec(memory_space=pltpu.MemorySpace.VMEM)] * 7,
        out_specs=pl.BlockSpec(memory_space=pltpu.MemorySpace.VMEM),
        # Footprint is a few hundred KiB; the explicit limit is just a guard so
        # the same config stays within v7x's 64 MiB physical VMEM as dims grow.
        compiler_params=pltpu.CompilerParams(vmem_limit_bytes=32 * 1024 * 1024),
    )
    # Weights feeding the MXU are cast to bf16 once here (halves weight bytes,
    # ~3x faster MXU passes); biases and all in-kernel state stay f32.
    return fn(x_seq.astype(bf16),
              params["wih1"].astype(bf16), params["whh1"].astype(bf16),
              params["b1"].astype(jnp.float32),
              params["wih2"].astype(bf16), params["whh2"].astype(bf16),
              params["b2"].astype(jnp.float32))


def make_params(key, n_features, embedding_dim):
    """Fused-gate weights, lane order [i, f, o, g].

    wih*: (in_dim, 4H) pre-transposed, whh*: (H, 4H), b*: (1, 4H) with
    b = b_ih + b_hh folded together.  Columns [0:H]=input gate, [H:2H]=forget,
    [2H:3H]=output, [3H:4H]=cell candidate (PyTorch's [i, f, g, o] reordered).
    """
    H1 = 2 * embedding_dim
    H2 = embedding_dim
    ks = jax.random.split(key, 6)

    def u(k, shape, scale):
        return jax.random.uniform(k, shape, jnp.float32, minval=-scale, maxval=scale)

    s1 = 1.0 / (H1 ** 0.5)
    s2 = 1.0 / (H2 ** 0.5)
    return {
        "wih1": u(ks[0], (n_features, 4 * H1), s1),
        "whh1": u(ks[1], (H1, 4 * H1), s1),
        "b1":   u(ks[2], (1, 4 * H1), s1),
        "wih2": u(ks[3], (H1, 4 * H2), s2),
        "whh2": u(ks[4], (H2, 4 * H2), s2),
        "b2":   u(ks[5], (1, 4 * H2), s2),
    }


def lstm_layer_ref(x_seq, wih, whh, b):
    """Pure-JAX f32 reference of a batch=1 LSTM layer (PyTorch semantics),
    using the fused [i, f, o, g] weight layout."""
    H = whh.shape[0]
    T = x_seq.shape[0]
    h = jnp.zeros((1, H), jnp.float32)
    c = jnp.zeros((1, H), jnp.float32)
    outs = []
    for t in range(T):
        pre = x_seq[t:t + 1, :] @ wih + h @ whh + b     # (1, 4H)
        i = jax.nn.sigmoid(pre[:, 0:H])
        f = jax.nn.sigmoid(pre[:, H:2 * H])
        o = jax.nn.sigmoid(pre[:, 2 * H:3 * H])
        g = jnp.tanh(pre[:, 3 * H:4 * H])
        c = f * c + i * g
        h = o * jnp.tanh(c)
        outs.append(h)
    return jnp.concatenate(outs, axis=0), h


def encoder_ref(x, params, seq_len, n_features, embedding_dim):
    x_seq = x.reshape(seq_len, n_features).astype(jnp.float32)
    h1_seq, _ = lstm_layer_ref(x_seq, params["wih1"], params["whh1"], params["b1"])
    _, h2_last = lstm_layer_ref(h1_seq, params["wih2"], params["whh2"], params["b2"])
    return h2_last   # (1, embedding_dim)


if __name__ == "__main__":
    seq_len = 8
    n_features = 8
    embedding_dim = 64          # -> hidden_dim = 128 (matches nn.Module default)

    key = jax.random.PRNGKey(0)
    k_x, k_p = jax.random.split(key)
    x = jax.random.normal(k_x, (seq_len, n_features), jnp.float32)
    params = make_params(k_p, n_features, embedding_dim)

    out = encoder_forward(x, params, seq_len, n_features, embedding_dim)
    out = jax.block_until_ready(out)

    ref = encoder_ref(x, params, seq_len, n_features, embedding_dim)
    assert out.shape == (1, embedding_dim)
    # Kernel feeds bf16 operands to the MXU (f32 accumulate/state); tolerance
    # vs. the pure-f32 reference is loosened accordingly.
    err = jnp.max(jnp.abs(out - ref))
    assert jnp.allclose(out, ref, atol=3e-2, rtol=3e-2), f"max abs err {err}"

    print("KERNEL_OK")
</pallas_src>

<mosaic_0001>
module attributes {stable_mosaic.version = 11 : i64} {
  func.func @encoder_kernel(%arg0: memref<8x8xbf16, #tpu.memory_space<vmem>>, %arg1: memref<8x512xbf16, #tpu.memory_space<vmem>>, %arg2: memref<128x512xbf16, #tpu.memory_space<vmem>>, %arg3: memref<1x512xf32, #tpu.memory_space<vmem>>, %arg4: memref<128x256xbf16, #tpu.memory_space<vmem>>, %arg5: memref<64x256xbf16, #tpu.memory_space<vmem>>, %arg6: memref<1x256xf32, #tpu.memory_space<vmem>>, %arg7: memref<1x64xf32, #tpu.memory_space<vmem>>) attributes {dimension_semantics = [], scalar_prefetch = 0 : i64, scratch_operands = 0 : i64, tpu.core_type = #tpu.core_type<tc>} {
    %0 = tpu.iota {dimensions = array<i32: 1>} : vector<1x512xi32>
    %c384_i32 = arith.constant 384 : i32
    %1 = vector.broadcast %c384_i32 : i32 to vector<1x512xi32>
    %2 = arith.cmpi slt, %0, %1 : vector<1x512xi32>
    %3 = tpu.iota {dimensions = array<i32: 1>} : vector<1x256xi32>
    %c192_i32 = arith.constant 192 : i32
    %4 = vector.broadcast %c192_i32 : i32 to vector<1x256xi32>
    %5 = arith.cmpi slt, %3, %4 : vector<1x256xi32>
    %c0 = arith.constant 0 : index
    %c0_0 = arith.constant 0 : index
    %6 = vector.load %arg0[%c0, %c0_0] : memref<8x8xbf16, #tpu.memory_space<vmem>>, vector<8x8xbf16>
    %c0_1 = arith.constant 0 : index
    %c0_2 = arith.constant 0 : index
    %7 = vector.load %arg1[%c0_1, %c0_2] : memref<8x512xbf16, #tpu.memory_space<vmem>>, vector<8x512xbf16>
    %cst = arith.constant dense<0.000000e+00> : vector<8x512xf32>
    %8 = tpu.matmul %6, %7, %cst {dimension_numbers = #tpu.dot_dimension_numbers<[1], [0], [0], [1], [0, 0, 1, 1], [], []>} : vector<8x8xbf16>, vector<8x512xbf16>, vector<8x512xf32> -> vector<8x512xf32>
    %c0_3 = arith.constant 0 : index
    %c0_4 = arith.constant 0 : index
    %9 = vector.load %arg3[%c0_3, %c0_4] : memref<1x512xf32, #tpu.memory_space<vmem>>, vector<1x512xf32>
    %10 = vector.broadcast %9 : vector<1x512xf32> to vector<8x512xf32>
    %11 = arith.addf %8, %10 : vector<8x512xf32>
    %c0_5 = arith.constant 0 : index
    %c0_6 = arith.constant 0 : index
    %12 = vector.load %arg6[%c0_5, %c0_6] : memref<1x256xf32, #tpu.memory_space<vmem>>, vector<1x256xf32>
    %cst_7 = arith.constant 0.000000e+00 : f32
    %13 = vector.broadcast %cst_7 : f32 to vector<1x128xf32>
    %cst_8 = arith.constant 0.000000e+00 : f32
    %14 = vector.broadcast %cst_8 : f32 to vector<1x128xf32>
    %cst_9 = arith.constant 0.000000e+00 : f32
    %15 = vector.broadcast %cst_9 : f32 to vector<1x64xf32>
    %cst_10 = arith.constant 0.000000e+00 : f32
    %16 = vector.broadcast %cst_10 : f32 to vector<1x64xf32>
    %17 = vector.extract_strided_slice %11 {offsets = [0, 0], sizes = [1, 512], strides = [1, 1]} : vector<8x512xf32> to vector<1x512xf32>
    %c0_11 = arith.constant 0 : index
    %c0_12 = arith.constant 0 : index
    %18 = vector.load %arg2[%c0_11, %c0_12] : memref<128x512xbf16, #tpu.memory_space<vmem>>, vector<128x512xbf16>
    %19 = arith.truncf %13 : vector<1x128xf32> to vector<1x128xbf16>
    %cst_13 = arith.constant dense<0.000000e+00> : vector<1x512xf32>
    %20 = tpu.matmul %19, %18, %cst_13 {dimension_numbers = #tpu.dot_dimension_numbers<[1], [0], [0], [1], [0, 0, 1, 1], [], []>} : vector<1x128xbf16>, vector<128x512xbf16>, vector<1x512xf32> -> vector<1x512xf32>
    %21 = arith.addf %17, %20 : vector<1x512xf32>
    %cst_14 = arith.constant 5.000000e-01 : f32
    %22 = vector.broadcast %cst_14 : f32 to vector<1x512xf32>
    %23 = arith.mulf %22, %21 : vector<1x512xf32>
    %24 = arith.select %2, %23, %21 : vector<1x512xi1>, vector<1x512xf32>
    %25 = math.tanh %24 : vector<1x512xf32>
    %cst_15 = arith.constant 5.000000e-01 : f32
    %26 = vector.broadcast %cst_15 : f32 to vector<1x512xf32>
    %27 = arith.mulf %26, %25 : vector<1x512xf32>
    %cst_16 = arith.constant 5.000000e-01 : f32
    %28 = vector.broadcast %cst_16 : f32 to vector<1x512xf32>
    %29 = arith.addf %27, %28 : vector<1x512xf32>
    %30 = arith.select %2, %29, %25 : vector<1x512xi1>, vector<1x512xf32>
    %31 = vector.extract_strided_slice %30 {offsets = [0, 0], sizes = [1, 128], strides = [1, 1]} : vector<1x512xf32> to vector<1x128xf32>
    %32 = vector.extract_strided_slice %30 {offsets = [0, 128], sizes = [1, 128], strides = [1, 1]} : vector<1x512xf32> to vector<1x128xf32>
    %33 = vector.extract_strided_slice %30 {offsets = [0, 256], sizes = [1, 128], strides = [1, 1]} : vector<1x512xf32> to vector<1x128xf32>
    %34 = vector.extract_strided_slice %30 {offsets = [0, 384], sizes = [1, 128], strides = [1, 1]} : vector<1x512xf32> to vector<1x128xf32>
    %35 = arith.mulf %32, %14 : vector<1x128xf32>
    %36 = arith.mulf %31, %34 : vector<1x128xf32>
    %37 = arith.addf %35, %36 : vector<1x128xf32>
    %38 = math.tanh %37 : vector<1x128xf32>
    %39 = arith.mulf %33, %38 : vector<1x128xf32>
    %c0_17 = arith.constant 0 : index
    %c0_18 = arith.constant 0 : index
    %40 = vector.load %arg4[%c0_17, %c0_18] : memref<128x256xbf16, #tpu.memory_space<vmem>>, vector<128x256xbf16>
    %41 = arith.truncf %39 : vector<1x128xf32> to vector<1x128xbf16>
    %cst_19 = arith.constant dense<0.000000e+00> : vector<1x256xf32>
    %42 = tpu.matmul %41, %40, %cst_19 {dimension_numbers = #tpu.dot_dimension_numbers<[1], [0], [0], [1], [0, 0, 1, 1], [], []>} : vector<1x128xbf16>, vector<128x256xbf16>, vector<1x256xf32> -> vector<1x256xf32>
    %c0_20 = arith.constant 0 : index
    %c0_21 = arith.constant 0 : index
    %43 = vector.load %arg5[%c0_20, %c0_21] : memref<64x256xbf16, #tpu.memory_space<vmem>>, vector<64x256xbf16>
    %44 = arith.truncf %15 : vector<1x64xf32> to vector<1x64xbf16>
    %cst_22 = arith.constant dense<0.000000e+00> : vector<1x256xf32>
    %45 = tpu.matmul %44, %43, %cst_22 {dimension_numbers = #tpu.dot_dimension_numbers<[1], [0], [0], [1], [0, 0, 1, 1], [], []>} : vector<1x64xbf16>, vector<64x256xbf16>, vector<1x256xf32> -> vector<1x256xf32>
    %46 = arith.addf %42, %45 : vector<1x256xf32>
    %47 = arith.addf %46, %12 : vector<1x256xf32>
    %cst_23 = arith.constant 5.000000e-01 : f32
    %48 = vector.broadcast %cst_23 : f32 to vector<1x256xf32>
    %49 = arith.mulf %48, %47 : vector<1x256xf32>
    %50 = arith.select %5, %49, %47 : vector<1x256xi1>, vector<1x256xf32>
    %51 = math.tanh %50 : vector<1x256xf32>
    %cst_24 = arith.constant 5.000000e-01 : f32
    %52 = vector.broadcast %cst_24 : f32 to vector<1x256xf32>
    %53 = arith.mulf %52, %51 : vector<1x256xf32>
    %cst_25 = arith.constant 5.000000e-01 : f32
    %54 = vector.broadcast %cst_25 : f32 to vector<1x256xf32>
    %55 = arith.addf %53, %54 : vector<1x256xf32>
    %56 = arith.select %5, %55, %51 : vector<1x256xi1>, vector<1x256xf32>
    %57 = vector.extract_strided_slice %56 {offsets = [0, 0], sizes = [1, 64], strides = [1, 1]} : vector<1x256xf32> to vector<1x64xf32>
    %58 = vector.extract_strided_slice %56 {offsets = [0, 64], sizes = [1, 64], strides = [1, 1]} : vector<1x256xf32> to vector<1x64xf32>
    %59 = vector.extract_strided_slice %56 {offsets = [0, 128], sizes = [1, 64], strides = [1, 1]} : vector<1x256xf32> to vector<1x64xf32>
    %60 = vector.extract_strided_slice %56 {offsets = [0, 192], sizes = [1, 64], strides = [1, 1]} : vector<1x256xf32> to vector<1x64xf32>
    %61 = arith.mulf %58, %16 : vector<1x64xf32>
    %62 = arith.mulf %57, %60 : vector<1x64xf32>
    %63 = arith.addf %61, %62 : vector<1x64xf32>
    %64 = math.tanh %63 : vector<1x64xf32>
    %65 = arith.mulf %59, %64 : vector<1x64xf32>
    %66 = vector.extract_strided_slice %11 {offsets = [1, 0], sizes = [1, 512], strides = [1, 1]} : vector<8x512xf32> to vector<1x512xf32>
    %c0_26 = arith.constant 0 : index
    %c0_27 = arith.constant 0 : index
    %67 = vector.load %arg2[%c0_26, %c0_27] : memref<128x512xbf16, #tpu.memory_space<vmem>>, vector<128x512xbf16>
    %68 = arith.truncf %39 : vector<1x128xf32> to vector<1x128xbf16>
    %cst_28 = arith.constant dense<0.000000e+00> : vector<1x512xf32>
    %69 = tpu.matmul %68, %67, %cst_28 {dimension_numbers = #tpu.dot_dimension_numbers<[1], [0], [0], [1], [0, 0, 1, 1], [], []>} : vector<1x128xbf16>, vector<128x512xbf16>, vector<1x512xf32> -> vector<1x512xf32>
    %70 = arith.addf %66, %69 : vector<1x512xf32>
    %cst_29 = arith.constant 5.000000e-01 : f32
    %71 = vector.broadcast %cst_29 : f32 to vector<1x512xf32>
    %72 = arith.mulf %71, %70 : vector<1x512xf32>
    %73 = arith.select %2, %72, %70 : vector<1x512xi1>, vector<1x512xf32>
    %74 = math.tanh %73 : vector<1x512xf32>
    %cst_30 = arith.constant 5.000000e-01 : f32
    %75 = vector.broadcast %cst_30 : f32 to vector<1x512xf32>
    %76 = arith.mulf %75, %74 : vector<1x512xf32>
    %cst_31 = arith.constant 5.000000e-01 : f32
    %77 = vector.broadcast %cst_31 : f32 to vector<1x512xf32>
    %78 = arith.addf %76, %77 : vector<1x512xf32>
    %79 = arith.select %2, %78, %74 : vector<1x512xi1>, vector<1x512xf32>
    %80 = vector.extract_strided_slice %79 {offsets = [0, 0], sizes = [1, 128], strides = [1, 1]} : vector<1x512xf32> to vector<1x128xf32>
    %81 = vector.extract_strided_slice %79 {offsets = [0, 128], sizes = [1, 128], strides = [1, 1]} : vector<1x512xf32> to vector<1x128xf32>
    %82 = vector.extract_strided_slice %79 {offsets = [0, 256], sizes = [1, 128], strides = [1, 1]} : vector<1x512xf32> to vector<1x128xf32>
    %83 = vector.extract_strided_slice %79 {offsets = [0, 384], sizes = [1, 128], strides = [1, 1]} : vector<1x512xf32> to vector<1x128xf32>
    %84 = arith.mulf %81, %37 : vector<1x128xf32>
    %85 = arith.mulf %80, %83 : vector<1x128xf32>
    %86 = arith.addf %84, %85 : vector<1x128xf32>
    %87 = math.tanh %86 : vector<1x128xf32>
    %88 = arith.mulf %82, %87 : vector<1x128xf32>
    %c0_32 = arith.constant 0 : index
    %c0_33 = arith.constant 0 : index
    %89 = vector.load %arg4[%c0_32, %c0_33] : memref<128x256xbf16, #tpu.memory_space<vmem>>, vector<128x256xbf16>
    %90 = arith.truncf %88 : vector<1x128xf32> to vector<1x128xbf16>
    %cst_34 = arith.constant dense<0.000000e+00> : vector<1x256xf32>
    %91 = tpu.matmul %90, %89, %cst_34 {dimension_numbers = #tpu.dot_dimension_numbers<[1], [0], [0], [1], [0, 0, 1, 1], [], []>} : vector<1x128xbf16>, vector<128x256xbf16>, vector<1x256xf32> -> vector<1x256xf32>
    %c0_35 = arith.constant 0 : index
    %c0_36 = arith.constant 0 : index
    %92 = vector.load %arg5[%c0_35, %c0_36] : memref<64x256xbf16, #tpu.memory_space<vmem>>, vector<64x256xbf16>
    %93 = arith.truncf %65 : vector<1x64xf32> to vector<1x64xbf16>
    %cst_37 = arith.constant dense<0.000000e+00> : vector<1x256xf32>
    %94 = tpu.matmul %93, %92, %cst_37 {dimension_numbers = #tpu.dot_dimension_numbers<[1], [0], [0], [1], [0, 0, 1, 1], [], []>} : vector<1x64xbf16>, vector<64x256xbf16>, vector<1x256xf32> -> vector<1x256xf32>
    %95 = arith.addf %91, %94 : vector<1x256xf32>
    %96 = arith.addf %95, %12 : vector<1x256xf32>
    %cst_38 = arith.constant 5.000000e-01 : f32
    %97 = vector.broadcast %cst_38 : f32 to vector<1x256xf32>
    %98 = arith.mulf %97, %96 : vector<1x256xf32>
    %99 = arith.select %5, %98, %96 : vector<1x256xi1>, vector<1x256xf32>
    %100 = math.tanh %99 : vector<1x256xf32>
    %cst_39 = arith.constant 5.000000e-01 : f32
    %101 = vector.broadcast %cst_39 : f32 to vector<1x256xf32>
    %102 = arith.mulf %101, %100 : vector<1x256xf32>
    %cst_40 = arith.constant 5.000000e-01 : f32
    %103 = vector.broadcast %cst_40 : f32 to vector<1x256xf32>
    %104 = arith.addf %102, %103 : vector<1x256xf32>
    %105 = arith.select %5, %104, %100 : vector<1x256xi1>, vector<1x256xf32>
    %106 = vector.extract_strided_slice %105 {offsets = [0, 0], sizes = [1, 64], strides = [1, 1]} : vector<1x256xf32> to vector<1x64xf32>
    %107 = vector.extract_strided_slice %105 {offsets = [0, 64], sizes = [1, 64], strides = [1, 1]} : vector<1x256xf32> to vector<1x64xf32>
    %108 = vector.extract_strided_slice %105 {offsets = [0, 128], sizes = [1, 64], strides = [1, 1]} : vector<1x256xf32> to vector<1x64xf32>
    %109 = vector.extract_strided_slice %105 {offsets = [0, 192], sizes = [1, 64], strides = [1, 1]} : vector<1x256xf32> to vector<1x64xf32>
    %110 = arith.mulf %107, %63 : vector<1x64xf32>
    %111 = arith.mulf %106, %109 : vector<1x64xf32>
    %112 = arith.addf %110, %111 : vector<1x64xf32>
    %113 = math.tanh %112 : vector<1x64xf32>
    %114 = arith.mulf %108, %113 : vector<1x64xf32>
    %115 = vector.extract_strided_slice %11 {offsets = [2, 0], sizes = [1, 512], strides = [1, 1]} : vector<8x512xf32> to vector<1x512xf32>
    %c0_41 = arith.constant 0 : index
    %c0_42 = arith.constant 0 : index
    %116 = vector.load %arg2[%c0_41, %c0_42] : memref<128x512xbf16, #tpu.memory_space<vmem>>, vector<128x512xbf16>
    %117 = arith.truncf %88 : vector<1x128xf32> to vector<1x128xbf16>
    %cst_43 = arith.constant dense<0.000000e+00> : vector<1x512xf32>
    %118 = tpu.matmul %117, %116, %cst_43 {dimension_numbers = #tpu.dot_dimension_numbers<[1], [0], [0], [1], [0, 0, 1, 1], [], []>} : vector<1x128xbf16>, vector<128x512xbf16>, vector<1x512xf32> -> vector<1x512xf32>
    %119 = arith.addf %115, %118 : vector<1x512xf32>
    %cst_44 = arith.constant 5.000000e-01 : f32
    %120 = vector.broadcast %cst_44 : f32 to vector<1x512xf32>
    %121 = arith.mulf %120, %119 : vector<1x512xf32>
    %122 = arith.select %2, %121, %119 : vector<1x512xi1>, vector<1x512xf32>
    %123 = math.tanh %122 : vector<1x512xf32>
    %cst_45 = arith.constant 5.000000e-01 : f32
    %124 = vector.broadcast %cst_45 : f32 to vector<1x512xf32>
    %125 = arith.mulf %124, %123 : vector<1x512xf32>
    %cst_46 = arith.constant 5.000000e-01 : f32
    %126 = vector.broadcast %cst_46 : f32 to vector<1x512xf32>
    %127 = arith.addf %125, %126 : vector<1x512xf32>
    %128 = arith.select %2, %127, %123 : vector<1x512xi1>, vector<1x512xf32>
    %129 = vector.extract_strided_slice %128 {offsets = [0, 0], sizes = [1, 128], strides = [1, 1]} : vector<1x512xf32> to vector<1x128xf32>
    %130 = vector.extract_strided_slice %128 {offsets = [0, 128], sizes = [1, 128], strides = [1, 1]} : vector<1x512xf32> to vector<1x128xf32>
    %131 = vector.extract_strided_slice %128 {offsets = [0, 256], sizes = [1, 128], strides = [1, 1]} : vector<1x512xf32> to vector<1x128xf32>
    %132 = vector.extract_strided_slice %128 {offsets = [0, 384], sizes = [1, 128], strides = [1, 1]} : vector<1x512xf32> to vector<1x128xf32>
    %133 = arith.mulf %130, %86 : vector<1x128xf32>
    %134 = arith.mulf %129, %132 : vector<1x128xf32>
    %135 = arith.addf %133, %134 : vector<1x128xf32>
    %136 = math.tanh %135 : vector<1x128xf32>
    %137 = arith.mulf %131, %136 : vector<1x128xf32>
    %c0_47 = arith.constant 0 : index
    %c0_48 = arith.constant 0 : index
    %138 = vector.load %arg4[%c0_47, %c0_48] : memref<128x256xbf16, #tpu.memory_space<vmem>>, vector<128x256xbf16>
    %139 = arith.truncf %137 : vector<1x128xf32> to vector<1x128xbf16>
    %cst_49 = arith.constant dense<0.000000e+00> : vector<1x256xf32>
    %140 = tpu.matmul %139, %138, %cst_49 {dimension_numbers = #tpu.dot_dimension_numbers<[1], [0], [0], [1], [0, 0, 1, 1], [], []>} : vector<1x128xbf16>, vector<128x256xbf16>, vector<1x256xf32> -> vector<1x256xf32>
    %c0_50 = arith.constant 0 : index
    %c0_51 = arith.constant 0 : index
    %141 = vector.load %arg5[%c0_50, %c0_51] : memref<64x256xbf16, #tpu.memory_space<vmem>>, vector<64x256xbf16>
    %142 = arith.truncf %114 : vector<1x64xf32> to vector<1x64xbf16>
    %cst_52 = arith.constant dense<0.000000e+00> : vector<1x256xf32>
    %143 = tpu.matmul %142, %141, %cst_52 {dimension_numbers = #tpu.dot_dimension_numbers<[1], [0], [0], [1], [0, 0, 1, 1], [], []>} : vector<1x64xbf16>, vector<64x256xbf16>, vector<1x256xf32> -> vector<1x256xf32>
    %144 = arith.addf %140, %143 : vector<1x256xf32>
    %145 = arith.addf %144, %12 : vector<1x256xf32>
    %cst_53 = arith.constant 5.000000e-01 : f32
    %146 = vector.broadcast %cst_53 : f32 to vector<1x256xf32>
    %147 = arith.mulf %146, %145 : vector<1x256xf32>
    %148 = arith.select %5, %147, %145 : vector<1x256xi1>, vector<1x256xf32>
    %149 = math.tanh %148 : vector<1x256xf32>
    %cst_54 = arith.constant 5.000000e-01 : f32
    %150 = vector.broadcast %cst_54 : f32 to vector<1x256xf32>
    %151 = arith.mulf %150, %149 : vector<1x256xf32>
    %cst_55 = arith.constant 5.000000e-01 : f32
    %152 = vector.broadcast %cst_55 : f32 to vector<1x256xf32>
    %153 = arith.addf %151, %152 : vector<1x256xf32>
    %154 = arith.select %5, %153, %149 : vector<1x256xi1>, vector<1x256xf32>
    %155 = vector.extract_strided_slice %154 {offsets = [0, 0], sizes = [1, 64], strides = [1, 1]} : vector<1x256xf32> to vector<1x64xf32>
    %156 = vector.extract_strided_slice %154 {offsets = [0, 64], sizes = [1, 64], strides = [1, 1]} : vector<1x256xf32> to vector<1x64xf32>
    %157 = vector.extract_strided_slice %154 {offsets = [0, 128], sizes = [1, 64], strides = [1, 1]} : vector<1x256xf32> to vector<1x64xf32>
    %158 = vector.extract_strided_slice %154 {offsets = [0, 192], sizes = [1, 64], strides = [1, 1]} : vector<1x256xf32> to vector<1x64xf32>
    %159 = arith.mulf %156, %112 : vector<1x64xf32>
    %160 = arith.mulf %155, %158 : vector<1x64xf32>
    %161 = arith.addf %159, %160 : vector<1x64xf32>
    %162 = math.tanh %161 : vector<1x64xf32>
    %163 = arith.mulf %157, %162 : vector<1x64xf32>
    %164 = vector.extract_strided_slice %11 {offsets = [3, 0], sizes = [1, 512], strides = [1, 1]} : vector<8x512xf32> to vector<1x512xf32>
    %c0_56 = arith.constant 0 : index
    %c0_57 = arith.constant 0 : index
    %165 = vector.load %arg2[%c0_56, %c0_57] : memref<128x512xbf16, #tpu.memory_space<vmem>>, vector<128x512xbf16>
    %166 = arith.truncf %137 : vector<1x128xf32> to vector<1x128xbf16>
    %cst_58 = arith.constant dense<0.000000e+00> : vector<1x512xf32>
    %167 = tpu.matmul %166, %165, %cst_58 {dimension_numbers = #tpu.dot_dimension_numbers<[1], [0], [0], [1], [0, 0, 1, 1], [], []>} : vector<1x128xbf16>, vector<128x512xbf16>, vector<1x512xf32> -> vector<1x512xf32>
    %168 = arith.addf %164, %167 : vector<1x512xf32>
    %cst_59 = arith.constant 5.000000e-01 : f32
    %169 = vector.broadcast %cst_59 : f32 to vector<1x512xf32>
    %170 = arith.mulf %169, %168 : vector<1x512xf32>
    %171 = arith.select %2, %170, %168 : vector<1x512xi1>, vector<1x512xf32>
    %172 = math.tanh %171 : vector<1x512xf32>
    %cst_60 = arith.constant 5.000000e-01 : f32
    %173 = vector.broadcast %cst_60 : f32 to vector<1x512xf32>
    %174 = arith.mulf %173, %172 : vector<1x512xf32>
    %cst_61 = arith.constant 5.000000e-01 : f32
    %175 = vector.broadcast %cst_61 : f32 to vector<1x512xf32>
    %176 = arith.addf %174, %175 : vector<1x512xf32>
    %177 = arith.select %2, %176, %172 : vector<1x512xi1>, vector<1x512xf32>
    %178 = vector.extract_strided_slice %177 {offsets = [0, 0], sizes = [1, 128], strides = [1, 1]} : vector<1x512xf32> to vector<1x128xf32>
    %179 = vector.extract_strided_slice %177 {offsets = [0, 128], sizes = [1, 128], strides = [1, 1]} : vector<1x512xf32> to vector<1x128xf32>
    %180 = vector.extract_strided_slice %177 {offsets = [0, 256], sizes = [1, 128], strides = [1, 1]} : vector<1x512xf32> to vector<1x128xf32>
    %181 = vector.extract_strided_slice %177 {offsets = [0, 384], sizes = [1, 128], strides = [1, 1]} : vector<1x512xf32> to vector<1x128xf32>
    %182 = arith.mulf %179, %135 : vector<1x128xf32>
    %183 = arith.mulf %178, %181 : vector<1x128xf32>
    %184 = arith.addf %182, %183 : vector<1x128xf32>
    %185 = math.tanh %184 : vector<1x128xf32>
    %186 = arith.mulf %180, %185 : vector<1x128xf32>
    %c0_62 = arith.constant 0 : index
    %c0_63 = arith.constant 0 : index
    %187 = vector.load %arg4[%c0_62, %c0_63] : memref<128x256xbf16, #tpu.memory_space<vmem>>, vector<128x256xbf16>
    %188 = arith.truncf %186 : vector<1x128xf32> to vector<1x128xbf16>
    %cst_64 = arith.constant dense<0.000000e+00> : vector<1x256xf32>
    %189 = tpu.matmul %188, %187, %cst_64 {dimension_numbers = #tpu.dot_dimension_numbers<[1], [0], [0], [1], [0, 0, 1, 1], [], []>} : vector<1x128xbf16>, vector<128x256xbf16>, vector<1x256xf32> -> vector<1x256xf32>
    %c0_65 = arith.constant 0 : index
    %c0_66 = arith.constant 0 : index
    %190 = vector.load %arg5[%c0_65, %c0_66] : memref<64x256xbf16, #tpu.memory_space<vmem>>, vector<64x256xbf16>
    %191 = arith.truncf %163 : vector<1x64xf32> to vector<1x64xbf16>
    %cst_67 = arith.constant dense<0.000000e+00> : vector<1x256xf32>
    %192 = tpu.matmul %191, %190, %cst_67 {dimension_numbers = #tpu.dot_dimension_numbers<[1], [0], [0], [1], [0, 0, 1, 1], [], []>} : vector<1x64xbf16>, vector<64x256xbf16>, vector<1x256xf32> -> vector<1x256xf32>
    %193 = arith.addf %189, %192 : vector<1x256xf32>
    %194 = arith.addf %193, %12 : vector<1x256xf32>
    %cst_68 = arith.constant 5.000000e-01 : f32
    %195 = vector.broadcast %cst_68 : f32 to vector<1x256xf32>
    %196 = arith.mulf %195, %194 : vector<1x256xf32>
    %197 = arith.select %5, %196, %194 : vector<1x256xi1>, vector<1x256xf32>
    %198 = math.tanh %197 : vector<1x256xf32>
    %cst_69 = arith.constant 5.000000e-01 : f32
    %199 = vector.broadcast %cst_69 : f32 to vector<1x256xf32>
    %200 = arith.mulf %199, %198 : vector<1x256xf32>
    %cst_70 = arith.constant 5.000000e-01 : f32
    %201 = vector.broadcast %cst_70 : f32 to vector<1x256xf32>
    %202 = arith.addf %200, %201 : vector<1x256xf32>
    %203 = arith.select %5, %202, %198 : vector<1x256xi1>, vector<1x256xf32>
    %204 = vector.extract_strided_slice %203 {offsets = [0, 0], sizes = [1, 64], strides = [1, 1]} : vector<1x256xf32> to vector<1x64xf32>
    %205 = vector.extract_strided_slice %203 {offsets = [0, 64], sizes = [1, 64], strides = [1, 1]} : vector<1x256xf32> to vector<1x64xf32>
    %206 = vector.extract_strided_slice %203 {offsets = [0, 128], sizes = [1, 64], strides = [1, 1]} : vector<1x256xf32> to vector<1x64xf32>
    %207 = vector.extract_strided_slice %203 {offsets = [0, 192], sizes = [1, 64], strides = [1, 1]} : vector<1x256xf32> to vector<1x64xf32>
    %208 = arith.mulf %205, %161 : vector<1x64xf32>
    %209 = arith.mulf %204, %207 : vector<1x64xf32>
    %210 = arith.addf %208, %209 : vector<1x64xf32>
    %211 = math.tanh %210 : vector<1x64xf32>
    %212 = arith.mulf %206, %211 : vector<1x64xf32>
    %213 = vector.extract_strided_slice %11 {offsets = [4, 0], sizes = [1, 512], strides = [1, 1]} : vector<8x512xf32> to vector<1x512xf32>
    %c0_71 = arith.constant 0 : index
    %c0_72 = arith.constant 0 : index
    %214 = vector.load %arg2[%c0_71, %c0_72] : memref<128x512xbf16, #tpu.memory_space<vmem>>, vector<128x512xbf16>
    %215 = arith.truncf %186 : vector<1x128xf32> to vector<1x128xbf16>
    %cst_73 = arith.constant dense<0.000000e+00> : vector<1x512xf32>
    %216 = tpu.matmul %215, %214, %cst_73 {dimension_numbers = #tpu.dot_dimension_numbers<[1], [0], [0], [1], [0, 0, 1, 1], [], []>} : vector<1x128xbf16>, vector<128x512xbf16>, vector<1x512xf32> -> vector<1x512xf32>
    %217 = arith.addf %213, %216 : vector<1x512xf32>
    %cst_74 = arith.constant 5.000000e-01 : f32
    %218 = vector.broadcast %cst_74 : f32 to vector<1x512xf32>
    %219 = arith.mulf %218, %217 : vector<1x512xf32>
    %220 = arith.select %2, %219, %217 : vector<1x512xi1>, vector<1x512xf32>
    %221 = math.tanh %220 : vector<1x512xf32>
    %cst_75 = arith.constant 5.000000e-01 : f32
    %222 = vector.broadcast %cst_75 : f32 to vector<1x512xf32>
    %223 = arith.mulf %222, %221 : vector<1x512xf32>
    %cst_76 = arith.constant 5.000000e-01 : f32
    %224 = vector.broadcast %cst_76 : f32 to vector<1x512xf32>
    %225 = arith.addf %223, %224 : vector<1x512xf32>
    %226 = arith.select %2, %225, %221 : vector<1x512xi1>, vector<1x512xf32>
    %227 = vector.extract_strided_slice %226 {offsets = [0, 0], sizes = [1, 128], strides = [1, 1]} : vector<1x512xf32> to vector<1x128xf32>
    %228 = vector.extract_strided_slice %226 {offsets = [0, 128], sizes = [1, 128], strides = [1, 1]} : vector<1x512xf32> to vector<1x128xf32>
    %229 = vector.extract_strided_slice %226 {offsets = [0, 256], sizes = [1, 128], strides = [1, 1]} : vector<1x512xf32> to vector<1x128xf32>
    %230 = vector.extract_strided_slice %226 {offsets = [0, 384], sizes = [1, 128], strides = [1, 1]} : vector<1x512xf32> to vector<1x128xf32>
    %231 = arith.mulf %228, %184 : vector<1x128xf32>
    %232 = arith.mulf %227, %230 : vector<1x128xf32>
    %233 = arith.addf %231, %232 : vector<1x128xf32>
    %234 = math.tanh %233 : vector<1x128xf32>
    %235 = arith.mulf %229, %234 : vector<1x128xf32>
    %c0_77 = arith.constant 0 : index
    %c0_78 = arith.constant 0 : index
    %236 = vector.load %arg4[%c0_77, %c0_78] : memref<128x256xbf16, #tpu.memory_space<vmem>>, vector<128x256xbf16>
    %237 = arith.truncf %235 : vector<1x128xf32> to vector<1x128xbf16>
    %cst_79 = arith.constant dense<0.000000e+00> : vector<1x256xf32>
    %238 = tpu.matmul %237, %236, %cst_79 {dimension_numbers = #tpu.dot_dimension_numbers<[1], [0], [0], [1], [0, 0, 1, 1], [], []>} : vector<1x128xbf16>, vector<128x256xbf16>, vector<1x256xf32> -> vector<1x256xf32>
    %c0_80 = arith.constant 0 : index
    %c0_81 = arith.constant 0 : index
    %239 = vector.load %arg5[%c0_80, %c0_81] : memref<64x256xbf16, #tpu.memory_space<vmem>>, vector<64x256xbf16>
    %240 = arith.truncf %212 : vector<1x64xf32> to vector<1x64xbf16>
    %cst_82 = arith.constant dense<0.000000e+00> : vector<1x256xf32>
    %241 = tpu.matmul %240, %239, %cst_82 {dimension_numbers = #tpu.dot_dimension_numbers<[1], [0], [0], [1], [0, 0, 1, 1], [], []>} : vector<1x64xbf16>, vector<64x256xbf16>, vector<1x256xf32> -> vector<1x256xf32>
    %242 = arith.addf %238, %241 : vector<1x256xf32>
    %243 = arith.addf %242, %12 : vector<1x256xf32>
    %cst_83 = arith.constant 5.000000e-01 : f32
    %244 = vector.broadcast %cst_83 : f32 to vector<1x256xf32>
    %245 = arith.mulf %244, %243 : vector<1x256xf32>
    %246 = arith.select %5, %245, %243 : vector<1x256xi1>, vector<1x256xf32>
    %247 = math.tanh %246 : vector<1x256xf32>
    %cst_84 = arith.constant 5.000000e-01 : f32
    %248 = vector.broadcast %cst_84 : f32 to vector<1x256xf32>
    %249 = arith.mulf %248, %247 : vector<1x256xf32>
    %cst_85 = arith.constant 5.000000e-01 : f32
    %250 = vector.broadcast %cst_85 : f32 to vector<1x256xf32>
    %251 = arith.addf %249, %250 : vector<1x256xf32>
    %252 = arith.select %5, %251, %247 : vector<1x256xi1>, vector<1x256xf32>
    %253 = vector.extract_strided_slice %252 {offsets = [0, 0], sizes = [1, 64], strides = [1, 1]} : vector<1x256xf32> to vector<1x64xf32>
    %254 = vector.extract_strided_slice %252 {offsets = [0, 64], sizes = [1, 64], strides = [1, 1]} : vector<1x256xf32> to vector<1x64xf32>
    %255 = vector.extract_strided_slice %252 {offsets = [0, 128], sizes = [1, 64], strides = [1, 1]} : vector<1x256xf32> to vector<1x64xf32>
    %256 = vector.extract_strided_slice %252 {offsets = [0, 192], sizes = [1, 64], strides = [1, 1]} : vector<1x256xf32> to vector<1x64xf32>
    %257 = arith.mulf %254, %210 : vector<1x64xf32>
    %258 = arith.mulf %253, %256 : vector<1x64xf32>
    %259 = arith.addf %257, %258 : vector<1x64xf32>
    %260 = math.tanh %259 : vector<1x64xf32>
    %261 = arith.mulf %255, %260 : vector<1x64xf32>
    %262 = vector.extract_strided_slice %11 {offsets = [5, 0], sizes = [1, 512], strides = [1, 1]} : vector<8x512xf32> to vector<1x512xf32>
    %c0_86 = arith.constant 0 : index
    %c0_87 = arith.constant 0 : index
    %263 = vector.load %arg2[%c0_86, %c0_87] : memref<128x512xbf16, #tpu.memory_space<vmem>>, vector<128x512xbf16>
    %264 = arith.truncf %235 : vector<1x128xf32> to vector<1x128xbf16>
    %cst_88 = arith.constant dense<0.000000e+00> : vector<1x512xf32>
    %265 = tpu.matmul %264, %263, %cst_88 {dimension_numbers = #tpu.dot_dimension_numbers<[1], [0], [0], [1], [0, 0, 1, 1], [], []>} : vector<1x128xbf16>, vector<128x512xbf16>, vector<1x512xf32> -> vector<1x512xf32>
    %266 = arith.addf %262, %265 : vector<1x512xf32>
    %cst_89 = arith.constant 5.000000e-01 : f32
    %267 = vector.broadcast %cst_89 : f32 to vector<1x512xf32>
    %268 = arith.mulf %267, %266 : vector<1x512xf32>
    %269 = arith.select %2, %268, %266 : vector<1x512xi1>, vector<1x512xf32>
    %270 = math.tanh %269 : vector<1x512xf32>
    %cst_90 = arith.constant 5.000000e-01 : f32
    %271 = vector.broadcast %cst_90 : f32 to vector<1x512xf32>
    %272 = arith.mulf %271, %270 : vector<1x512xf32>
    %cst_91 = arith.constant 5.000000e-01 : f32
    %273 = vector.broadcast %cst_91 : f32 to vector<1x512xf32>
    %274 = arith.addf %272, %273 : vector<1x512xf32>
    %275 = arith.select %2, %274, %270 : vector<1x512xi1>, vector<1x512xf32>
    %276 = vector.extract_strided_slice %275 {offsets = [0, 0], sizes = [1, 128], strides = [1, 1]} : vector<1x512xf32> to vector<1x128xf32>
    %277 = vector.extract_strided_slice %275 {offsets = [0, 128], sizes = [1, 128], strides = [1, 1]} : vector<1x512xf32> to vector<1x128xf32>
    %278 = vector.extract_strided_slice %275 {offsets = [0, 256], sizes = [1, 128], strides = [1, 1]} : vector<1x512xf32> to vector<1x128xf32>
    %279 = vector.extract_strided_slice %275 {offsets = [0, 384], sizes = [1, 128], strides = [1, 1]} : vector<1x512xf32> to vector<1x128xf32>
    %280 = arith.mulf %277, %233 : vector<1x128xf32>
    %281 = arith.mulf %276, %279 : vector<1x128xf32>
    %282 = arith.addf %280, %281 : vector<1x128xf32>
    %283 = math.tanh %282 : vector<1x128xf32>
    %284 = arith.mulf %278, %283 : vector<1x128xf32>
    %c0_92 = arith.constant 0 : index
    %c0_93 = arith.constant 0 : index
    %285 = vector.load %arg4[%c0_92, %c0_93] : memref<128x256xbf16, #tpu.memory_space<vmem>>, vector<128x256xbf16>
    %286 = arith.truncf %284 : vector<1x128xf32> to vector<1x128xbf16>
    %cst_94 = arith.constant dense<0.000000e+00> : vector<1x256xf32>
    %287 = tpu.matmul %286, %285, %cst_94 {dimension_numbers = #tpu.dot_dimension_numbers<[1], [0], [0], [1], [0, 0, 1, 1], [], []>} : vector<1x128xbf16>, vector<128x256xbf16>, vector<1x256xf32> -> vector<1x256xf32>
    %c0_95 = arith.constant 0 : index
    %c0_96 = arith.constant 0 : index
    %288 = vector.load %arg5[%c0_95, %c0_96] : memref<64x256xbf16, #tpu.memory_space<vmem>>, vector<64x256xbf16>
    %289 = arith.truncf %261 : vector<1x64xf32> to vector<1x64xbf16>
    %cst_97 = arith.constant dense<0.000000e+00> : vector<1x256xf32>
    %290 = tpu.matmul %289, %288, %cst_97 {dimension_numbers = #tpu.dot_dimension_numbers<[1], [0], [0], [1], [0, 0, 1, 1], [], []>} : vector<1x64xbf16>, vector<64x256xbf16>, vector<1x256xf32> -> vector<1x256xf32>
    %291 = arith.addf %287, %290 : vector<1x256xf32>
    %292 = arith.addf %291, %12 : vector<1x256xf32>
    %cst_98 = arith.constant 5.000000e-01 : f32
    %293 = vector.broadcast %cst_98 : f32 to vector<1x256xf32>
    %294 = arith.mulf %293, %292 : vector<1x256xf32>
    %295 = arith.select %5, %294, %292 : vector<1x256xi1>, vector<1x256xf32>
    %296 = math.tanh %295 : vector<1x256xf32>
    %cst_99 = arith.constant 5.000000e-01 : f32
    %297 = vector.broadcast %cst_99 : f32 to vector<1x256xf32>
    %298 = arith.mulf %297, %296 : vector<1x256xf32>
    %cst_100 = arith.constant 5.000000e-01 : f32
    %299 = vector.broadcast %cst_100 : f32 to vector<1x256xf32>
    %300 = arith.addf %298, %299 : vector<1x256xf32>
    %301 = arith.select %5, %300, %296 : vector<1x256xi1>, vector<1x256xf32>
    %302 = vector.extract_strided_slice %301 {offsets = [0, 0], sizes = [1, 64], strides = [1, 1]} : vector<1x256xf32> to vector<1x64xf32>
    %303 = vector.extract_strided_slice %301 {offsets = [0, 64], sizes = [1, 64], strides = [1, 1]} : vector<1x256xf32> to vector<1x64xf32>
    %304 = vector.extract_strided_slice %301 {offsets = [0, 128], sizes = [1, 64], strides = [1, 1]} : vector<1x256xf32> to vector<1x64xf32>
    %305 = vector.extract_strided_slice %301 {offsets = [0, 192], sizes = [1, 64], strides = [1, 1]} : vector<1x256xf32> to vector<1x64xf32>
    %306 = arith.mulf %303, %259 : vector<1x64xf32>
    %307 = arith.mulf %302, %305 : vector<1x64xf32>
    %308 = arith.addf %306, %307 : vector<1x64xf32>
    %309 = math.tanh %308 : vector<1x64xf32>
    %310 = arith.mulf %304, %309 : vector<1x64xf32>
    %311 = vector.extract_strided_slice %11 {offsets = [6, 0], sizes = [1, 512], strides = [1, 1]} : vector<8x512xf32> to vector<1x512xf32>
    %c0_101 = arith.constant 0 : index
    %c0_102 = arith.constant 0 : index
    %312 = vector.load %arg2[%c0_101, %c0_102] : memref<128x512xbf16, #tpu.memory_space<vmem>>, vector<128x512xbf16>
    %313 = arith.truncf %284 : vector<1x128xf32> to vector<1x128xbf16>
    %cst_103 = arith.constant dense<0.000000e+00> : vector<1x512xf32>
    %314 = tpu.matmul %313, %312, %cst_103 {dimension_numbers = #tpu.dot_dimension_numbers<[1], [0], [0], [1], [0, 0, 1, 1], [], []>} : vector<1x128xbf16>, vector<128x512xbf16>, vector<1x512xf32> -> vector<1x512xf32>
    %315 = arith.addf %311, %314 : vector<1x512xf32>
    %cst_104 = arith.constant 5.000000e-01 : f32
    %316 = vector.broadcast %cst_104 : f32 to vector<1x512xf32>
    %317 = arith.mulf %316, %315 : vector<1x512xf32>
    %318 = arith.select %2, %317, %315 : vector<1x512xi1>, vector<1x512xf32>
    %319 = math.tanh %318 : vector<1x512xf32>
    %cst_105 = arith.constant 5.000000e-01 : f32
    %320 = vector.broadcast %cst_105 : f32 to vector<1x512xf32>
    %321 = arith.mulf %320, %319 : vector<1x512xf32>
    %cst_106 = arith.constant 5.000000e-01 : f32
    %322 = vector.broadcast %cst_106 : f32 to vector<1x512xf32>
    %323 = arith.addf %321, %322 : vector<1x512xf32>
    %324 = arith.select %2, %323, %319 : vector<1x512xi1>, vector<1x512xf32>
    %325 = vector.extract_strided_slice %324 {offsets = [0, 0], sizes = [1, 128], strides = [1, 1]} : vector<1x512xf32> to vector<1x128xf32>
    %326 = vector.extract_strided_slice %324 {offsets = [0, 128], sizes = [1, 128], strides = [1, 1]} : vector<1x512xf32> to vector<1x128xf32>
    %327 = vector.extract_strided_slice %324 {offsets = [0, 256], sizes = [1, 128], strides = [1, 1]} : vector<1x512xf32> to vector<1x128xf32>
    %328 = vector.extract_strided_slice %324 {offsets = [0, 384], sizes = [1, 128], strides = [1, 1]} : vector<1x512xf32> to vector<1x128xf32>
    %329 = arith.mulf %326, %282 : vector<1x128xf32>
    %330 = arith.mulf %325, %328 : vector<1x128xf32>
    %331 = arith.addf %329, %330 : vector<1x128xf32>
    %332 = math.tanh %331 : vector<1x128xf32>
    %333 = arith.mulf %327, %332 : vector<1x128xf32>
    %c0_107 = arith.constant 0 : index
    %c0_108 = arith.constant 0 : index
    %334 = vector.load %arg4[%c0_107, %c0_108] : memref<128x256xbf16, #tpu.memory_space<vmem>>, vector<128x256xbf16>
    %335 = arith.truncf %333 : vector<1x128xf32> to vector<1x128xbf16>
    %cst_109 = arith.constant dense<0.000000e+00> : vector<1x256xf32>
    %336 = tpu.matmul %335, %334, %cst_109 {dimension_numbers = #tpu.dot_dimension_numbers<[1], [0], [0], [1], [0, 0, 1, 1], [], []>} : vector<1x128xbf16>, vector<128x256xbf16>, vector<1x256xf32> -> vector<1x256xf32>
    %c0_110 = arith.constant 0 : index
    %c0_111 = arith.constant 0 : index
    %337 = vector.load %arg5[%c0_110, %c0_111] : memref<64x256xbf16, #tpu.memory_space<vmem>>, vector<64x256xbf16>
    %338 = arith.truncf %310 : vector<1x64xf32> to vector<1x64xbf16>
    %cst_112 = arith.constant dense<0.000000e+00> : vector<1x256xf32>
    %339 = tpu.matmul %338, %337, %cst_112 {dimension_numbers = #tpu.dot_dimension_numbers<[1], [0], [0], [1], [0, 0, 1, 1], [], []>} : vector<1x64xbf16>, vector<64x256xbf16>, vector<1x256xf32> -> vector<1x256xf32>
    %340 = arith.addf %336, %339 : vector<1x256xf32>
    %341 = arith.addf %340, %12 : vector<1x256xf32>
    %cst_113 = arith.constant 5.000000e-01 : f32
    %342 = vector.broadcast %cst_113 : f32 to vector<1x256xf32>
    %343 = arith.mulf %342, %341 : vector<1x256xf32>
    %344 = arith.select %5, %343, %341 : vector<1x256xi1>, vector<1x256xf32>
    %345 = math.tanh %344 : vector<1x256xf32>
    %cst_114 = arith.constant 5.000000e-01 : f32
    %346 = vector.broadcast %cst_114 : f32 to vector<1x256xf32>
    %347 = arith.mulf %346, %345 : vector<1x256xf32>
    %cst_115 = arith.constant 5.000000e-01 : f32
    %348 = vector.broadcast %cst_115 : f32 to vector<1x256xf32>
    %349 = arith.addf %347, %348 : vector<1x256xf32>
    %350 = arith.select %5, %349, %345 : vector<1x256xi1>, vector<1x256xf32>
    %351 = vector.extract_strided_slice %350 {offsets = [0, 0], sizes = [1, 64], strides = [1, 1]} : vector<1x256xf32> to vector<1x64xf32>
    %352 = vector.extract_strided_slice %350 {offsets = [0, 64], sizes = [1, 64], strides = [1, 1]} : vector<1x256xf32> to vector<1x64xf32>
    %353 = vector.extract_strided_slice %350 {offsets = [0, 128], sizes = [1, 64], strides = [1, 1]} : vector<1x256xf32> to vector<1x64xf32>
    %354 = vector.extract_strided_slice %350 {offsets = [0, 192], sizes = [1, 64], strides = [1, 1]} : vector<1x256xf32> to vector<1x64xf32>
    %355 = arith.mulf %352, %308 : vector<1x64xf32>
    %356 = arith.mulf %351, %354 : vector<1x64xf32>
    %357 = arith.addf %355, %356 : vector<1x64xf32>
    %358 = math.tanh %357 : vector<1x64xf32>
    %359 = arith.mulf %353, %358 : vector<1x64xf32>
    %360 = vector.extract_strided_slice %11 {offsets = [7, 0], sizes = [1, 512], strides = [1, 1]} : vector<8x512xf32> to vector<1x512xf32>
    %c0_116 = arith.constant 0 : index
    %c0_117 = arith.constant 0 : index
    %361 = vector.load %arg2[%c0_116, %c0_117] : memref<128x512xbf16, #tpu.memory_space<vmem>>, vector<128x512xbf16>
    %362 = arith.truncf %333 : vector<1x128xf32> to vector<1x128xbf16>
    %cst_118 = arith.constant dense<0.000000e+00> : vector<1x512xf32>
    %363 = tpu.matmul %362, %361, %cst_118 {dimension_numbers = #tpu.dot_dimension_numbers<[1], [0], [0], [1], [0, 0, 1, 1], [], []>} : vector<1x128xbf16>, vector<128x512xbf16>, vector<1x512xf32> -> vector<1x512xf32>
    %364 = arith.addf %360, %363 : vector<1x512xf32>
    %cst_119 = arith.constant 5.000000e-01 : f32
    %365 = vector.broadcast %cst_119 : f32 to vector<1x512xf32>
    %366 = arith.mulf %365, %364 : vector<1x512xf32>
    %367 = arith.select %2, %366, %364 : vector<1x512xi1>, vector<1x512xf32>
    %368 = math.tanh %367 : vector<1x512xf32>
    %cst_120 = arith.constant 5.000000e-01 : f32
    %369 = vector.broadcast %cst_120 : f32 to vector<1x512xf32>
    %370 = arith.mulf %369, %368 : vector<1x512xf32>
    %cst_121 = arith.constant 5.000000e-01 : f32
    %371 = vector.broadcast %cst_121 : f32 to vector<1x512xf32>
    %372 = arith.addf %370, %371 : vector<1x512xf32>
    %373 = arith.select %2, %372, %368 : vector<1x512xi1>, vector<1x512xf32>
    %374 = vector.extract_strided_slice %373 {offsets = [0, 0], sizes = [1, 128], strides = [1, 1]} : vector<1x512xf32> to vector<1x128xf32>
    %375 = vector.extract_strided_slice %373 {offsets = [0, 128], sizes = [1, 128], strides = [1, 1]} : vector<1x512xf32> to vector<1x128xf32>
    %376 = vector.extract_strided_slice %373 {offsets = [0, 256], sizes = [1, 128], strides = [1, 1]} : vector<1x512xf32> to vector<1x128xf32>
    %377 = vector.extract_strided_slice %373 {offsets = [0, 384], sizes = [1, 128], strides = [1, 1]} : vector<1x512xf32> to vector<1x128xf32>
    %378 = arith.mulf %375, %331 : vector<1x128xf32>
    %379 = arith.mulf %374, %377 : vector<1x128xf32>
    %380 = arith.addf %378, %379 : vector<1x128xf32>
    %381 = math.tanh %380 : vector<1x128xf32>
    %382 = arith.mulf %376, %381 : vector<1x128xf32>
    %c0_122 = arith.constant 0 : index
    %c0_123 = arith.constant 0 : index
    %383 = vector.load %arg4[%c0_122, %c0_123] : memref<128x256xbf16, #tpu.memory_space<vmem>>, vector<128x256xbf16>
    %384 = arith.truncf %382 : vector<1x128xf32> to vector<1x128xbf16>
    %cst_124 = arith.constant dense<0.000000e+00> : vector<1x256xf32>
    %385 = tpu.matmul %384, %383, %cst_124 {dimension_numbers = #tpu.dot_dimension_numbers<[1], [0], [0], [1], [0, 0, 1, 1], [], []>} : vector<1x128xbf16>, vector<128x256xbf16>, vector<1x256xf32> -> vector<1x256xf32>
    %c0_125 = arith.constant 0 : index
    %c0_126 = arith.constant 0 : index
    %386 = vector.load %arg5[%c0_125, %c0_126] : memref<64x256xbf16, #tpu.memory_space<vmem>>, vector<64x256xbf16>
    %387 = arith.truncf %359 : vector<1x64xf32> to vector<1x64xbf16>
    %cst_127 = arith.constant dense<0.000000e+00> : vector<1x256xf32>
    %388 = tpu.matmul %387, %386, %cst_127 {dimension_numbers = #tpu.dot_dimension_numbers<[1], [0], [0], [1], [0, 0, 1, 1], [], []>} : vector<1x64xbf16>, vector<64x256xbf16>, vector<1x256xf32> -> vector<1x256xf32>
    %389 = arith.addf %385, %388 : vector<1x256xf32>
    %390 = arith.addf %389, %12 : vector<1x256xf32>
    %cst_128 = arith.constant 5.000000e-01 : f32
    %391 = vector.broadcast %cst_128 : f32 to vector<1x256xf32>
    %392 = arith.mulf %391, %390 : vector<1x256xf32>
    %393 = arith.select %5, %392, %390 : vector<1x256xi1>, vector<1x256xf32>
    %394 = math.tanh %393 : vector<1x256xf32>
    %cst_129 = arith.constant 5.000000e-01 : f32
    %395 = vector.broadcast %cst_129 : f32 to vector<1x256xf32>
    %396 = arith.mulf %395, %394 : vector<1x256xf32>
    %cst_130 = arith.constant 5.000000e-01 : f32
    %397 = vector.broadcast %cst_130 : f32 to vector<1x256xf32>
    %398 = arith.addf %396, %397 : vector<1x256xf32>
    %399 = arith.select %5, %398, %394 : vector<1x256xi1>, vector<1x256xf32>
    %400 = vector.extract_strided_slice %399 {offsets = [0, 0], sizes = [1, 64], strides = [1, 1]} : vector<1x256xf32> to vector<1x64xf32>
    %401 = vector.extract_strided_slice %399 {offsets = [0, 64], sizes = [1, 64], strides = [1, 1]} : vector<1x256xf32> to vector<1x64xf32>
    %402 = vector.extract_strided_slice %399 {offsets = [0, 128], sizes = [1, 64], strides = [1, 1]} : vector<1x256xf32> to vector<1x64xf32>
    %403 = vector.extract_strided_slice %399 {offsets = [0, 192], sizes = [1, 64], strides = [1, 1]} : vector<1x256xf32> to vector<1x64xf32>
    %404 = arith.mulf %401, %357 : vector<1x64xf32>
    %405 = arith.mulf %400, %403 : vector<1x64xf32>
    %406 = arith.addf %404, %405 : vector<1x64xf32>
    %407 = math.tanh %406 : vector<1x64xf32>
    %408 = arith.mulf %402, %407 : vector<1x64xf32>
    %c0_131 = arith.constant 0 : index
    %c0_132 = arith.constant 0 : index
    %409 = vector.load %arg7[%c0_131, %c0_132] : memref<1x64xf32, #tpu.memory_space<vmem>>, vector<1x64xf32>
    tpu.vector_store %arg7[%c0_131, %c0_132], %408 {strides = array<i32>} : memref<1x64xf32, #tpu.memory_space<vmem>>, vector<1x64xf32>,
    return
  }
}

</mosaic_0001>

<llo_original>
// kernel: tpu_custom_call.1
$region0: #{tpu_custom_call.1}
  #allocation0 [shape = 'u32[]', space=smem, size = 0x4, offset = 0x4, fixed_abs, tag = 'smem constant byte address 0x4 - core index']
  #allocation1 [shape = 'u32[144,128]{1,0:T(1,128)}', space=vmem, size = 0x12000, scoped, tag = 'internal scratch']
  %s0 = inlined_call_operand.hbm [shape: bf16[8,8], index: 0, kind: input, shape index: {}]
  %s1 = inlined_call_operand.hbm [shape: bf16[8,512], index: 1, kind: input, shape index: {}]
  %s2 = inlined_call_operand.hbm [shape: bf16[128,512], index: 2, kind: input, shape index: {}]
  %s3 = inlined_call_operand.vmem [shape: f32[1,512], index: 3, kind: input, shape index: {}]
  %s4 = inlined_call_operand.hbm [shape: bf16[128,256], index: 4, kind: input, shape index: {}]
  %s5 = inlined_call_operand.hbm [shape: bf16[64,256], index: 5, kind: input, shape index: {}]
  %s6 = inlined_call_operand.vmem [shape: f32[1,256], index: 6, kind: input, shape index: {}]
  %s7 = inlined_call_operand.hbm [shape: f32[1,64], index: 7, kind: output, shape index: {}]
  %s8 = sld [smem:[#allocation0]]
  $region58: #{tpu_custom_call.1} parent=0
    _
  %s10 = ssub.s32 1, %s8
  %s11 = scalar_select 0, %s10, %s8
  $region1: #{tpu_custom_call.1} parent=0
    #allocation2 [shape = 'u8[2048]{0}', space=vmem, size = 0x800, scoped, tag = 'input window, operand 0, single buffered']
    #allocation3 [shape = 's32[1]{0}', space=sflag, size = 0x4, scoped, tag = 'scoped memory for tpu_custom_call.1']
    #allocation4 [shape = 's32[1]{0}', space=sflag, size = 0x4, scoped, tag = 'scoped memory for tpu_custom_call.1']
    #allocation5 [shape = 'u8[8192]{0}', space=vmem, size = 0x2000, scoped, tag = 'input window, operand 1, single buffered']
    #allocation6 [shape = 's32[1]{0}', space=sflag, size = 0x4, scoped, tag = 'scoped memory for tpu_custom_call.1']
    #allocation7 [shape = 'u8[131072]{0}', space=vmem, size = 0x20000, scoped, tag = 'input window, operand 2, single buffered']
    #allocation8 [shape = 'u8[65536]{0}', space=vmem, size = 0x10000, scoped, tag = 'input window, operand 4, single buffered']
    #allocation9 [shape = 's32[1]{0}', space=sflag, size = 0x4, scoped, tag = 'scoped memory for tpu_custom_call.1']
    #allocation10 [shape = 'u8[32768]{0}', space=vmem, size = 0x8000, scoped, tag = 'input window, operand 5, single buffered']
    #allocation11 [shape = 'u8[512]{0}', space=vmem, size = 0x400, scoped, tag = 'output window, operand 0, single buffered']
    %12 = vsyncpa [#allocation3], 0
    %13 = vsyncpa [#allocation6], 0
    %14 = vsyncpa [#allocation9], 0
    %15 = vsyncpa [#allocation4], 0
    // Predicated region
    $region2: #{tpu_custom_call.1} parent=1 // pred_check
      _
    $region3: #{tpu_custom_call.1} parent=1 // pred_check_branch
      %17 = sbr.rel (0) target = $region5
    $region4: #{tpu_custom_call.1} parent=1 // pred_region
      %s19 = ssub.s32 64, 64
      %20 = vsyncadd [#allocation3], %s19
      %s22 = sshll.u32 [#allocation2], 4
      %s23 = int_to_ptr.vmem [resolvable:$true] %s22
      %25 = dma.hbm_to_vmem [thread:$0]  %s0, 64, %s23, [#allocation3]
    $region5: #{tpu_custom_call.1} parent=1 // pred_fallthru
      _
    // Predicated region
    $region6: #{tpu_custom_call.1} parent=1 // pred_check
      _
    $region7: #{tpu_custom_call.1} parent=1 // pred_check_branch
      %27 = sbr.rel (0) target = $region9
    $region8: #{tpu_custom_call.1} parent=1 // pred_region
      %s29 = ssub.s32 256, 256
      %30 = vsyncadd [#allocation6], %s29
      %s32 = sshll.u32 [#allocation5], 4
      %s33 = int_to_ptr.vmem [resolvable:$true] %s32
      %35 = dma.hbm_to_vmem [thread:$0]  %s1, 256, %s33, [#allocation6]
    $region9: #{tpu_custom_call.1} parent=1 // pred_fallthru
      _
    // Predicated region
    $region10: #{tpu_custom_call.1} parent=1 // pred_check
      _
    $region11: #{tpu_custom_call.1} parent=1 // pred_check_branch
      %37 = sbr.rel (0) target = $region13
    $region12: #{tpu_custom_call.1} parent=1 // pred_region
      %s39 = ssub.s32 4096, 4096
      %40 = vsyncadd [#allocation6], %s39
      %s41 = sshll.u32 [#allocation7], 4
      %s42 = int_to_ptr.vmem [resolvable:$true] %s41
      %47 = dma.hbm_to_vmem [thread:$0]  %s2, 4096, %s42, [#allocation6], 256, 256, 16
    $region13: #{tpu_custom_call.1} parent=1 // pred_fallthru
      _
    // Predicated region
    $region14: #{tpu_custom_call.1} parent=1 // pred_check
      _
    $region15: #{tpu_custom_call.1} parent=1 // pred_check_branch
      %49 = sbr.rel (0) target = $region17
    $region16: #{tpu_custom_call.1} parent=1 // pred_region
      _
    $region17: #{tpu_custom_call.1} parent=1 // pred_fallthru
      _
    // Predicated region
    $region18: #{tpu_custom_call.1} parent=1 // pred_check
      _
    $region19: #{tpu_custom_call.1} parent=1 // pred_check_branch
      %51 = sbr.rel (0) target = $region21
    $region20: #{tpu_custom_call.1} parent=1 // pred_region
      %s53 = ssub.s32 2048, 2048
      %54 = vsyncadd [#allocation9], %s53
      %s55 = sshll.u32 [#allocation8], 4
      %s56 = int_to_ptr.vmem [resolvable:$true] %s55
      %61 = dma.hbm_to_vmem [thread:$0]  %s4, 2048, %s56, [#allocation9], 128, 128, 8
    $region21: #{tpu_custom_call.1} parent=1 // pred_fallthru
      _
    // Predicated region
    $region22: #{tpu_custom_call.1} parent=1 // pred_check
      _
    $region23: #{tpu_custom_call.1} parent=1 // pred_check_branch
      %63 = sbr.rel (0) target = $region25
    $region24: #{tpu_custom_call.1} parent=1 // pred_region
      %s65 = ssub.s32 1024, 1024
      %66 = vsyncadd [#allocation9], %s65
      %s67 = sshll.u32 [#allocation10], 4
      %s68 = int_to_ptr.vmem [resolvable:$true] %s67
      %73 = dma.hbm_to_vmem [thread:$0]  %s5, 1024, %s68, [#allocation9], 128, 128, 8
    $region25: #{tpu_custom_call.1} parent=1 // pred_fallthru
      _
    // Predicated region
    $region26: #{tpu_custom_call.1} parent=1 // pred_check
      _
    $region27: #{tpu_custom_call.1} parent=1 // pred_check_branch
      %75 = sbr.rel (0) target = $region29
    $region28: #{tpu_custom_call.1} parent=1 // pred_region
      _
    $region29: #{tpu_custom_call.1} parent=1 // pred_fallthru
      _
    // Predicated region
    $region30: #{tpu_custom_call.1} parent=1 // pred_check
      _
    $region31: #{tpu_custom_call.1} parent=1 // pred_check_branch
      %77 = sbr.rel (0) target = $region33
    $region32: #{tpu_custom_call.1} parent=1 // pred_region
      %78 = dma.done [#allocation3], 64
    $region33: #{tpu_custom_call.1} parent=1 // pred_fallthru
      _
    // Predicated region
    $region34: #{tpu_custom_call.1} parent=1 // pred_check
      _
    $region35: #{tpu_custom_call.1} parent=1 // pred_check_branch
      %80 = sbr.rel (0) target = $region37
    $region36: #{tpu_custom_call.1} parent=1 // pred_region
      %81 = dma.done [#allocation6], 256
    $region37: #{tpu_custom_call.1} parent=1 // pred_fallthru
      _
    // Predicated region
    $region38: #{tpu_custom_call.1} parent=1 // pred_check
      _
    $region39: #{tpu_custom_call.1} parent=1 // pred_check_branch
      %83 = sbr.rel (0) target = $region41
    $region40: #{tpu_custom_call.1} parent=1 // pred_region
      %84 = dma.done [#allocation6], 4096
    $region41: #{tpu_custom_call.1} parent=1 // pred_fallthru
      _
    // Predicated region
    $region42: #{tpu_custom_call.1} parent=1 // pred_check
      _
    $region43: #{tpu_custom_call.1} parent=1 // pred_check_branch
      %86 = sbr.rel (0) target = $region45
    $region44: #{tpu_custom_call.1} parent=1 // pred_region
      %87 = dma.done [#allocation9], 2048
    $region45: #{tpu_custom_call.1} parent=1 // pred_fallthru
      _
    // Predicated region
    $region46: #{tpu_custom_call.1} parent=1 // pred_check
      _
    $region47: #{tpu_custom_call.1} parent=1 // pred_check_branch
      %89 = sbr.rel (0) target = $region49
    $region48: #{tpu_custom_call.1} parent=1 // pred_region
      %90 = dma.done [#allocation9], 1024
    $region49: #{tpu_custom_call.1} parent=1 // pred_fallthru
      _
    %v92 = vlaneseq
    %v93 = vand.u32 %v92, 127
    %v94 = vadd.s32 %v93, 128
    %v95 = vadd.s32 %v93, 256
    %v96 = vadd.s32 %v93, 384
    %vm97 = vcmp.lt.s32.totalorder %v93, 384
    %vm98 = vcmp.lt.s32.totalorder %v94, 384
    %vm99 = vcmp.lt.s32.totalorder %v95, 384
    %vm100 = vcmp.lt.s32.totalorder %v96, 384
    %vm101 = vcmp.lt.s32.totalorder %v93, 192
    %vm102 = vcmp.lt.s32.totalorder %v94, 192
    %v103 = vld [vmem:[#allocation2] sm:$0xf]
    %v104 = vld [vmem:[#allocation5] sm:$0xff]
    %v105 = vld [vmem:[#allocation5 + $0x8] sm:$0xff]
    %v106 = vld [vmem:[%s3] sm:$0xf]
    %v108 = vlaneseq
    %v109 = vshrl.u32 %v108, 7
    %v110 = vsub.s32 0, %v109
    %v111 = vrot.slane %v106, %v110
    %v112 = vlaneseq
    %v113 = vshrl.u32 %v112, 7
    %v114 = vsub.s32 1, %v113
    %v115 = vrot.slane %v106, %v114
    %v116 = vlaneseq
    %v117 = vshrl.u32 %v116, 7
    %v118 = vsub.s32 2, %v117
    %v119 = vrot.slane %v106, %v118
    %v120 = vlaneseq
    %v121 = vshrl.u32 %v120, 7
    %v122 = vsub.s32 3, %v121
    %v123 = vrot.slane %v106, %v122
    %v130 = vunpack.c.l.b16 %v104
    %v131 = vunpack.c.h.b16 %v104
    %v132 = vunpack.c.l.b16 %v105
    %v133 = vunpack.c.h.b16 %v105
    %v134 = vpack.c.b16 %v130, %v130
    %v135 = vpack.c.b16 %v131, %v131
    %v136 = vpack.c.b16 %v132, %v132
    %v137 = vpack.c.b16 %v133, %v133
    %vm138 = vcmask 64512
    %v140 = vsel %vm138, %v103, 0
    %vm142 = vcmask 1043456
    %v144 = vsel %vm142, %v134, 0
    %v147 = vsel %vm142, %v135, 0
    %v150 = vsel %vm142, %v136, 0
    %v153 = vsel %vm142, %v137, 0
    %155 = vmatprep.subr.bf16.mxu0 %v147
    %156 = vmatpush1.bf16.msra.mxu0 %v144
    %157 = vmatprep.subr.bf16.mxu0 0
    %158 = vmatpush1.bf16.msra.mxu0 0
    %159 = vmatprep.subr.bf16.mxu0 0
    %160 = vmatpush1.bf16.msra.mxu0 0
    %161 = vmatprep.subr.bf16.mxu0 0
    %162 = vmatpush1.bf16.msra.mxu0 0
    %163 = vmatprep.subr.bf16.mxu0 0
    %164 = vmatpush1.bf16.msra.mxu0 0
    %165 = vmatprep.subr.bf16.mxu0 0
    %166 = vmatpush1.bf16.msra.mxu0 0
    %167 = vmatprep.subr.bf16.mxu0 0
    %168 = vmatpush1.bf16.msra.mxu0 0
    %169 = vmatprep.subr.bf16.mxu0 0
    %170 = vmatpush1.bf16.msra.mxu0 0
    %171 = vmatprep.subr.bf16.mxu0 0
    %172 = vmatpush1.bf16.msra.mxu0 0
    %173 = vmatprep.subr.bf16.mxu0 0
    %174 = vmatpush1.bf16.msra.mxu0 0
    %175 = vmatprep.subr.bf16.mxu0 0
    %176 = vmatpush1.bf16.msra.mxu0 0
    %177 = vmatprep.subr.bf16.mxu0 0
    %178 = vmatpush1.bf16.msra.mxu0 0
    %179 = vmatprep.subr.bf16.mxu0 0
    %180 = vmatpush1.bf16.msra.mxu0 0
    %181 = vmatprep.subr.bf16.mxu0 0
    %182 = vmatpush1.bf16.msra.mxu0 0
    %183 = vmatprep.subr.bf16.mxu0 0
    %184 = vmatpush1.bf16.msra.mxu0 0
    %185 = vmatprep.subr.bf16.mxu0 0
    %186 = vmatpush1.bf16.msra.mxu0 0
    %187 = vmatprep.mubr.bf16.mxu0 0
    %188 = vmatmul.mubr.bf16.gmra.mrb[0].mxu0 %v140
    %v189 = vpop.f32.mrb[0].mxu0
    %v190 = vadd.f32 %v111, %v189
    %v191 = vpop.f32.mrb[0].mxu0
    %v192 = vadd.f32 %v115, %v191
    %v193 = vpop.f32.mrb[0].mxu0
    %v194 = vpop.f32.mrb[0].mxu0
    %195 = vdwg.mxu0
    %196 = vmatprep.subr.bf16.mxu0 %v153
    %197 = vmatpush1.bf16.msra.mxu0 %v150
    %198 = vmatprep.subr.bf16.mxu0 0
    %199 = vmatpush1.bf16.msra.mxu0 0
    %200 = vmatprep.subr.bf16.mxu0 0
    %201 = vmatpush1.bf16.msra.mxu0 0
    %202 = vmatprep.subr.bf16.mxu0 0
    %203 = vmatpush1.bf16.msra.mxu0 0
    %204 = vmatprep.subr.bf16.mxu0 0
    %205 = vmatpush1.bf16.msra.mxu0 0
    %206 = vmatprep.subr.bf16.mxu0 0
    %207 = vmatpush1.bf16.msra.mxu0 0
    %208 = vmatprep.subr.bf16.mxu0 0
    %209 = vmatpush1.bf16.msra.mxu0 0
    %210 = vmatprep.subr.bf16.mxu0 0
    %211 = vmatpush1.bf16.msra.mxu0 0
    %212 = vmatprep.subr.bf16.mxu0 0
    %213 = vmatpush1.bf16.msra.mxu0 0
    %214 = vmatprep.subr.bf16.mxu0 0
    %215 = vmatpush1.bf16.msra.mxu0 0
    %216 = vmatprep.subr.bf16.mxu0 0
    %217 = vmatpush1.bf16.msra.mxu0 0
    %218 = vmatprep.subr.bf16.mxu0 0
    %219 = vmatpush1.bf16.msra.mxu0 0
    %220 = vmatprep.subr.bf16.mxu0 0
    %221 = vmatpush1.bf16.msra.mxu0 0
    %222 = vmatprep.subr.bf16.mxu0 0
    %223 = vmatpush1.bf16.msra.mxu0 0
    %224 = vmatprep.subr.bf16.mxu0 0
    %225 = vmatpush1.bf16.msra.mxu0 0
    %226 = vmatprep.subr.bf16.mxu0 0
    %227 = vmatpush1.bf16.msra.mxu0 0
    %228 = vmatprep.mubr.bf16.mxu0 0
    %229 = vmatmul.mubr.bf16.gmra.mrb[0].mxu0 %v140
    %v230 = vpop.f32.mrb[0].mxu0
    %v231 = vadd.f32 %v119, %v230
    %v232 = vpop.f32.mrb[0].mxu0
    %v233 = vadd.f32 %v123, %v232
    %v234 = vpop.f32.mrb[0].mxu0
    %v235 = vpop.f32.mrb[0].mxu0
    %236 = vdwg.mxu0
    %v237 = vld [vmem:[%s6] sm:$0x3]
    %v238 = vld [vmem:[#allocation7] sm:$0xff]
    %v239 = vld [vmem:[#allocation7 + $0x8] sm:$0xff]
    %v240 = vld [vmem:[#allocation7 + $0x10] sm:$0xff]
    %v241 = vld [vmem:[#allocation7 + $0x18] sm:$0xff]
    %v242 = vld [vmem:[#allocation7 + $0x20] sm:$0xff]
    %v243 = vld [vmem:[#allocation7 + $0x28] sm:$0xff]
    %v244 = vld [vmem:[#allocation7 + $0x30] sm:$0xff]
    %v245 = vld [vmem:[#allocation7 + $0x38] sm:$0xff]
    %v246 = vld [vmem:[#allocation7 + $0x40] sm:$0xff]
    %v247 = vld [vmem:[#allocation7 + $0x48] sm:$0xff]
    %v248 = vld [vmem:[#allocation7 + $0x50] sm:$0xff]
    %v249 = vld [vmem:[#allocation7 + $0x58] sm:$0xff]
    %v250 = vld [vmem:[#allocation7 + $0x60] sm:$0xff]
    %v251 = vld [vmem:[#allocation7 + $0x68] sm:$0xff]
    %v252 = vld [vmem:[#allocation7 + $0x70] sm:$0xff]
    %v253 = vld [vmem:[#allocation7 + $0x78] sm:$0xff]
    %v254 = vld [vmem:[#allocation7 + $0x80] sm:$0xff]
    %v255 = vld [vmem:[#allocation7 + $0x88] sm:$0xff]
    %v256 = vld [vmem:[#allocation7 + $0x90] sm:$0xff]
    %v257 = vld [vmem:[#allocation7 + $0x98] sm:$0xff]
    %v258 = vld [vmem:[#allocation7 + $0xa0] sm:$0xff]
    %v259 = vld [vmem:[#allocation7 + $0xa8] sm:$0xff]
    %v260 = vld [vmem:[#allocation7 + $0xb0] sm:$0xff]
    %v261 = vld [vmem:[#allocation7 + $0xb8] sm:$0xff]
    %v262 = vld [vmem:[#allocation7 + $0xc0] sm:$0xff]
    %v263 = vld [vmem:[#allocation7 + $0xc8] sm:$0xff]
    %v264 = vld [vmem:[#allocation7 + $0xd0] sm:$0xff]
    %v265 = vld [vmem:[#allocation7 + $0xd8] sm:$0xff]
    %v266 = vld [vmem:[#allocation7 + $0xe0] sm:$0xff]
    %v267 = vld [vmem:[#allocation7 + $0xe8] sm:$0xff]
    %v268 = vld [vmem:[#allocation7 + $0xf0] sm:$0xff]
    %v269 = vld [vmem:[#allocation7 + $0xf8] sm:$0xff]
    %v302 = vunpack.c.l.b16 %v238
    %v303 = vunpack.c.h.b16 %v238
    %v304 = vunpack.c.l.b16 %v239
    %v305 = vunpack.c.h.b16 %v239
    %v306 = vunpack.c.l.b16 %v240
    %v307 = vunpack.c.h.b16 %v240
    %v308 = vunpack.c.l.b16 %v241
    %v309 = vunpack.c.h.b16 %v241
    %v310 = vunpack.c.l.b16 %v242
    %v311 = vunpack.c.h.b16 %v242
    %v312 = vunpack.c.l.b16 %v243
    %v313 = vunpack.c.h.b16 %v243
    %v314 = vunpack.c.l.b16 %v244
    %v315 = vunpack.c.h.b16 %v244
    %v316 = vunpack.c.l.b16 %v245
    %v317 = vunpack.c.h.b16 %v245
    %v318 = vunpack.c.l.b16 %v246
    %v319 = vunpack.c.h.b16 %v246
    %v320 = vunpack.c.l.b16 %v247
    %v321 = vunpack.c.h.b16 %v247
    %v322 = vunpack.c.l.b16 %v248
    %v323 = vunpack.c.h.b16 %v248
    %v324 = vunpack.c.l.b16 %v249
    %v325 = vunpack.c.h.b16 %v249
    %v326 = vunpack.c.l.b16 %v250
    %v327 = vunpack.c.h.b16 %v250
    %v328 = vunpack.c.l.b16 %v251
    %v329 = vunpack.c.h.b16 %v251
    %v330 = vunpack.c.l.b16 %v252
    %v331 = vunpack.c.h.b16 %v252
    %v332 = vunpack.c.l.b16 %v253
    %v333 = vunpack.c.h.b16 %v253
    %v334 = vunpack.c.l.b16 %v254
    %v335 = vunpack.c.h.b16 %v254
    %v336 = vunpack.c.l.b16 %v255
    %v337 = vunpack.c.h.b16 %v255
    %v338 = vunpack.c.l.b16 %v256
    %v339 = vunpack.c.h.b16 %v256
    %v340 = vunpack.c.l.b16 %v257
    %v341 = vunpack.c.h.b16 %v257
    %v342 = vunpack.c.l.b16 %v258
    %v343 = vunpack.c.h.b16 %v258
    %v344 = vunpack.c.l.b16 %v259
    %v345 = vunpack.c.h.b16 %v259
    %v346 = vunpack.c.l.b16 %v260
    %v347 = vunpack.c.h.b16 %v260
    %v348 = vunpack.c.l.b16 %v261
    %v349 = vunpack.c.h.b16 %v261
    %v350 = vunpack.c.l.b16 %v262
    %v351 = vunpack.c.h.b16 %v262
    %v352 = vunpack.c.l.b16 %v263
    %v353 = vunpack.c.h.b16 %v263
    %v354 = vunpack.c.l.b16 %v264
    %v355 = vunpack.c.h.b16 %v264
    %v356 = vunpack.c.l.b16 %v265
    %v357 = vunpack.c.h.b16 %v265
    %v358 = vunpack.c.l.b16 %v266
    %v359 = vunpack.c.h.b16 %v266
    %v360 = vunpack.c.l.b16 %v267
    %v361 = vunpack.c.h.b16 %v267
    %v362 = vunpack.c.l.b16 %v268
    %v363 = vunpack.c.h.b16 %v268
    %v364 = vunpack.c.l.b16 %v269
    %v365 = vunpack.c.h.b16 %v269
    %v366 = vpack.c.b16 %v306, %v302
    %v367 = vpack.c.b16 %v307, %v303
    %v368 = vpack.c.b16 %v308, %v304
    %v369 = vpack.c.b16 %v309, %v305
    %v370 = vpack.c.b16 %v314, %v310
    %v371 = vpack.c.b16 %v315, %v311
    %v372 = vpack.c.b16 %v316, %v312
    %v373 = vpack.c.b16 %v317, %v313
    %v374 = vpack.c.b16 %v322, %v318
    %v375 = vpack.c.b16 %v323, %v319
    %v376 = vpack.c.b16 %v324, %v320
    %v377 = vpack.c.b16 %v325, %v321
    %v378 = vpack.c.b16 %v330, %v326
    %v379 = vpack.c.b16 %v331, %v327
    %v380 = vpack.c.b16 %v332, %v328
    %v381 = vpack.c.b16 %v333, %v329
    %v382 = vpack.c.b16 %v338, %v334
    %v383 = vpack.c.b16 %v339, %v335
    %v384 = vpack.c.b16 %v340, %v336
    %v385 = vpack.c.b16 %v341, %v337
    %v386 = vpack.c.b16 %v346, %v342
    %v387 = vpack.c.b16 %v347, %v343
    %v388 = vpack.c.b16 %v348, %v344
    %v389 = vpack.c.b16 %v349, %v345
    %v390 = vpack.c.b16 %v354, %v350
    %v391 = vpack.c.b16 %v355, %v351
    %v392 = vpack.c.b16 %v356, %v352
    %v393 = vpack.c.b16 %v357, %v353
    %v394 = vpack.c.b16 %v362, %v358
    %v395 = vpack.c.b16 %v363, %v359
    %v396 = vpack.c.b16 %v364, %v360
    %v397 = vpack.c.b16 %v365, %v361
    %430 = vmatprep.subr.bf16.mxu0 %v367
    %431 = vmatpush1.bf16.msra.mxu0 %v366
    %432 = vmatprep.subr.bf16.mxu0 %v371
    %433 = vmatpush1.bf16.msra.mxu0 %v370
    %434 = vmatprep.subr.bf16.mxu0 %v375
    %435 = vmatpush1.bf16.msra.mxu0 %v374
    %436 = vmatprep.subr.bf16.mxu0 %v379
    %437 = vmatpush1.bf16.msra.mxu0 %v378
    %438 = vmatprep.subr.bf16.mxu0 %v383
    %439 = vmatpush1.bf16.msra.mxu0 %v382
    %440 = vmatprep.subr.bf16.mxu0 %v387
    %441 = vmatpush1.bf16.msra.mxu0 %v386
    %442 = vmatprep.subr.bf16.mxu0 %v391
    %443 = vmatpush1.bf16.msra.mxu0 %v390
    %444 = vmatprep.subr.bf16.mxu0 %v395
    %445 = vmatpush1.bf16.msra.mxu0 %v394
    %446 = vmatprep.subr.bf16.mxu0 0
    %447 = vmatpush1.bf16.msra.mxu0 0
    %448 = vmatprep.subr.bf16.mxu0 0
    %449 = vmatpush1.bf16.msra.mxu0 0
    %450 = vmatprep.subr.bf16.mxu0 0
    %451 = vmatpush1.bf16.msra.mxu0 0
    %452 = vmatprep.subr.bf16.mxu0 0
    %453 = vmatpush1.bf16.msra.mxu0 0
    %454 = vmatprep.subr.bf16.mxu0 0
    %455 = vmatpush1.bf16.msra.mxu0 0
    %456 = vmatprep.subr.bf16.mxu0 0
    %457 = vmatpush1.bf16.msra.mxu0 0
    %458 = vmatprep.subr.bf16.mxu0 0
    %459 = vmatpush1.bf16.msra.mxu0 0
    %460 = vmatprep.subr.bf16.mxu0 0
    %461 = vmatpush1.bf16.msra.mxu0 0
    %462 = vmatprep.mubr.bf16.mxu0 0
    %463 = vmatmul.mubr.bf16.gmra.mrb[0].mxu0 0
    %v464 = vpop.f32.mrb[0].mxu0
    %v465 = vadd.f32 0.0, %v464
    %v466 = vpop.f32.mrb[0].mxu0
    %v467 = vadd.f32 0.0, %v466
    %v468 = vpop.f32.mrb[0].mxu0
    %v469 = vpop.f32.mrb[0].mxu0
    %470 = vdwg.mxu0
    %471 = vmatprep.subr.bf16.mxu0 %v369
    %472 = vmatpush1.bf16.msra.mxu0 %v368
    %473 = vmatprep.subr.bf16.mxu0 %v373
    %474 = vmatpush1.bf16.msra.mxu0 %v372
    %475 = vmatprep.subr.bf16.mxu0 %v377
    %476 = vmatpush1.bf16.msra.mxu0 %v376
    %477 = vmatprep.subr.bf16.mxu0 %v381
    %478 = vmatpush1.bf16.msra.mxu0 %v380
    %479 = vmatprep.subr.bf16.mxu0 %v385
    %480 = vmatpush1.bf16.msra.mxu0 %v384
    %481 = vmatprep.subr.bf16.mxu0 %v389
    %482 = vmatpush1.bf16.msra.mxu0 %v388
    %483 = vmatprep.subr.bf16.mxu0 %v393
    %484 = vmatpush1.bf16.msra.mxu0 %v392
    %485 = vmatprep.subr.bf16.mxu0 %v397
    %486 = vmatpush1.bf16.msra.mxu0 %v396
    %487 = vmatprep.subr.bf16.mxu0 0
    %488 = vmatpush1.bf16.msra.mxu0 0
    %489 = vmatprep.subr.bf16.mxu0 0
    %490 = vmatpush1.bf16.msra.mxu0 0
    %491 = vmatprep.subr.bf16.mxu0 0
    %492 = vmatpush1.bf16.msra.mxu0 0
    %493 = vmatprep.subr.bf16.mxu0 0
    %494 = vmatpush1.bf16.msra.mxu0 0
    %495 = vmatprep.subr.bf16.mxu0 0
    %496 = vmatpush1.bf16.msra.mxu0 0
    %497 = vmatprep.subr.bf16.mxu0 0
    %498 = vmatpush1.bf16.msra.mxu0 0
    %499 = vmatprep.subr.bf16.mxu0 0
    %500 = vmatpush1.bf16.msra.mxu0 0
    %501 = vmatprep.subr.bf16.mxu0 0
    %502 = vmatpush1.bf16.msra.mxu0 0
    %503 = vmatprep.mubr.bf16.mxu0 0
    %504 = vmatmul.mubr.bf16.gmra.mrb[0].mxu0 0
    %v505 = vpop.f32.mrb[0].mxu0
    %v506 = vadd.f32 0.0, %v505
    %v507 = vpop.f32.mrb[0].mxu0
    %v508 = vadd.f32 0.0, %v507
    %v509 = vpop.f32.mrb[0].mxu0
    %v510 = vpop.f32.mrb[0].mxu0
    %511 = vdwg.mxu0
    %v512 = vadd.f32 %v190, %v465
    %v513 = vadd.f32 %v192, %v467
    %v514 = vadd.f32 %v231, %v506
    %v515 = vadd.f32 %v233, %v508
    %v516 = vmul.f32 %v512, 0.5
    %v517 = vmul.f32 %v513, 0.5
    %v518 = vmul.f32 %v514, 0.5
    %v519 = vmul.f32 %v515, 0.5
    %v520 = vsel %vm97, %v516, %v512
    %v521 = vsel %vm98, %v517, %v513
    %v522 = vsel %vm99, %v518, %v514
    %v523 = vsel %vm100, %v519, %v515
    %v524 = vtanh.pop %v520
    %v525 = vtanh.pop %v521
    %v526 = vtanh.pop %v522
    %v527 = vtanh.pop %v523
    %v528 = vmul.f32 %v524, 0.5
    %v529 = vmul.f32 %v525, 0.5
    %v530 = vmul.f32 %v526, 0.5
    %v531 = vmul.f32 %v527, 0.5
    %v532 = vadd.f32 %v528, 0.5
    %v533 = vadd.f32 %v529, 0.5
    %v534 = vadd.f32 %v530, 0.5
    %v535 = vadd.f32 %v531, 0.5
    %v536 = vsel %vm97, %v532, %v524
    %v537 = vsel %vm98, %v533, %v525
    %v538 = vsel %vm99, %v534, %v526
    %v539 = vsel %vm100, %v535, %v527
    %v540 = vmul.f32 %v537, 0.0
    %v541 = vmul.f32 %v536, %v539
    %v542 = vadd.f32 %v540, %v541
    %v543 = vtanh.pop %v542
    %v544 = vmul.f32 %v538, %v543
    %v545 = vld [vmem:[#allocation8] sm:$0xff]
    %v546 = vld [vmem:[#allocation8 + $0x8] sm:$0xff]
    %v547 = vld [vmem:[#allocation8 + $0x10] sm:$0xff]
    %v548 = vld [vmem:[#allocation8 + $0x18] sm:$0xff]
    %v549 = vld [vmem:[#allocation8 + $0x20] sm:$0xff]
    %v550 = vld [vmem:[#allocation8 + $0x28] sm:$0xff]
    %v551 = vld [vmem:[#allocation8 + $0x30] sm:$0xff]
    %v552 = vld [vmem:[#allocation8 + $0x38] sm:$0xff]
    %v553 = vld [vmem:[#allocation8 + $0x40] sm:$0xff]
    %v554 = vld [vmem:[#allocation8 + $0x48] sm:$0xff]
    %v555 = vld [vmem:[#allocation8 + $0x50] sm:$0xff]
    %v556 = vld [vmem:[#allocation8 + $0x58] sm:$0xff]
    %v557 = vld [vmem:[#allocation8 + $0x60] sm:$0xff]
    %v558 = vld [vmem:[#allocation8 + $0x68] sm:$0xff]
    %v559 = vld [vmem:[#allocation8 + $0x70] sm:$0xff]
    %v560 = vld [vmem:[#allocation8 + $0x78] sm:$0xff]
    %v561 = vpack.c.bf16 %v544, %v544
    %v562 = vld [vmem:[#allocation10] sm:$0xff]
    %v563 = vld [vmem:[#allocation10 + $0x8] sm:$0xff]
    %v564 = vld [vmem:[#allocation10 + $0x10] sm:$0xff]
    %v565 = vld [vmem:[#allocation10 + $0x18] sm:$0xff]
    %v566 = vld [vmem:[#allocation10 + $0x20] sm:$0xff]
    %v567 = vld [vmem:[#allocation10 + $0x28] sm:$0xff]
    %v568 = vld [vmem:[#allocation10 + $0x30] sm:$0xff]
    %v569 = vld [vmem:[#allocation10 + $0x38] sm:$0xff]
    %v578 = vunpack.c.l.b16 %v562
    %v579 = vunpack.c.h.b16 %v562
    %v580 = vunpack.c.l.b16 %v563
    %v581 = vunpack.c.h.b16 %v563
    %v582 = vunpack.c.l.b16 %v564
    %v583 = vunpack.c.h.b16 %v564
    %v584 = vunpack.c.l.b16 %v565
    %v585 = vunpack.c.h.b16 %v565
    %v586 = vunpack.c.l.b16 %v566
    %v587 = vunpack.c.h.b16 %v566
    %v588 = vunpack.c.l.b16 %v567
    %v589 = vunpack.c.h.b16 %v567
    %v590 = vunpack.c.l.b16 %v568
    %v591 = vunpack.c.h.b16 %v568
    %v592 = vunpack.c.l.b16 %v569
    %v593 = vunpack.c.h.b16 %v569
    %v594 = vpack.c.b16 %v580, %v578
    %v595 = vpack.c.b16 %v581, %v579
    %v596 = vpack.c.b16 %v584, %v582
    %v597 = vpack.c.b16 %v585, %v583
    %v598 = vpack.c.b16 %v588, %v586
    %v599 = vpack.c.b16 %v589, %v587
    %v600 = vpack.c.b16 %v592, %v590
    %v601 = vpack.c.b16 %v593, %v591
    %vm610 = vcmask 523264
    %v612 = vsel %vm610, 0, 0
    %614 = vmatprep.subr.bf16.mxu0 %v595
    %615 = vmatpush1.bf16.msra.mxu0 %v594
    %616 = vmatprep.subr.bf16.mxu0 %v597
    %617 = vmatpush1.bf16.msra.mxu0 %v596
    %618 = vmatprep.subr.bf16.mxu0 %v599
    %619 = vmatpush1.bf16.msra.mxu0 %v598
    %620 = vmatprep.subr.bf16.mxu0 %v601
    %621 = vmatpush1.bf16.msra.mxu0 %v600
    %622 = vmatprep.subr.bf16.mxu0 0
    %623 = vmatpush1.bf16.msra.mxu0 0
    %624 = vmatprep.subr.bf16.mxu0 0
    %625 = vmatpush1.bf16.msra.mxu0 0
    %626 = vmatprep.subr.bf16.mxu0 0
    %627 = vmatpush1.bf16.msra.mxu0 0
    %628 = vmatprep.subr.bf16.mxu0 0
    %629 = vmatpush1.bf16.msra.mxu0 0
    %630 = vmatprep.subr.bf16.mxu0 0
    %631 = vmatpush1.bf16.msra.mxu0 0
    %632 = vmatprep.subr.bf16.mxu0 0
    %633 = vmatpush1.bf16.msra.mxu0 0
    %634 = vmatprep.subr.bf16.mxu0 0
    %635 = vmatpush1.bf16.msra.mxu0 0
    %636 = vmatprep.subr.bf16.mxu0 0
    %637 = vmatpush1.bf16.msra.mxu0 0
    %638 = vmatprep.subr.bf16.mxu0 0
    %639 = vmatpush1.bf16.msra.mxu0 0
    %640 = vmatprep.subr.bf16.mxu0 0
    %641 = vmatpush1.bf16.msra.mxu0 0
    %642 = vmatprep.subr.bf16.mxu0 0
    %643 = vmatpush1.bf16.msra.mxu0 0
    %644 = vmatprep.subr.bf16.mxu0 0
    %645 = vmatpush1.bf16.msra.mxu0 0
    %646 = vmatprep.mubr.bf16.mxu0 0
    %647 = vmatmul.mubr.bf16.gmra.mrb[0].mxu0 %v612
    %v648 = vpop.f32.mrb[0].mxu0
    %v649 = vadd.f32 0.0, %v648
    %v650 = vpop.f32.mrb[0].mxu0
    %v651 = vadd.f32 0.0, %v650
    %v652 = vpop.f32.mrb[0].mxu0
    %v653 = vpop.f32.mrb[0].mxu0
    %654 = vdwg.mxu0
    %v671 = vunpack.c.l.b16 %v545
    %v672 = vunpack.c.h.b16 %v545
    %v673 = vunpack.c.l.b16 %v546
    %v674 = vunpack.c.h.b16 %v546
    %v675 = vunpack.c.l.b16 %v547
    %v676 = vunpack.c.h.b16 %v547
    %v677 = vunpack.c.l.b16 %v548
    %v678 = vunpack.c.h.b16 %v548
    %v679 = vunpack.c.l.b16 %v549
    %v680 = vunpack.c.h.b16 %v549
    %v681 = vunpack.c.l.b16 %v550
    %v682 = vunpack.c.h.b16 %v550
    %v683 = vunpack.c.l.b16 %v551
    %v684 = vunpack.c.h.b16 %v551
    %v685 = vunpack.c.l.b16 %v552
    %v686 = vunpack.c.h.b16 %v552
    %v687 = vunpack.c.l.b16 %v553
    %v688 = vunpack.c.h.b16 %v553
    %v689 = vunpack.c.l.b16 %v554
    %v690 = vunpack.c.h.b16 %v554
    %v691 = vunpack.c.l.b16 %v555
    %v692 = vunpack.c.h.b16 %v555
    %v693 = vunpack.c.l.b16 %v556
    %v694 = vunpack.c.h.b16 %v556
    %v695 = vunpack.c.l.b16 %v557
    %v696 = vunpack.c.h.b16 %v557
    %v697 = vunpack.c.l.b16 %v558
    %v698 = vunpack.c.h.b16 %v558
    %v699 = vunpack.c.l.b16 %v559
    %v700 = vunpack.c.h.b16 %v559
    %v701 = vunpack.c.l.b16 %v560
    %v702 = vunpack.c.h.b16 %v560
    %v703 = vpack.c.b16 %v673, %v671
    %v704 = vpack.c.b16 %v674, %v672
    %v705 = vpack.c.b16 %v677, %v675
    %v706 = vpack.c.b16 %v678, %v676
    %v707 = vpack.c.b16 %v681, %v679
    %v708 = vpack.c.b16 %v682, %v680
    %v709 = vpack.c.b16 %v685, %v683
    %v710 = vpack.c.b16 %v686, %v684
    %v711 = vpack.c.b16 %v689, %v687
    %v712 = vpack.c.b16 %v690, %v688
    %v713 = vpack.c.b16 %v693, %v691
    %v714 = vpack.c.b16 %v694, %v692
    %v715 = vpack.c.b16 %v697, %v695
    %v716 = vpack.c.b16 %v698, %v696
    %v717 = vpack.c.b16 %v701, %v699
    %v718 = vpack.c.b16 %v702, %v700
    %735 = vmatprep.subr.bf16.mxu0 %v704
    %736 = vmatpush1.bf16.msra.mxu0 %v703
    %737 = vmatprep.subr.bf16.mxu0 %v706
    %738 = vmatpush1.bf16.msra.mxu0 %v705
    %739 = vmatprep.subr.bf16.mxu0 %v708
    %740 = vmatpush1.bf16.msra.mxu0 %v707
    %741 = vmatprep.subr.bf16.mxu0 %v710
    %742 = vmatpush1.bf16.msra.mxu0 %v709
    %743 = vmatprep.subr.bf16.mxu0 %v712
    %744 = vmatpush1.bf16.msra.mxu0 %v711
    %745 = vmatprep.subr.bf16.mxu0 %v714
    %746 = vmatpush1.bf16.msra.mxu0 %v713
    %747 = vmatprep.subr.bf16.mxu0 %v716
    %748 = vmatpush1.bf16.msra.mxu0 %v715
    %749 = vmatprep.subr.bf16.mxu0 %v718
    %750 = vmatpush1.bf16.msra.mxu0 %v717
    %751 = vmatprep.subr.bf16.mxu0 0
    %752 = vmatpush1.bf16.msra.mxu0 0
    %753 = vmatprep.subr.bf16.mxu0 0
    %754 = vmatpush1.bf16.msra.mxu0 0
    %755 = vmatprep.subr.bf16.mxu0 0
    %756 = vmatpush1.bf16.msra.mxu0 0
    %757 = vmatprep.subr.bf16.mxu0 0
    %758 = vmatpush1.bf16.msra.mxu0 0
    %759 = vmatprep.subr.bf16.mxu0 0
    %760 = vmatpush1.bf16.msra.mxu0 0
    %761 = vmatprep.subr.bf16.mxu0 0
    %762 = vmatpush1.bf16.msra.mxu0 0
    %763 = vmatprep.subr.bf16.mxu0 0
    %764 = vmatpush1.bf16.msra.mxu0 0
    %765 = vmatprep.subr.bf16.mxu0 0
    %766 = vmatpush1.bf16.msra.mxu0 0
    %767 = vmatprep.mubr.bf16.mxu0 0
    %768 = vmatmul.mubr.bf16.gmra.mrb[0].mxu0 %v561
    %v769 = vpop.f32.mrb[0].mxu0
    %v770 = vadd.f32 %v649, %v769
    %v771 = vpop.f32.mrb[0].mxu0
    %v772 = vadd.f32 %v651, %v771
    %v773 = vpop.f32.mrb[0].mxu0
    %v774 = vpop.f32.mrb[0].mxu0
    %775 = vdwg.mxu0
    %v777 = vlaneseq
    %v778 = vshrl.u32 %v777, 7
    %v779 = vsub.s32 0, %v778
    %v780 = vrot.slane %v237, %v779
    %v781 = vlaneseq
    %v782 = vshrl.u32 %v781, 7
    %v783 = vsub.s32 1, %v782
    %v784 = vrot.slane %v237, %v783
    %v787 = vadd.f32 %v770, %v780
    %v788 = vadd.f32 %v772, %v784
    %v789 = vmul.f32 %v787, 0.5
    %v790 = vmul.f32 %v788, 0.5
    %v791 = vsel %vm101, %v789, %v787
    %v792 = vsel %vm102, %v790, %v788
    %v793 = vtanh.pop %v791
    %v794 = vtanh.pop %v792
    %v795 = vmul.f32 %v793, 0.5
    %v796 = vmul.f32 %v794, 0.5
    %v797 = vadd.f32 %v795, 0.5
    %v798 = vadd.f32 %v796, 0.5
    %v799 = vsel %vm101, %v797, %v793
    %v800 = vsel %vm102, %v798, %v794
    %v801 = vmul.f32 %v799, 0.0
    %803 = vrot.lane.b32.xlu0 %v800, 64
    %v804 = vpop.permute.xlu0 %803
    %v806 = vmul.f32 %v799, %v804
    %808 = vrot.lane.b32.xlu0 %v806, 64
    %v809 = vpop.permute.xlu0 %808
    %v811 = vadd.f32 %v801, %v809
    %v812 = vtanh.pop %v811
    %814 = vrot.lane.b32.xlu0 %v812, 64
    %v815 = vpop.permute.xlu0 %814
    %v817 = vmul.f32 %v800, %v815
    %818 = vmatprep.subr.bf16.mxu0 %v367
    %819 = vmatpush1.bf16.msra.mxu0 %v366
    %820 = vmatprep.subr.bf16.mxu0 %v371
    %821 = vmatpush1.bf16.msra.mxu0 %v370
    %822 = vmatprep.subr.bf16.mxu0 %v375
    %823 = vmatpush1.bf16.msra.mxu0 %v374
    %824 = vmatprep.subr.bf16.mxu0 %v379
    %825 = vmatpush1.bf16.msra.mxu0 %v378
    %826 = vmatprep.subr.bf16.mxu0 %v383
    %827 = vmatpush1.bf16.msra.mxu0 %v382
    %828 = vmatprep.subr.bf16.mxu0 %v387
    %829 = vmatpush1.bf16.msra.mxu0 %v386
    %830 = vmatprep.subr.bf16.mxu0 %v391
    %831 = vmatpush1.bf16.msra.mxu0 %v390
    %832 = vmatprep.subr.bf16.mxu0 %v395
    %833 = vmatpush1.bf16.msra.mxu0 %v394
    %834 = vmatprep.subr.bf16.mxu0 0
    %835 = vmatpush1.bf16.msra.mxu0 0
    %836 = vmatprep.subr.bf16.mxu0 0
    %837 = vmatpush1.bf16.msra.mxu0 0
    %838 = vmatprep.subr.bf16.mxu0 0
    %839 = vmatpush1.bf16.msra.mxu0 0
    %840 = vmatprep.subr.bf16.mxu0 0
    %841 = vmatpush1.bf16.msra.mxu0 0
    %842 = vmatprep.subr.bf16.mxu0 0
    %843 = vmatpush1.bf16.msra.mxu0 0
    %844 = vmatprep.subr.bf16.mxu0 0
    %845 = vmatpush1.bf16.msra.mxu0 0
    %846 = vmatprep.subr.bf16.mxu0 0
    %847 = vmatpush1.bf16.msra.mxu0 0
    %848 = vmatprep.subr.bf16.mxu0 0
    %849 = vmatpush1.bf16.msra.mxu0 0
    %850 = vmatprep.mubr.bf16.mxu0 0
    %851 = vmatmul.mubr.bf16.gmra.mrb[0].mxu0 %v561
    %v852 = vpop.f32.mrb[0].mxu0
    %v853 = vadd.f32 0.0, %v852
    %v854 = vpop.f32.mrb[0].mxu0
    %v855 = vadd.f32 0.0, %v854
    %v856 = vpop.f32.mrb[0].mxu0
    %v857 = vpop.f32.mrb[0].mxu0
    %858 = vdwg.mxu0
    %859 = vmatprep.subr.bf16.mxu0 %v369
    %860 = vmatpush1.bf16.msra.mxu0 %v368
    %861 = vmatprep.subr.bf16.mxu0 %v373
    %862 = vmatpush1.bf16.msra.mxu0 %v372
    %863 = vmatprep.subr.bf16.mxu0 %v377
    %864 = vmatpush1.bf16.msra.mxu0 %v376
    %865 = vmatprep.subr.bf16.mxu0 %v381
    %866 = vmatpush1.bf16.msra.mxu0 %v380
    %867 = vmatprep.subr.bf16.mxu0 %v385
    %868 = vmatpush1.bf16.msra.mxu0 %v384
    %869 = vmatprep.subr.bf16.mxu0 %v389
    %870 = vmatpush1.bf16.msra.mxu0 %v388
    %871 = vmatprep.subr.bf16.mxu0 %v393
    %872 = vmatpush1.bf16.msra.mxu0 %v392
    %873 = vmatprep.subr.bf16.mxu0 %v397
    %874 = vmatpush1.bf16.msra.mxu0 %v396
    %875 = vmatprep.subr.bf16.mxu0 0
    %876 = vmatpush1.bf16.msra.mxu0 0
    %877 = vmatprep.subr.bf16.mxu0 0
    %878 = vmatpush1.bf16.msra.mxu0 0
    %879 = vmatprep.subr.bf16.mxu0 0
    %880 = vmatpush1.bf16.msra.mxu0 0
    %881 = vmatprep.subr.bf16.mxu0 0
    %882 = vmatpush1.bf16.msra.mxu0 0
    %883 = vmatprep.subr.bf16.mxu0 0
    %884 = vmatpush1.bf16.msra.mxu0 0
    %885 = vmatprep.subr.bf16.mxu0 0
    %886 = vmatpush1.bf16.msra.mxu0 0
    %887 = vmatprep.subr.bf16.mxu0 0
    %888 = vmatpush1.bf16.msra.mxu0 0
    %889 = vmatprep.subr.bf16.mxu0 0
    %890 = vmatpush1.bf16.msra.mxu0 0
    %891 = vmatprep.mubr.bf16.mxu0 0
    %892 = vmatmul.mubr.bf16.gmra.mrb[0].mxu0 %v561
    %v893 = vpop.f32.mrb[0].mxu0
    %v894 = vadd.f32 0.0, %v893
    %v895 = vpop.f32.mrb[0].mxu0
    %v896 = vadd.f32 0.0, %v895
    %v897 = vpop.f32.mrb[0].mxu0
    %v898 = vpop.f32.mrb[0].mxu0
    %899 = vdwg.mxu0
    %v904 = vrot.slane %v853, 7
    %v905 = vrot.slane %v855, 7
    %v906 = vrot.slane %v894, 7
    %v907 = vrot.slane %v896, 7
    %v912 = vadd.f32 %v190, %v904
    %v913 = vadd.f32 %v192, %v905
    %v914 = vadd.f32 %v231, %v906
    %v915 = vadd.f32 %v233, %v907
    %v916 = vmul.f32 %v912, 0.5
    %v917 = vmul.f32 %v913, 0.5
    %v918 = vmul.f32 %v914, 0.5
    %v919 = vmul.f32 %v915, 0.5
    %v920 = vsel %vm97, %v916, %v912
    %v921 = vsel %vm98, %v917, %v913
    %v922 = vsel %vm99, %v918, %v914
    %v923 = vsel %vm100, %v919, %v915
    %v924 = vtanh.pop %v920
    %v925 = vtanh.pop %v921
    %v926 = vtanh.pop %v922
    %v927 = vtanh.pop %v923
    %v928 = vmul.f32 %v924, 0.5
    %v929 = vmul.f32 %v925, 0.5
    %v930 = vmul.f32 %v926, 0.5
    %v931 = vmul.f32 %v927, 0.5
    %v932 = vadd.f32 %v928, 0.5
    %v933 = vadd.f32 %v929, 0.5
    %v934 = vadd.f32 %v930, 0.5
    %v935 = vadd.f32 %v931, 0.5
    %v936 = vsel %vm97, %v932, %v924
    %v937 = vsel %vm98, %v933, %v925
    %v938 = vsel %vm99, %v934, %v926
    %v939 = vsel %vm100, %v935, %v927
    %v941 = vrot.slane %v542, 7
    %v943 = vmul.f32 %v937, %v941
    %v944 = vmul.f32 %v936, %v939
    %v945 = vadd.f32 %v943, %v944
    %v946 = vtanh.pop %v945
    %v947 = vmul.f32 %v938, %v946
    %v948 = vpack.c.bf16 %v947, %v947
    %v949 = vpack.c.bf16 %v817, %v817
    %v951 = vsel %vm610, %v949, 0
    %953 = vmatprep.subr.bf16.mxu0 %v595
    %954 = vmatpush1.bf16.msra.mxu0 %v594
    %955 = vmatprep.subr.bf16.mxu0 %v597
    %956 = vmatpush1.bf16.msra.mxu0 %v596
    %957 = vmatprep.subr.bf16.mxu0 %v599
    %958 = vmatpush1.bf16.msra.mxu0 %v598
    %959 = vmatprep.subr.bf16.mxu0 %v601
    %960 = vmatpush1.bf16.msra.mxu0 %v600
    %961 = vmatprep.subr.bf16.mxu0 0
    %962 = vmatpush1.bf16.msra.mxu0 0
    %963 = vmatprep.subr.bf16.mxu0 0
    %964 = vmatpush1.bf16.msra.mxu0 0
    %965 = vmatprep.subr.bf16.mxu0 0
    %966 = vmatpush1.bf16.msra.mxu0 0
    %967 = vmatprep.subr.bf16.mxu0 0
    %968 = vmatpush1.bf16.msra.mxu0 0
    %969 = vmatprep.subr.bf16.mxu0 0
    %970 = vmatpush1.bf16.msra.mxu0 0
    %971 = vmatprep.subr.bf16.mxu0 0
    %972 = vmatpush1.bf16.msra.mxu0 0
    %973 = vmatprep.subr.bf16.mxu0 0
    %974 = vmatpush1.bf16.msra.mxu0 0
    %975 = vmatprep.subr.bf16.mxu0 0
    %976 = vmatpush1.bf16.msra.mxu0 0
    %977 = vmatprep.subr.bf16.mxu0 0
    %978 = vmatpush1.bf16.msra.mxu0 0
    %979 = vmatprep.subr.bf16.mxu0 0
    %980 = vmatpush1.bf16.msra.mxu0 0
    %981 = vmatprep.subr.bf16.mxu0 0
    %982 = vmatpush1.bf16.msra.mxu0 0
    %983 = vmatprep.subr.bf16.mxu0 0
    %984 = vmatpush1.bf16.msra.mxu0 0
    %985 = vmatprep.mubr.bf16.mxu0 0
    %986 = vmatmul.mubr.bf16.gmra.mrb[0].mxu0 %v951
    %v987 = vpop.f32.mrb[0].mxu0
    %v988 = vadd.f32 0.0, %v987
    %v989 = vpop.f32.mrb[0].mxu0
    %v990 = vadd.f32 0.0, %v989
    %v991 = vpop.f32.mrb[0].mxu0
    %v992 = vpop.f32.mrb[0].mxu0
    %993 = vdwg.mxu0
    %v995 = vshrl.u32 %v948, 16
    %998 = vmatprep.subr.bf16.mxu0 %v704
    %999 = vmatpush1.bf16.msra.mxu0 %v703
    %1000 = vmatprep.subr.bf16.mxu0 %v706
    %1001 = vmatpush1.bf16.msra.mxu0 %v705
    %1002 = vmatprep.subr.bf16.mxu0 %v708
    %1003 = vmatpush1.bf16.msra.mxu0 %v707
    %1004 = vmatprep.subr.bf16.mxu0 %v710
    %1005 = vmatpush1.bf16.msra.mxu0 %v709
    %1006 = vmatprep.subr.bf16.mxu0 %v712
    %1007 = vmatpush1.bf16.msra.mxu0 %v711
    %1008 = vmatprep.subr.bf16.mxu0 %v714
    %1009 = vmatpush1.bf16.msra.mxu0 %v713
    %1010 = vmatprep.subr.bf16.mxu0 %v716
    %1011 = vmatpush1.bf16.msra.mxu0 %v715
    %1012 = vmatprep.subr.bf16.mxu0 %v718
    %1013 = vmatpush1.bf16.msra.mxu0 %v717
    %1014 = vmatprep.subr.bf16.mxu0 0
    %1015 = vmatpush1.bf16.msra.mxu0 0
    %1016 = vmatprep.subr.bf16.mxu0 0
    %1017 = vmatpush1.bf16.msra.mxu0 0
    %1018 = vmatprep.subr.bf16.mxu0 0
    %1019 = vmatpush1.bf16.msra.mxu0 0
    %1020 = vmatprep.subr.bf16.mxu0 0
    %1021 = vmatpush1.bf16.msra.mxu0 0
    %1022 = vmatprep.subr.bf16.mxu0 0
    %1023 = vmatpush1.bf16.msra.mxu0 0
    %1024 = vmatprep.subr.bf16.mxu0 0
    %1025 = vmatpush1.bf16.msra.mxu0 0
    %1026 = vmatprep.subr.bf16.mxu0 0
    %1027 = vmatpush1.bf16.msra.mxu0 0
    %1028 = vmatprep.subr.bf16.mxu0 0
    %1029 = vmatpush1.bf16.msra.mxu0 0
    %1030 = vmatprep.mubr.bf16.mxu0 0
    %1031 = vmatmul.mubr.bf16.gmra.mrb[0].mxu0 %v995
    %v1032 = vpop.f32.mrb[0].mxu0
    %v1033 = vadd.f32 %v988, %v1032
    %v1034 = vpop.f32.mrb[0].mxu0
    %v1035 = vadd.f32 %v990, %v1034
    %v1036 = vpop.f32.mrb[0].mxu0
    %v1037 = vpop.f32.mrb[0].mxu0
    %1038 = vdwg.mxu0
    %v1039 = vadd.f32 %v1033, %v780
    %v1040 = vadd.f32 %v1035, %v784
    %v1041 = vmul.f32 %v1039, 0.5
    %v1042 = vmul.f32 %v1040, 0.5
    %v1043 = vsel %vm101, %v1041, %v1039
    %v1044 = vsel %vm102, %v1042, %v1040
    %v1045 = vtanh.pop %v1043
    %v1046 = vtanh.pop %v1044
    %v1047 = vmul.f32 %v1045, 0.5
    %v1048 = vmul.f32 %v1046, 0.5
    %v1049 = vadd.f32 %v1047, 0.5
    %v1050 = vadd.f32 %v1048, 0.5
    %v1051 = vsel %vm101, %v1049, %v1045
    %v1052 = vsel %vm102, %v1050, %v1046
    %v1053 = vmul.f32 %v1051, %v811
    %1055 = vrot.lane.b32.xlu0 %v1052, 64
    %v1056 = vpop.permute.xlu0 %1055
    %v1058 = vmul.f32 %v1051, %v1056
    %1060 = vrot.lane.b32.xlu0 %v1058, 64
    %v1061 = vpop.permute.xlu0 %1060
    %v1063 = vadd.f32 %v1053, %v1061
    %v1064 = vtanh.pop %v1063
    %1066 = vrot.lane.b32.xlu0 %v1064, 64
    %v1067 = vpop.permute.xlu0 %1066
    %v1069 = vmul.f32 %v1052, %v1067
    %1070 = vmatprep.subr.bf16.mxu0 %v367
    %1071 = vmatpush1.bf16.msra.mxu0 %v366
    %1072 = vmatprep.subr.bf16.mxu0 %v371
    %1073 = vmatpush1.bf16.msra.mxu0 %v370
    %1074 = vmatprep.subr.bf16.mxu0 %v375
    %1075 = vmatpush1.bf16.msra.mxu0 %v374
    %1076 = vmatprep.subr.bf16.mxu0 %v379
    %1077 = vmatpush1.bf16.msra.mxu0 %v378
    %1078 = vmatprep.subr.bf16.mxu0 %v383
    %1079 = vmatpush1.bf16.msra.mxu0 %v382
    %1080 = vmatprep.subr.bf16.mxu0 %v387
    %1081 = vmatpush1.bf16.msra.mxu0 %v386
    %1082 = vmatprep.subr.bf16.mxu0 %v391
    %1083 = vmatpush1.bf16.msra.mxu0 %v390
    %1084 = vmatprep.subr.bf16.mxu0 %v395
    %1085 = vmatpush1.bf16.msra.mxu0 %v394
    %1086 = vmatprep.subr.bf16.mxu0 0
    %1087 = vmatpush1.bf16.msra.mxu0 0
    %1088 = vmatprep.subr.bf16.mxu0 0
    %1089 = vmatpush1.bf16.msra.mxu0 0
    %1090 = vmatprep.subr.bf16.mxu0 0
    %1091 = vmatpush1.bf16.msra.mxu0 0
    %1092 = vmatprep.subr.bf16.mxu0 0
    %1093 = vmatpush1.bf16.msra.mxu0 0
    %1094 = vmatprep.subr.bf16.mxu0 0
    %1095 = vmatpush1.bf16.msra.mxu0 0
    %1096 = vmatprep.subr.bf16.mxu0 0
    %1097 = vmatpush1.bf16.msra.mxu0 0
    %1098 = vmatprep.subr.bf16.mxu0 0
    %1099 = vmatpush1.bf16.msra.mxu0 0
    %1100 = vmatprep.subr.bf16.mxu0 0
    %1101 = vmatpush1.bf16.msra.mxu0 0
    %1102 = vmatprep.mubr.bf16.mxu0 0
    %1103 = vmatmul.mubr.bf16.gmra.mrb[0].mxu0 %v995
    %v1104 = vpop.f32.mrb[0].mxu0
    %v1105 = vadd.f32 0.0, %v1104
    %v1106 = vpop.f32.mrb[0].mxu0
    %v1107 = vadd.f32 0.0, %v1106
    %v1108 = vpop.f32.mrb[0].mxu0
    %v1109 = vpop.f32.mrb[0].mxu0
    %1110 = vdwg.mxu0
    %1111 = vmatprep.subr.bf16.mxu0 %v369
    %1112 = vmatpush1.bf16.msra.mxu0 %v368
    %1113 = vmatprep.subr.bf16.mxu0 %v373
    %1114 = vmatpush1.bf16.msra.mxu0 %v372
    %1115 = vmatprep.subr.bf16.mxu0 %v377
    %1116 = vmatpush1.bf16.msra.mxu0 %v376
    %1117 = vmatprep.subr.bf16.mxu0 %v381
    %1118 = vmatpush1.bf16.msra.mxu0 %v380
    %1119 = vmatprep.subr.bf16.mxu0 %v385
    %1120 = vmatpush1.bf16.msra.mxu0 %v384
    %1121 = vmatprep.subr.bf16.mxu0 %v389
    %1122 = vmatpush1.bf16.msra.mxu0 %v388
    %1123 = vmatprep.subr.bf16.mxu0 %v393
    %1124 = vmatpush1.bf16.msra.mxu0 %v392
    %1125 = vmatprep.subr.bf16.mxu0 %v397
    %1126 = vmatpush1.bf16.msra.mxu0 %v396
    %1127 = vmatprep.subr.bf16.mxu0 0
    %1128 = vmatpush1.bf16.msra.mxu0 0
    %1129 = vmatprep.subr.bf16.mxu0 0
    %1130 = vmatpush1.bf16.msra.mxu0 0
    %1131 = vmatprep.subr.bf16.mxu0 0
    %1132 = vmatpush1.bf16.msra.mxu0 0
    %1133 = vmatprep.subr.bf16.mxu0 0
    %1134 = vmatpush1.bf16.msra.mxu0 0
    %1135 = vmatprep.subr.bf16.mxu0 0
    %1136 = vmatpush1.bf16.msra.mxu0 0
    %1137 = vmatprep.subr.bf16.mxu0 0
    %1138 = vmatpush1.bf16.msra.mxu0 0
    %1139 = vmatprep.subr.bf16.mxu0 0
    %1140 = vmatpush1.bf16.msra.mxu0 0
    %1141 = vmatprep.subr.bf16.mxu0 0
    %1142 = vmatpush1.bf16.msra.mxu0 0
    %1143 = vmatprep.mubr.bf16.mxu0 0
    %1144 = vmatmul.mubr.bf16.gmra.mrb[0].mxu0 %v995
    %v1145 = vpop.f32.mrb[0].mxu0
    %v1146 = vadd.f32 0.0, %v1145
    %v1147 = vpop.f32.mrb[0].mxu0
    %v1148 = vadd.f32 0.0, %v1147
    %v1149 = vpop.f32.mrb[0].mxu0
    %v1150 = vpop.f32.mrb[0].mxu0
    %1151 = vdwg.mxu0
    %v1156 = vrot.slane %v1105, 6
    %v1157 = vrot.slane %v1107, 6
    %v1158 = vrot.slane %v1146, 6
    %v1159 = vrot.slane %v1148, 6
    %v1164 = vadd.f32 %v190, %v1156
    %v1165 = vadd.f32 %v192, %v1157
    %v1166 = vadd.f32 %v231, %v1158
    %v1167 = vadd.f32 %v233, %v1159
    %v1168 = vmul.f32 %v1164, 0.5
    %v1169 = vmul.f32 %v1165, 0.5
    %v1170 = vmul.f32 %v1166, 0.5
    %v1171 = vmul.f32 %v1167, 0.5
    %v1172 = vsel %vm97, %v1168, %v1164
    %v1173 = vsel %vm98, %v1169, %v1165
    %v1174 = vsel %vm99, %v1170, %v1166
    %v1175 = vsel %vm100, %v1171, %v1167
    %v1176 = vtanh.pop %v1172
    %v1177 = vtanh.pop %v1173
    %v1178 = vtanh.pop %v1174
    %v1179 = vtanh.pop %v1175
    %v1180 = vmul.f32 %v1176, 0.5
    %v1181 = vmul.f32 %v1177, 0.5
    %v1182 = vmul.f32 %v1178, 0.5
    %v1183 = vmul.f32 %v1179, 0.5
    %v1184 = vadd.f32 %v1180, 0.5
    %v1185 = vadd.f32 %v1181, 0.5
    %v1186 = vadd.f32 %v1182, 0.5
    %v1187 = vadd.f32 %v1183, 0.5
    %v1188 = vsel %vm97, %v1184, %v1176
    %v1189 = vsel %vm98, %v1185, %v1177
    %v1190 = vsel %vm99, %v1186, %v1178
    %v1191 = vsel %vm100, %v1187, %v1179
    %v1193 = vrot.slane %v945, 7
    %v1195 = vmul.f32 %v1189, %v1193
    %v1196 = vmul.f32 %v1188, %v1191
    %v1197 = vadd.f32 %v1195, %v1196
    %v1198 = vtanh.pop %v1197
    %v1199 = vmul.f32 %v1190, %v1198
    %v1200 = vpack.c.bf16 %v1199, %v1199
    %v1201 = vpack.c.bf16 %v1069, %v1069
    %v1203 = vsel %vm610, %v1201, 0
    %1205 = vmatprep.subr.bf16.mxu0 %v595
    %1206 = vmatpush1.bf16.msra.mxu0 %v594
    %1207 = vmatprep.subr.bf16.mxu0 %v597
    %1208 = vmatpush1.bf16.msra.mxu0 %v596
    %1209 = vmatprep.subr.bf16.mxu0 %v599
    %1210 = vmatpush1.bf16.msra.mxu0 %v598
    %1211 = vmatprep.subr.bf16.mxu0 %v601
    %1212 = vmatpush1.bf16.msra.mxu0 %v600
    %1213 = vmatprep.subr.bf16.mxu0 0
    %1214 = vmatpush1.bf16.msra.mxu0 0
    %1215 = vmatprep.subr.bf16.mxu0 0
    %1216 = vmatpush1.bf16.msra.mxu0 0
    %1217 = vmatprep.subr.bf16.mxu0 0
    %1218 = vmatpush1.bf16.msra.mxu0 0
    %1219 = vmatprep.subr.bf16.mxu0 0
    %1220 = vmatpush1.bf16.msra.mxu0 0
    %1221 = vmatprep.subr.bf16.mxu0 0
    %1222 = vmatpush1.bf16.msra.mxu0 0
    %1223 = vmatprep.subr.bf16.mxu0 0
    %1224 = vmatpush1.bf16.msra.mxu0 0
    %1225 = vmatprep.subr.bf16.mxu0 0
    %1226 = vmatpush1.bf16.msra.mxu0 0
    %1227 = vmatprep.subr.bf16.mxu0 0
    %1228 = vmatpush1.bf16.msra.mxu0 0
    %1229 = vmatprep.subr.bf16.mxu0 0
    %1230 = vmatpush1.bf16.msra.mxu0 0
    %1231 = vmatprep.subr.bf16.mxu0 0
    %1232 = vmatpush1.bf16.msra.mxu0 0
    %1233 = vmatprep.subr.bf16.mxu0 0
    %1234 = vmatpush1.bf16.msra.mxu0 0
    %1235 = vmatprep.subr.bf16.mxu0 0
    %1236 = vmatpush1.bf16.msra.mxu0 0
    %1237 = vmatprep.mubr.bf16.mxu0 0
    %1238 = vmatmul.mubr.bf16.gmra.mrb[0].mxu0 %v1203
    %v1239 = vpop.f32.mrb[0].mxu0
    %v1240 = vadd.f32 0.0, %v1239
    %v1241 = vpop.f32.mrb[0].mxu0
    %v1242 = vadd.f32 0.0, %v1241
    %v1243 = vpop.f32.mrb[0].mxu0
    %v1244 = vpop.f32.mrb[0].mxu0
    %1245 = vdwg.mxu0
    %v1247 = vrot.slane %v1200, 1
    %1249 = vmatprep.subr.bf16.mxu0 %v704
    %1250 = vmatpush1.bf16.msra.mxu0 %v703
    %1251 = vmatprep.subr.bf16.mxu0 %v706
    %1252 = vmatpush1.bf16.msra.mxu0 %v705
    %1253 = vmatprep.subr.bf16.mxu0 %v708
    %1254 = vmatpush1.bf16.msra.mxu0 %v707
    %1255 = vmatprep.subr.bf16.mxu0 %v710
    %1256 = vmatpush1.bf16.msra.mxu0 %v709
    %1257 = vmatprep.subr.bf16.mxu0 %v712
    %1258 = vmatpush1.bf16.msra.mxu0 %v711
    %1259 = vmatprep.subr.bf16.mxu0 %v714
    %1260 = vmatpush1.bf16.msra.mxu0 %v713
    %1261 = vmatprep.subr.bf16.mxu0 %v716
    %1262 = vmatpush1.bf16.msra.mxu0 %v715
    %1263 = vmatprep.subr.bf16.mxu0 %v718
    %1264 = vmatpush1.bf16.msra.mxu0 %v717
    %1265 = vmatprep.subr.bf16.mxu0 0
    %1266 = vmatpush1.bf16.msra.mxu0 0
    %1267 = vmatprep.subr.bf16.mxu0 0
    %1268 = vmatpush1.bf16.msra.mxu0 0
    %1269 = vmatprep.subr.bf16.mxu0 0
    %1270 = vmatpush1.bf16.msra.mxu0 0
    %1271 = vmatprep.subr.bf16.mxu0 0
    %1272 = vmatpush1.bf16.msra.mxu0 0
    %1273 = vmatprep.subr.bf16.mxu0 0
    %1274 = vmatpush1.bf16.msra.mxu0 0
    %1275 = vmatprep.subr.bf16.mxu0 0
    %1276 = vmatpush1.bf16.msra.mxu0 0
    %1277 = vmatprep.subr.bf16.mxu0 0
    %1278 = vmatpush1.bf16.msra.mxu0 0
    %1279 = vmatprep.subr.bf16.mxu0 0
    %1280 = vmatpush1.bf16.msra.mxu0 0
    %1281 = vmatprep.mubr.bf16.mxu0 0
    %1282 = vmatmul.mubr.bf16.gmra.mrb[0].mxu0 %v1247
    %v1283 = vpop.f32.mrb[0].mxu0
    %v1284 = vadd.f32 %v1240, %v1283
    %v1285 = vpop.f32.mrb[0].mxu0
    %v1286 = vadd.f32 %v1242, %v1285
    %v1287 = vpop.f32.mrb[0].mxu0
    %v1288 = vpop.f32.mrb[0].mxu0
    %1289 = vdwg.mxu0
    %v1290 = vadd.f32 %v1284, %v780
    %v1291 = vadd.f32 %v1286, %v784
    %v1292 = vmul.f32 %v1290, 0.5
    %v1293 = vmul.f32 %v1291, 0.5
    %v1294 = vsel %vm101, %v1292, %v1290
    %v1295 = vsel %vm102, %v1293, %v1291
    %v1296 = vtanh.pop %v1294
    %v1297 = vtanh.pop %v1295
    %v1298 = vmul.f32 %v1296, 0.5
    %v1299 = vmul.f32 %v1297, 0.5
    %v1300 = vadd.f32 %v1298, 0.5
    %v1301 = vadd.f32 %v1299, 0.5
    %v1302 = vsel %vm101, %v1300, %v1296
    %v1303 = vsel %vm102, %v1301, %v1297
    %v1304 = vmul.f32 %v1302, %v1063
    %1306 = vrot.lane.b32.xlu0 %v1303, 64
    %v1307 = vpop.permute.xlu0 %1306
    %v1309 = vmul.f32 %v1302, %v1307
    %1311 = vrot.lane.b32.xlu0 %v1309, 64
    %v1312 = vpop.permute.xlu0 %1311
    %v1314 = vadd.f32 %v1304, %v1312
    %v1315 = vtanh.pop %v1314
    %1317 = vrot.lane.b32.xlu0 %v1315, 64
    %v1318 = vpop.permute.xlu0 %1317
    %v1320 = vmul.f32 %v1303, %v1318
    %1321 = vmatprep.subr.bf16.mxu0 %v367
    %1322 = vmatpush1.bf16.msra.mxu0 %v366
    %1323 = vmatprep.subr.bf16.mxu0 %v371
    %1324 = vmatpush1.bf16.msra.mxu0 %v370
    %1325 = vmatprep.subr.bf16.mxu0 %v375
    %1326 = vmatpush1.bf16.msra.mxu0 %v374
    %1327 = vmatprep.subr.bf16.mxu0 %v379
    %1328 = vmatpush1.bf16.msra.mxu0 %v378
    %1329 = vmatprep.subr.bf16.mxu0 %v383
    %1330 = vmatpush1.bf16.msra.mxu0 %v382
    %1331 = vmatprep.subr.bf16.mxu0 %v387
    %1332 = vmatpush1.bf16.msra.mxu0 %v386
    %1333 = vmatprep.subr.bf16.mxu0 %v391
    %1334 = vmatpush1.bf16.msra.mxu0 %v390
    %1335 = vmatprep.subr.bf16.mxu0 %v395
    %1336 = vmatpush1.bf16.msra.mxu0 %v394
    %1337 = vmatprep.subr.bf16.mxu0 0
    %1338 = vmatpush1.bf16.msra.mxu0 0
    %1339 = vmatprep.subr.bf16.mxu0 0
    %1340 = vmatpush1.bf16.msra.mxu0 0
    %1341 = vmatprep.subr.bf16.mxu0 0
    %1342 = vmatpush1.bf16.msra.mxu0 0
    %1343 = vmatprep.subr.bf16.mxu0 0
    %1344 = vmatpush1.bf16.msra.mxu0 0
    %1345 = vmatprep.subr.bf16.mxu0 0
    %1346 = vmatpush1.bf16.msra.mxu0 0
    %1347 = vmatprep.subr.bf16.mxu0 0
    %1348 = vmatpush1.bf16.msra.mxu0 0
    %1349 = vmatprep.subr.bf16.mxu0 0
    %1350 = vmatpush1.bf16.msra.mxu0 0
    %1351 = vmatprep.subr.bf16.mxu0 0
    %1352 = vmatpush1.bf16.msra.mxu0 0
    %1353 = vmatprep.mubr.bf16.mxu0 0
    %1354 = vmatmul.mubr.bf16.gmra.mrb[0].mxu0 %v1247
    %v1355 = vpop.f32.mrb[0].mxu0
    %v1356 = vadd.f32 0.0, %v1355
    %v1357 = vpop.f32.mrb[0].mxu0
    %v1358 = vadd.f32 0.0, %v1357
    %v1359 = vpop.f32.mrb[0].mxu0
    %v1360 = vpop.f32.mrb[0].mxu0
    %1361 = vdwg.mxu0
    %1362 = vmatprep.subr.bf16.mxu0 %v369
    %1363 = vmatpush1.bf16.msra.mxu0 %v368
    %1364 = vmatprep.subr.bf16.mxu0 %v373
    %1365 = vmatpush1.bf16.msra.mxu0 %v372
    %1366 = vmatprep.subr.bf16.mxu0 %v377
    %1367 = vmatpush1.bf16.msra.mxu0 %v376
    %1368 = vmatprep.subr.bf16.mxu0 %v381
    %1369 = vmatpush1.bf16.msra.mxu0 %v380
    %1370 = vmatprep.subr.bf16.mxu0 %v385
    %1371 = vmatpush1.bf16.msra.mxu0 %v384
    %1372 = vmatprep.subr.bf16.mxu0 %v389
    %1373 = vmatpush1.bf16.msra.mxu0 %v388
    %1374 = vmatprep.subr.bf16.mxu0 %v393
    %1375 = vmatpush1.bf16.msra.mxu0 %v392
    %1376 = vmatprep.subr.bf16.mxu0 %v397
    %1377 = vmatpush1.bf16.msra.mxu0 %v396
    %1378 = vmatprep.subr.bf16.mxu0 0
    %1379 = vmatpush1.bf16.msra.mxu0 0
    %1380 = vmatprep.subr.bf16.mxu0 0
    %1381 = vmatpush1.bf16.msra.mxu0 0
    %1382 = vmatprep.subr.bf16.mxu0 0
    %1383 = vmatpush1.bf16.msra.mxu0 0
    %1384 = vmatprep.subr.bf16.mxu0 0
    %1385 = vmatpush1.bf16.msra.mxu0 0
    %1386 = vmatprep.subr.bf16.mxu0 0
    %1387 = vmatpush1.bf16.msra.mxu0 0
    %1388 = vmatprep.subr.bf16.mxu0 0
    %1389 = vmatpush1.bf16.msra.mxu0 0
    %1390 = vmatprep.subr.bf16.mxu0 0
    %1391 = vmatpush1.bf16.msra.mxu0 0
    %1392 = vmatprep.subr.bf16.mxu0 0
    %1393 = vmatpush1.bf16.msra.mxu0 0
    %1394 = vmatprep.mubr.bf16.mxu0 0
    %1395 = vmatmul.mubr.bf16.gmra.mrb[0].mxu0 %v1247
    %v1396 = vpop.f32.mrb[0].mxu0
    %v1397 = vadd.f32 0.0, %v1396
    %v1398 = vpop.f32.mrb[0].mxu0
    %v1399 = vadd.f32 0.0, %v1398
    %v1400 = vpop.f32.mrb[0].mxu0
    %v1401 = vpop.f32.mrb[0].mxu0
    %1402 = vdwg.mxu0
    %v1407 = vrot.slane %v1356, 5
    %v1408 = vrot.slane %v1358, 5
    %v1409 = vrot.slane %v1397, 5
    %v1410 = vrot.slane %v1399, 5
    %v1415 = vadd.f32 %v190, %v1407
    %v1416 = vadd.f32 %v192, %v1408
    %v1417 = vadd.f32 %v231, %v1409
    %v1418 = vadd.f32 %v233, %v1410
    %v1419 = vmul.f32 %v1415, 0.5
    %v1420 = vmul.f32 %v1416, 0.5
    %v1421 = vmul.f32 %v1417, 0.5
    %v1422 = vmul.f32 %v1418, 0.5
    %v1423 = vsel %vm97, %v1419, %v1415
    %v1424 = vsel %vm98, %v1420, %v1416
    %v1425 = vsel %vm99, %v1421, %v1417
    %v1426 = vsel %vm100, %v1422, %v1418
    %v1427 = vtanh.pop %v1423
    %v1428 = vtanh.pop %v1424
    %v1429 = vtanh.pop %v1425
    %v1430 = vtanh.pop %v1426
    %v1431 = vmul.f32 %v1427, 0.5
    %v1432 = vmul.f32 %v1428, 0.5
    %v1433 = vmul.f32 %v1429, 0.5
    %v1434 = vmul.f32 %v1430, 0.5
    %v1435 = vadd.f32 %v1431, 0.5
    %v1436 = vadd.f32 %v1432, 0.5
    %v1437 = vadd.f32 %v1433, 0.5
    %v1438 = vadd.f32 %v1434, 0.5
    %v1439 = vsel %vm97, %v1435, %v1427
    %v1440 = vsel %vm98, %v1436, %v1428
    %v1441 = vsel %vm99, %v1437, %v1429
    %v1442 = vsel %vm100, %v1438, %v1430
    %v1444 = vrot.slane %v1197, 7
    %v1446 = vmul.f32 %v1440, %v1444
    %v1447 = vmul.f32 %v1439, %v1442
    %v1448 = vadd.f32 %v1446, %v1447
    %v1449 = vtanh.pop %v1448
    %v1450 = vmul.f32 %v1441, %v1449
    %v1451 = vpack.c.bf16 %v1450, %v1450
    %v1452 = vpack.c.bf16 %v1320, %v1320
    %v1454 = vsel %vm610, %v1452, 0
    %1456 = vmatprep.subr.bf16.mxu0 %v595
    %1457 = vmatpush1.bf16.msra.mxu0 %v594
    %1458 = vmatprep.subr.bf16.mxu0 %v597
    %1459 = vmatpush1.bf16.msra.mxu0 %v596
    %1460 = vmatprep.subr.bf16.mxu0 %v599
    %1461 = vmatpush1.bf16.msra.mxu0 %v598
    %1462 = vmatprep.subr.bf16.mxu0 %v601
    %1463 = vmatpush1.bf16.msra.mxu0 %v600
    %1464 = vmatprep.subr.bf16.mxu0 0
    %1465 = vmatpush1.bf16.msra.mxu0 0
    %1466 = vmatprep.subr.bf16.mxu0 0
    %1467 = vmatpush1.bf16.msra.mxu0 0
    %1468 = vmatprep.subr.bf16.mxu0 0
    %1469 = vmatpush1.bf16.msra.mxu0 0
    %1470 = vmatprep.subr.bf16.mxu0 0
    %1471 = vmatpush1.bf16.msra.mxu0 0
    %1472 = vmatprep.subr.bf16.mxu0 0
    %1473 = vmatpush1.bf16.msra.mxu0 0
    %1474 = vmatprep.subr.bf16.mxu0 0
    %1475 = vmatpush1.bf16.msra.mxu0 0
    %1476 = vmatprep.subr.bf16.mxu0 0
    %1477 = vmatpush1.bf16.msra.mxu0 0
    %1478 = vmatprep.subr.bf16.mxu0 0
    %1479 = vmatpush1.bf16.msra.mxu0 0
    %1480 = vmatprep.subr.bf16.mxu0 0
    %1481 = vmatpush1.bf16.msra.mxu0 0
    %1482 = vmatprep.subr.bf16.mxu0 0
    %1483 = vmatpush1.bf16.msra.mxu0 0
    %1484 = vmatprep.subr.bf16.mxu0 0
    %1485 = vmatpush1.bf16.msra.mxu0 0
    %1486 = vmatprep.subr.bf16.mxu0 0
    %1487 = vmatpush1.bf16.msra.mxu0 0
    %1488 = vmatprep.mubr.bf16.mxu0 0
    %1489 = vmatmul.mubr.bf16.gmra.mrb[0].mxu0 %v1454
    %v1490 = vpop.f32.mrb[0].mxu0
    %v1491 = vadd.f32 0.0, %v1490
    %v1492 = vpop.f32.mrb[0].mxu0
    %v1493 = vadd.f32 0.0, %v1492
    %v1494 = vpop.f32.mrb[0].mxu0
    %v1495 = vpop.f32.mrb[0].mxu0
    %1496 = vdwg.mxu0
    %v1498 = vshrl.u32 %v1451, 16
    %v1500 = vrot.slane %v1498, 1
    %1502 = vmatprep.subr.bf16.mxu0 %v704
    %1503 = vmatpush1.bf16.msra.mxu0 %v703
    %1504 = vmatprep.subr.bf16.mxu0 %v706
    %1505 = vmatpush1.bf16.msra.mxu0 %v705
    %1506 = vmatprep.subr.bf16.mxu0 %v708
    %1507 = vmatpush1.bf16.msra.mxu0 %v707
    %1508 = vmatprep.subr.bf16.mxu0 %v710
    %1509 = vmatpush1.bf16.msra.mxu0 %v709
    %1510 = vmatprep.subr.bf16.mxu0 %v712
    %1511 = vmatpush1.bf16.msra.mxu0 %v711
    %1512 = vmatprep.subr.bf16.mxu0 %v714
    %1513 = vmatpush1.bf16.msra.mxu0 %v713
    %1514 = vmatprep.subr.bf16.mxu0 %v716
    %1515 = vmatpush1.bf16.msra.mxu0 %v715
    %1516 = vmatprep.subr.bf16.mxu0 %v718
    %1517 = vmatpush1.bf16.msra.mxu0 %v717
    %1518 = vmatprep.subr.bf16.mxu0 0
    %1519 = vmatpush1.bf16.msra.mxu0 0
    %1520 = vmatprep.subr.bf16.mxu0 0
    %1521 = vmatpush1.bf16.msra.mxu0 0
    %1522 = vmatprep.subr.bf16.mxu0 0
    %1523 = vmatpush1.bf16.msra.mxu0 0
    %1524 = vmatprep.subr.bf16.mxu0 0
    %1525 = vmatpush1.bf16.msra.mxu0 0
    %1526 = vmatprep.subr.bf16.mxu0 0
    %1527 = vmatpush1.bf16.msra.mxu0 0
    %1528 = vmatprep.subr.bf16.mxu0 0
    %1529 = vmatpush1.bf16.msra.mxu0 0
    %1530 = vmatprep.subr.bf16.mxu0 0
    %1531 = vmatpush1.bf16.msra.mxu0 0
    %1532 = vmatprep.subr.bf16.mxu0 0
    %1533 = vmatpush1.bf16.msra.mxu0 0
    %1534 = vmatprep.mubr.bf16.mxu0 0
    %1535 = vmatmul.mubr.bf16.gmra.mrb[0].mxu0 %v1500
    %v1536 = vpop.f32.mrb[0].mxu0
    %v1537 = vadd.f32 %v1491, %v1536
    %v1538 = vpop.f32.mrb[0].mxu0
    %v1539 = vadd.f32 %v1493, %v1538
    %v1540 = vpop.f32.mrb[0].mxu0
    %v1541 = vpop.f32.mrb[0].mxu0
    %1542 = vdwg.mxu0
    %v1543 = vadd.f32 %v1537, %v780
    %v1544 = vadd.f32 %v1539, %v784
    %v1545 = vmul.f32 %v1543, 0.5
    %v1546 = vmul.f32 %v1544, 0.5
    %v1547 = vsel %vm101, %v1545, %v1543
    %v1548 = vsel %vm102, %v1546, %v1544
    %v1549 = vtanh.pop %v1547
    %v1550 = vtanh.pop %v1548
    %v1551 = vmul.f32 %v1549, 0.5
    %v1552 = vmul.f32 %v1550, 0.5
    %v1553 = vadd.f32 %v1551, 0.5
    %v1554 = vadd.f32 %v1552, 0.5
    %v1555 = vsel %vm101, %v1553, %v1549
    %v1556 = vsel %vm102, %v1554, %v1550
    %v1557 = vmul.f32 %v1555, %v1314
    %1559 = vrot.lane.b32.xlu0 %v1556, 64
    %v1560 = vpop.permute.xlu0 %1559
    %v1562 = vmul.f32 %v1555, %v1560
    %1564 = vrot.lane.b32.xlu0 %v1562, 64
    %v1565 = vpop.permute.xlu0 %1564
    %v1567 = vadd.f32 %v1557, %v1565
    %v1568 = vtanh.pop %v1567
    %1570 = vrot.lane.b32.xlu0 %v1568, 64
    %v1571 = vpop.permute.xlu0 %1570
    %v1573 = vmul.f32 %v1556, %v1571
    %1574 = vmatprep.subr.bf16.mxu0 %v367
    %1575 = vmatpush1.bf16.msra.mxu0 %v366
    %1576 = vmatprep.subr.bf16.mxu0 %v371
    %1577 = vmatpush1.bf16.msra.mxu0 %v370
    %1578 = vmatprep.subr.bf16.mxu0 %v375
    %1579 = vmatpush1.bf16.msra.mxu0 %v374
    %1580 = vmatprep.subr.bf16.mxu0 %v379
    %1581 = vmatpush1.bf16.msra.mxu0 %v378
    %1582 = vmatprep.subr.bf16.mxu0 %v383
    %1583 = vmatpush1.bf16.msra.mxu0 %v382
    %1584 = vmatprep.subr.bf16.mxu0 %v387
    %1585 = vmatpush1.bf16.msra.mxu0 %v386
    %1586 = vmatprep.subr.bf16.mxu0 %v391
    %1587 = vmatpush1.bf16.msra.mxu0 %v390
    %1588 = vmatprep.subr.bf16.mxu0 %v395
    %1589 = vmatpush1.bf16.msra.mxu0 %v394
    %1590 = vmatprep.subr.bf16.mxu0 0
    %1591 = vmatpush1.bf16.msra.mxu0 0
    %1592 = vmatprep.subr.bf16.mxu0 0
    %1593 = vmatpush1.bf16.msra.mxu0 0
    %1594 = vmatprep.subr.bf16.mxu0 0
    %1595 = vmatpush1.bf16.msra.mxu0 0
    %1596 = vmatprep.subr.bf16.mxu0 0
    %1597 = vmatpush1.bf16.msra.mxu0 0
    %1598 = vmatprep.subr.bf16.mxu0 0
    %1599 = vmatpush1.bf16.msra.mxu0 0
    %1600 = vmatprep.subr.bf16.mxu0 0
    %1601 = vmatpush1.bf16.msra.mxu0 0
    %1602 = vmatprep.subr.bf16.mxu0 0
    %1603 = vmatpush1.bf16.msra.mxu0 0
    %1604 = vmatprep.subr.bf16.mxu0 0
    %1605 = vmatpush1.bf16.msra.mxu0 0
    %1606 = vmatprep.mubr.bf16.mxu0 0
    %1607 = vmatmul.mubr.bf16.gmra.mrb[0].mxu0 %v1500
    %v1608 = vpop.f32.mrb[0].mxu0
    %v1609 = vadd.f32 0.0, %v1608
    %v1610 = vpop.f32.mrb[0].mxu0
    %v1611 = vadd.f32 0.0, %v1610
    %v1612 = vpop.f32.mrb[0].mxu0
    %v1613 = vpop.f32.mrb[0].mxu0
    %1614 = vdwg.mxu0
    %1615 = vmatprep.subr.bf16.mxu0 %v369
    %1616 = vmatpush1.bf16.msra.mxu0 %v368
    %1617 = vmatprep.subr.bf16.mxu0 %v373
    %1618 = vmatpush1.bf16.msra.mxu0 %v372
    %1619 = vmatprep.subr.bf16.mxu0 %v377
    %1620 = vmatpush1.bf16.msra.mxu0 %v376
    %1621 = vmatprep.subr.bf16.mxu0 %v381
    %1622 = vmatpush1.bf16.msra.mxu0 %v380
    %1623 = vmatprep.subr.bf16.mxu0 %v385
    %1624 = vmatpush1.bf16.msra.mxu0 %v384
    %1625 = vmatprep.subr.bf16.mxu0 %v389
    %1626 = vmatpush1.bf16.msra.mxu0 %v388
    %1627 = vmatprep.subr.bf16.mxu0 %v393
    %1628 = vmatpush1.bf16.msra.mxu0 %v392
    %1629 = vmatprep.subr.bf16.mxu0 %v397
    %1630 = vmatpush1.bf16.msra.mxu0 %v396
    %1631 = vmatprep.subr.bf16.mxu0 0
    %1632 = vmatpush1.bf16.msra.mxu0 0
    %1633 = vmatprep.subr.bf16.mxu0 0
    %1634 = vmatpush1.bf16.msra.mxu0 0
    %1635 = vmatprep.subr.bf16.mxu0 0
    %1636 = vmatpush1.bf16.msra.mxu0 0
    %1637 = vmatprep.subr.bf16.mxu0 0
    %1638 = vmatpush1.bf16.msra.mxu0 0
    %1639 = vmatprep.subr.bf16.mxu0 0
    %1640 = vmatpush1.bf16.msra.mxu0 0
    %1641 = vmatprep.subr.bf16.mxu0 0
    %1642 = vmatpush1.bf16.msra.mxu0 0
    %1643 = vmatprep.subr.bf16.mxu0 0
    %1644 = vmatpush1.bf16.msra.mxu0 0
    %1645 = vmatprep.subr.bf16.mxu0 0
    %1646 = vmatpush1.bf16.msra.mxu0 0
    %1647 = vmatprep.mubr.bf16.mxu0 0
    %1648 = vmatmul.mubr.bf16.gmra.mrb[0].mxu0 %v1500
    %v1649 = vpop.f32.mrb[0].mxu0
    %v1650 = vadd.f32 0.0, %v1649
    %v1651 = vpop.f32.mrb[0].mxu0
    %v1652 = vadd.f32 0.0, %v1651
    %v1653 = vpop.f32.mrb[0].mxu0
    %v1654 = vpop.f32.mrb[0].mxu0
    %1655 = vdwg.mxu0
    %v1660 = vrot.slane %v1609, 4
    %v1661 = vrot.slane %v1611, 4
    %v1662 = vrot.slane %v1650, 4
    %v1663 = vrot.slane %v1652, 4
    %v1668 = vadd.f32 %v190, %v1660
    %v1669 = vadd.f32 %v192, %v1661
    %v1670 = vadd.f32 %v231, %v1662
    %v1671 = vadd.f32 %v233, %v1663
    %v1672 = vmul.f32 %v1668, 0.5
    %v1673 = vmul.f32 %v1669, 0.5
    %v1674 = vmul.f32 %v1670, 0.5
    %v1675 = vmul.f32 %v1671, 0.5
    %v1676 = vsel %vm97, %v1672, %v1668
    %v1677 = vsel %vm98, %v1673, %v1669
    %v1678 = vsel %vm99, %v1674, %v1670
    %v1679 = vsel %vm100, %v1675, %v1671
    %v1680 = vtanh.pop %v1676
    %v1681 = vtanh.pop %v1677
    %v1682 = vtanh.pop %v1678
    %v1683 = vtanh.pop %v1679
    %v1684 = vmul.f32 %v1680, 0.5
    %v1685 = vmul.f32 %v1681, 0.5
    %v1686 = vmul.f32 %v1682, 0.5
    %v1687 = vmul.f32 %v1683, 0.5
    %v1688 = vadd.f32 %v1684, 0.5
    %v1689 = vadd.f32 %v1685, 0.5
    %v1690 = vadd.f32 %v1686, 0.5
    %v1691 = vadd.f32 %v1687, 0.5
    %v1692 = vsel %vm97, %v1688, %v1680
    %v1693 = vsel %vm98, %v1689, %v1681
    %v1694 = vsel %vm99, %v1690, %v1682
    %v1695 = vsel %vm100, %v1691, %v1683
    %v1697 = vrot.slane %v1448, 7
    %v1699 = vmul.f32 %v1693, %v1697
    %v1700 = vmul.f32 %v1692, %v1695
    %v1701 = vadd.f32 %v1699, %v1700
    %v1702 = vtanh.pop %v1701
    %v1703 = vmul.f32 %v1694, %v1702
    %v1704 = vpack.c.bf16 %v1703, %v1703
    %v1705 = vpack.c.bf16 %v1573, %v1573
    %v1707 = vsel %vm610, %v1705, 0
    %1709 = vmatprep.subr.bf16.mxu0 %v595
    %1710 = vmatpush1.bf16.msra.mxu0 %v594
    %1711 = vmatprep.subr.bf16.mxu0 %v597
    %1712 = vmatpush1.bf16.msra.mxu0 %v596
    %1713 = vmatprep.subr.bf16.mxu0 %v599
    %1714 = vmatpush1.bf16.msra.mxu0 %v598
    %1715 = vmatprep.subr.bf16.mxu0 %v601
    %1716 = vmatpush1.bf16.msra.mxu0 %v600
    %1717 = vmatprep.subr.bf16.mxu0 0
    %1718 = vmatpush1.bf16.msra.mxu0 0
    %1719 = vmatprep.subr.bf16.mxu0 0
    %1720 = vmatpush1.bf16.msra.mxu0 0
    %1721 = vmatprep.subr.bf16.mxu0 0
    %1722 = vmatpush1.bf16.msra.mxu0 0
    %1723 = vmatprep.subr.bf16.mxu0 0
    %1724 = vmatpush1.bf16.msra.mxu0 0
    %1725 = vmatprep.subr.bf16.mxu0 0
    %1726 = vmatpush1.bf16.msra.mxu0 0
    %1727 = vmatprep.subr.bf16.mxu0 0
    %1728 = vmatpush1.bf16.msra.mxu0 0
    %1729 = vmatprep.subr.bf16.mxu0 0
    %1730 = vmatpush1.bf16.msra.mxu0 0
    %1731 = vmatprep.subr.bf16.mxu0 0
    %1732 = vmatpush1.bf16.msra.mxu0 0
    %1733 = vmatprep.subr.bf16.mxu0 0
    %1734 = vmatpush1.bf16.msra.mxu0 0
    %1735 = vmatprep.subr.bf16.mxu0 0
    %1736 = vmatpush1.bf16.msra.mxu0 0
    %1737 = vmatprep.subr.bf16.mxu0 0
    %1738 = vmatpush1.bf16.msra.mxu0 0
    %1739 = vmatprep.subr.bf16.mxu0 0
    %1740 = vmatpush1.bf16.msra.mxu0 0
    %1741 = vmatprep.mubr.bf16.mxu0 0
    %1742 = vmatmul.mubr.bf16.gmra.mrb[0].mxu0 %v1707
    %v1743 = vpop.f32.mrb[0].mxu0
    %v1744 = vadd.f32 0.0, %v1743
    %v1745 = vpop.f32.mrb[0].mxu0
    %v1746 = vadd.f32 0.0, %v1745
    %v1747 = vpop.f32.mrb[0].mxu0
    %v1748 = vpop.f32.mrb[0].mxu0
    %1749 = vdwg.mxu0
    %v1751 = vrot.slane %v1704, 2
    %1753 = vmatprep.subr.bf16.mxu0 %v704
    %1754 = vmatpush1.bf16.msra.mxu0 %v703
    %1755 = vmatprep.subr.bf16.mxu0 %v706
    %1756 = vmatpush1.bf16.msra.mxu0 %v705
    %1757 = vmatprep.subr.bf16.mxu0 %v708
    %1758 = vmatpush1.bf16.msra.mxu0 %v707
    %1759 = vmatprep.subr.bf16.mxu0 %v710
    %1760 = vmatpush1.bf16.msra.mxu0 %v709
    %1761 = vmatprep.subr.bf16.mxu0 %v712
    %1762 = vmatpush1.bf16.msra.mxu0 %v711
    %1763 = vmatprep.subr.bf16.mxu0 %v714
    %1764 = vmatpush1.bf16.msra.mxu0 %v713
    %1765 = vmatprep.subr.bf16.mxu0 %v716
    %1766 = vmatpush1.bf16.msra.mxu0 %v715
    %1767 = vmatprep.subr.bf16.mxu0 %v718
    %1768 = vmatpush1.bf16.msra.mxu0 %v717
    %1769 = vmatprep.subr.bf16.mxu0 0
    %1770 = vmatpush1.bf16.msra.mxu0 0
    %1771 = vmatprep.subr.bf16.mxu0 0
    %1772 = vmatpush1.bf16.msra.mxu0 0
    %1773 = vmatprep.subr.bf16.mxu0 0
    %1774 = vmatpush1.bf16.msra.mxu0 0
    %1775 = vmatprep.subr.bf16.mxu0 0
    %1776 = vmatpush1.bf16.msra.mxu0 0
    %1777 = vmatprep.subr.bf16.mxu0 0
    %1778 = vmatpush1.bf16.msra.mxu0 0
    %1779 = vmatprep.subr.bf16.mxu0 0
    %1780 = vmatpush1.bf16.msra.mxu0 0
    %1781 = vmatprep.subr.bf16.mxu0 0
    %1782 = vmatpush1.bf16.msra.mxu0 0
    %1783 = vmatprep.subr.bf16.mxu0 0
    %1784 = vmatpush1.bf16.msra.mxu0 0
    %1785 = vmatprep.mubr.bf16.mxu0 0
    %1786 = vmatmul.mubr.bf16.gmra.mrb[0].mxu0 %v1751
    %v1787 = vpop.f32.mrb[0].mxu0
    %v1788 = vadd.f32 %v1744, %v1787
    %v1789 = vpop.f32.mrb[0].mxu0
    %v1790 = vadd.f32 %v1746, %v1789
    %v1791 = vpop.f32.mrb[0].mxu0
    %v1792 = vpop.f32.mrb[0].mxu0
    %1793 = vdwg.mxu0
    %v1794 = vadd.f32 %v1788, %v780
    %v1795 = vadd.f32 %v1790, %v784
    %v1796 = vmul.f32 %v1794, 0.5
    %v1797 = vmul.f32 %v1795, 0.5
    %v1798 = vsel %vm101, %v1796, %v1794
    %v1799 = vsel %vm102, %v1797, %v1795
    %v1800 = vtanh.pop %v1798
    %v1801 = vtanh.pop %v1799
    %v1802 = vmul.f32 %v1800, 0.5
    %v1803 = vmul.f32 %v1801, 0.5
    %v1804 = vadd.f32 %v1802, 0.5
    %v1805 = vadd.f32 %v1803, 0.5
    %v1806 = vsel %vm101, %v1804, %v1800
    %v1807 = vsel %vm102, %v1805, %v1801
    %v1808 = vmul.f32 %v1806, %v1567
    %1810 = vrot.lane.b32.xlu0 %v1807, 64
    %v1811 = vpop.permute.xlu0 %1810
    %v1813 = vmul.f32 %v1806, %v1811
    %1815 = vrot.lane.b32.xlu0 %v1813, 64
    %v1816 = vpop.permute.xlu0 %1815
    %v1818 = vadd.f32 %v1808, %v1816
    %v1819 = vtanh.pop %v1818
    %1821 = vrot.lane.b32.xlu0 %v1819, 64
    %v1822 = vpop.permute.xlu0 %1821
    %v1824 = vmul.f32 %v1807, %v1822
    %1825 = vmatprep.subr.bf16.mxu0 %v367
    %1826 = vmatpush1.bf16.msra.mxu0 %v366
    %1827 = vmatprep.subr.bf16.mxu0 %v371
    %1828 = vmatpush1.bf16.msra.mxu0 %v370
    %1829 = vmatprep.subr.bf16.mxu0 %v375
    %1830 = vmatpush1.bf16.msra.mxu0 %v374
    %1831 = vmatprep.subr.bf16.mxu0 %v379
    %1832 = vmatpush1.bf16.msra.mxu0 %v378
    %1833 = vmatprep.subr.bf16.mxu0 %v383
    %1834 = vmatpush1.bf16.msra.mxu0 %v382
    %1835 = vmatprep.subr.bf16.mxu0 %v387
    %1836 = vmatpush1.bf16.msra.mxu0 %v386
    %1837 = vmatprep.subr.bf16.mxu0 %v391
    %1838 = vmatpush1.bf16.msra.mxu0 %v390
    %1839 = vmatprep.subr.bf16.mxu0 %v395
    %1840 = vmatpush1.bf16.msra.mxu0 %v394
    %1841 = vmatprep.subr.bf16.mxu0 0
    %1842 = vmatpush1.bf16.msra.mxu0 0
    %1843 = vmatprep.subr.bf16.mxu0 0
    %1844 = vmatpush1.bf16.msra.mxu0 0
    %1845 = vmatprep.subr.bf16.mxu0 0
    %1846 = vmatpush1.bf16.msra.mxu0 0
    %1847 = vmatprep.subr.bf16.mxu0 0
    %1848 = vmatpush1.bf16.msra.mxu0 0
    %1849 = vmatprep.subr.bf16.mxu0 0
    %1850 = vmatpush1.bf16.msra.mxu0 0
    %1851 = vmatprep.subr.bf16.mxu0 0
    %1852 = vmatpush1.bf16.msra.mxu0 0
    %1853 = vmatprep.subr.bf16.mxu0 0
    %1854 = vmatpush1.bf16.msra.mxu0 0
    %1855 = vmatprep.subr.bf16.mxu0 0
    %1856 = vmatpush1.bf16.msra.mxu0 0
    %1857 = vmatprep.mubr.bf16.mxu0 0
    %1858 = vmatmul.mubr.bf16.gmra.mrb[0].mxu0 %v1751
    %v1859 = vpop.f32.mrb[0].mxu0
    %v1860 = vadd.f32 0.0, %v1859
    %v1861 = vpop.f32.mrb[0].mxu0
    %v1862 = vadd.f32 0.0, %v1861
    %v1863 = vpop.f32.mrb[0].mxu0
    %v1864 = vpop.f32.mrb[0].mxu0
    %1865 = vdwg.mxu0
    %1866 = vmatprep.subr.bf16.mxu0 %v369
    %1867 = vmatpush1.bf16.msra.mxu0 %v368
    %1868 = vmatprep.subr.bf16.mxu0 %v373
    %1869 = vmatpush1.bf16.msra.mxu0 %v372
    %1870 = vmatprep.subr.bf16.mxu0 %v377
    %1871 = vmatpush1.bf16.msra.mxu0 %v376
    %1872 = vmatprep.subr.bf16.mxu0 %v381
    %1873 = vmatpush1.bf16.msra.mxu0 %v380
    %1874 = vmatprep.subr.bf16.mxu0 %v385
    %1875 = vmatpush1.bf16.msra.mxu0 %v384
    %1876 = vmatprep.subr.bf16.mxu0 %v389
    %1877 = vmatpush1.bf16.msra.mxu0 %v388
    %1878 = vmatprep.subr.bf16.mxu0 %v393
    %1879 = vmatpush1.bf16.msra.mxu0 %v392
    %1880 = vmatprep.subr.bf16.mxu0 %v397
    %1881 = vmatpush1.bf16.msra.mxu0 %v396
    %1882 = vmatprep.subr.bf16.mxu0 0
    %1883 = vmatpush1.bf16.msra.mxu0 0
    %1884 = vmatprep.subr.bf16.mxu0 0
    %1885 = vmatpush1.bf16.msra.mxu0 0
    %1886 = vmatprep.subr.bf16.mxu0 0
    %1887 = vmatpush1.bf16.msra.mxu0 0
    %1888 = vmatprep.subr.bf16.mxu0 0
    %1889 = vmatpush1.bf16.msra.mxu0 0
    %1890 = vmatprep.subr.bf16.mxu0 0
    %1891 = vmatpush1.bf16.msra.mxu0 0
    %1892 = vmatprep.subr.bf16.mxu0 0
    %1893 = vmatpush1.bf16.msra.mxu0 0
    %1894 = vmatprep.subr.bf16.mxu0 0
    %1895 = vmatpush1.bf16.msra.mxu0 0
    %1896 = vmatprep.subr.bf16.mxu0 0
    %1897 = vmatpush1.bf16.msra.mxu0 0
    %1898 = vmatprep.mubr.bf16.mxu0 0
    %1899 = vmatmul.mubr.bf16.gmra.mrb[0].mxu0 %v1751
    %v1900 = vpop.f32.mrb[0].mxu0
    %v1901 = vadd.f32 0.0, %v1900
    %v1902 = vpop.f32.mrb[0].mxu0
    %v1903 = vadd.f32 0.0, %v1902
    %v1904 = vpop.f32.mrb[0].mxu0
    %v1905 = vpop.f32.mrb[0].mxu0
    %1906 = vdwg.mxu0
    %v1911 = vrot.slane %v1860, 3
    %v1912 = vrot.slane %v1862, 3
    %v1913 = vrot.slane %v1901, 3
    %v1914 = vrot.slane %v1903, 3
    %v1919 = vadd.f32 %v190, %v1911
    %v1920 = vadd.f32 %v192, %v1912
    %v1921 = vadd.f32 %v231, %v1913
    %v1922 = vadd.f32 %v233, %v1914
    %v1923 = vmul.f32 %v1919, 0.5
    %v1924 = vmul.f32 %v1920, 0.5
    %v1925 = vmul.f32 %v1921, 0.5
    %v1926 = vmul.f32 %v1922, 0.5
    %v1927 = vsel %vm97, %v1923, %v1919
    %v1928 = vsel %vm98, %v1924, %v1920
    %v1929 = vsel %vm99, %v1925, %v1921
    %v1930 = vsel %vm100, %v1926, %v1922
    %v1931 = vtanh.pop %v1927
    %v1932 = vtanh.pop %v1928
    %v1933 = vtanh.pop %v1929
    %v1934 = vtanh.pop %v1930
    %v1935 = vmul.f32 %v1931, 0.5
    %v1936 = vmul.f32 %v1932, 0.5
    %v1937 = vmul.f32 %v1933, 0.5
    %v1938 = vmul.f32 %v1934, 0.5
    %v1939 = vadd.f32 %v1935, 0.5
    %v1940 = vadd.f32 %v1936, 0.5
    %v1941 = vadd.f32 %v1937, 0.5
    %v1942 = vadd.f32 %v1938, 0.5
    %v1943 = vsel %vm97, %v1939, %v1931
    %v1944 = vsel %vm98, %v1940, %v1932
    %v1945 = vsel %vm99, %v1941, %v1933
    %v1946 = vsel %vm100, %v1942, %v1934
    %v1948 = vrot.slane %v1701, 7
    %v1950 = vmul.f32 %v1944, %v1948
    %v1951 = vmul.f32 %v1943, %v1946
    %v1952 = vadd.f32 %v1950, %v1951
    %v1953 = vtanh.pop %v1952
    %v1954 = vmul.f32 %v1945, %v1953
    %v1955 = vpack.c.bf16 %v1954, %v1954
    %v1956 = vpack.c.bf16 %v1824, %v1824
    %v1958 = vsel %vm610, %v1956, 0
    %1960 = vmatprep.subr.bf16.mxu0 %v595
    %1961 = vmatpush1.bf16.msra.mxu0 %v594
    %1962 = vmatprep.subr.bf16.mxu0 %v597
    %1963 = vmatpush1.bf16.msra.mxu0 %v596
    %1964 = vmatprep.subr.bf16.mxu0 %v599
    %1965 = vmatpush1.bf16.msra.mxu0 %v598
    %1966 = vmatprep.subr.bf16.mxu0 %v601
    %1967 = vmatpush1.bf16.msra.mxu0 %v600
    %1968 = vmatprep.subr.bf16.mxu0 0
    %1969 = vmatpush1.bf16.msra.mxu0 0
    %1970 = vmatprep.subr.bf16.mxu0 0
    %1971 = vmatpush1.bf16.msra.mxu0 0
    %1972 = vmatprep.subr.bf16.mxu0 0
    %1973 = vmatpush1.bf16.msra.mxu0 0
    %1974 = vmatprep.subr.bf16.mxu0 0
    %1975 = vmatpush1.bf16.msra.mxu0 0
    %1976 = vmatprep.subr.bf16.mxu0 0
    %1977 = vmatpush1.bf16.msra.mxu0 0
    %1978 = vmatprep.subr.bf16.mxu0 0
    %1979 = vmatpush1.bf16.msra.mxu0 0
    %1980 = vmatprep.subr.bf16.mxu0 0
    %1981 = vmatpush1.bf16.msra.mxu0 0
    %1982 = vmatprep.subr.bf16.mxu0 0
    %1983 = vmatpush1.bf16.msra.mxu0 0
    %1984 = vmatprep.subr.bf16.mxu0 0
    %1985 = vmatpush1.bf16.msra.mxu0 0
    %1986 = vmatprep.subr.bf16.mxu0 0
    %1987 = vmatpush1.bf16.msra.mxu0 0
    %1988 = vmatprep.subr.bf16.mxu0 0
    %1989 = vmatpush1.bf16.msra.mxu0 0
    %1990 = vmatprep.subr.bf16.mxu0 0
    %1991 = vmatpush1.bf16.msra.mxu0 0
    %1992 = vmatprep.mubr.bf16.mxu0 0
    %1993 = vmatmul.mubr.bf16.gmra.mrb[0].mxu0 %v1958
    %v1994 = vpop.f32.mrb[0].mxu0
    %v1995 = vadd.f32 0.0, %v1994
    %v1996 = vpop.f32.mrb[0].mxu0
    %v1997 = vadd.f32 0.0, %v1996
    %v1998 = vpop.f32.mrb[0].mxu0
    %v1999 = vpop.f32.mrb[0].mxu0
    %2000 = vdwg.mxu0
    %v2002 = vshrl.u32 %v1955, 16
    %v2004 = vrot.slane %v2002, 2
    %2006 = vmatprep.subr.bf16.mxu0 %v704
    %2007 = vmatpush1.bf16.msra.mxu0 %v703
    %2008 = vmatprep.subr.bf16.mxu0 %v706
    %2009 = vmatpush1.bf16.msra.mxu0 %v705
    %2010 = vmatprep.subr.bf16.mxu0 %v708
    %2011 = vmatpush1.bf16.msra.mxu0 %v707
    %2012 = vmatprep.subr.bf16.mxu0 %v710
    %2013 = vmatpush1.bf16.msra.mxu0 %v709
    %2014 = vmatprep.subr.bf16.mxu0 %v712
    %2015 = vmatpush1.bf16.msra.mxu0 %v711
    %2016 = vmatprep.subr.bf16.mxu0 %v714
    %2017 = vmatpush1.bf16.msra.mxu0 %v713
    %2018 = vmatprep.subr.bf16.mxu0 %v716
    %2019 = vmatpush1.bf16.msra.mxu0 %v715
    %2020 = vmatprep.subr.bf16.mxu0 %v718
    %2021 = vmatpush1.bf16.msra.mxu0 %v717
    %2022 = vmatprep.subr.bf16.mxu0 0
    %2023 = vmatpush1.bf16.msra.mxu0 0
    %2024 = vmatprep.subr.bf16.mxu0 0
    %2025 = vmatpush1.bf16.msra.mxu0 0
    %2026 = vmatprep.subr.bf16.mxu0 0
    %2027 = vmatpush1.bf16.msra.mxu0 0
    %2028 = vmatprep.subr.bf16.mxu0 0
    %2029 = vmatpush1.bf16.msra.mxu0 0
    %2030 = vmatprep.subr.bf16.mxu0 0
    %2031 = vmatpush1.bf16.msra.mxu0 0
    %2032 = vmatprep.subr.bf16.mxu0 0
    %2033 = vmatpush1.bf16.msra.mxu0 0
    %2034 = vmatprep.subr.bf16.mxu0 0
    %2035 = vmatpush1.bf16.msra.mxu0 0
    %2036 = vmatprep.subr.bf16.mxu0 0
    %2037 = vmatpush1.bf16.msra.mxu0 0
    %2038 = vmatprep.mubr.bf16.mxu0 0
    %2039 = vmatmul.mubr.bf16.gmra.mrb[0].mxu0 %v2004
    %v2040 = vpop.f32.mrb[0].mxu0
    %v2041 = vadd.f32 %v1995, %v2040
    %v2042 = vpop.f32.mrb[0].mxu0
    %v2043 = vadd.f32 %v1997, %v2042
    %v2044 = vpop.f32.mrb[0].mxu0
    %v2045 = vpop.f32.mrb[0].mxu0
    %2046 = vdwg.mxu0
    %v2047 = vadd.f32 %v2041, %v780
    %v2048 = vadd.f32 %v2043, %v784
    %v2049 = vmul.f32 %v2047, 0.5
    %v2050 = vmul.f32 %v2048, 0.5
    %v2051 = vsel %vm101, %v2049, %v2047
    %v2052 = vsel %vm102, %v2050, %v2048
    %v2053 = vtanh.pop %v2051
    %v2054 = vtanh.pop %v2052
    %v2055 = vmul.f32 %v2053, 0.5
    %v2056 = vmul.f32 %v2054, 0.5
    %v2057 = vadd.f32 %v2055, 0.5
    %v2058 = vadd.f32 %v2056, 0.5
    %v2059 = vsel %vm101, %v2057, %v2053
    %v2060 = vsel %vm102, %v2058, %v2054
    %v2061 = vmul.f32 %v2059, %v1818
    %2063 = vrot.lane.b32.xlu0 %v2060, 64
    %v2064 = vpop.permute.xlu0 %2063
    %v2066 = vmul.f32 %v2059, %v2064
    %2068 = vrot.lane.b32.xlu0 %v2066, 64
    %v2069 = vpop.permute.xlu0 %2068
    %v2071 = vadd.f32 %v2061, %v2069
    %v2072 = vtanh.pop %v2071
    %2074 = vrot.lane.b32.xlu0 %v2072, 64
    %v2075 = vpop.permute.xlu0 %2074
    %v2077 = vmul.f32 %v2060, %v2075
    %2078 = vmatprep.subr.bf16.mxu0 %v367
    %2079 = vmatpush1.bf16.msra.mxu0 %v366
    %2080 = vmatprep.subr.bf16.mxu0 %v371
    %2081 = vmatpush1.bf16.msra.mxu0 %v370
    %2082 = vmatprep.subr.bf16.mxu0 %v375
    %2083 = vmatpush1.bf16.msra.mxu0 %v374
    %2084 = vmatprep.subr.bf16.mxu0 %v379
    %2085 = vmatpush1.bf16.msra.mxu0 %v378
    %2086 = vmatprep.subr.bf16.mxu0 %v383
    %2087 = vmatpush1.bf16.msra.mxu0 %v382
    %2088 = vmatprep.subr.bf16.mxu0 %v387
    %2089 = vmatpush1.bf16.msra.mxu0 %v386
    %2090 = vmatprep.subr.bf16.mxu0 %v391
    %2091 = vmatpush1.bf16.msra.mxu0 %v390
    %2092 = vmatprep.subr.bf16.mxu0 %v395
    %2093 = vmatpush1.bf16.msra.mxu0 %v394
    %2094 = vmatprep.subr.bf16.mxu0 0
    %2095 = vmatpush1.bf16.msra.mxu0 0
    %2096 = vmatprep.subr.bf16.mxu0 0
    %2097 = vmatpush1.bf16.msra.mxu0 0
    %2098 = vmatprep.subr.bf16.mxu0 0
    %2099 = vmatpush1.bf16.msra.mxu0 0
    %2100 = vmatprep.subr.bf16.mxu0 0
    %2101 = vmatpush1.bf16.msra.mxu0 0
    %2102 = vmatprep.subr.bf16.mxu0 0
    %2103 = vmatpush1.bf16.msra.mxu0 0
    %2104 = vmatprep.subr.bf16.mxu0 0
    %2105 = vmatpush1.bf16.msra.mxu0 0
    %2106 = vmatprep.subr.bf16.mxu0 0
    %2107 = vmatpush1.bf16.msra.mxu0 0
    %2108 = vmatprep.subr.bf16.mxu0 0
    %2109 = vmatpush1.bf16.msra.mxu0 0
    %2110 = vmatprep.mubr.bf16.mxu0 0
    %2111 = vmatmul.mubr.bf16.gmra.mrb[0].mxu0 %v2004
    %v2112 = vpop.f32.mrb[0].mxu0
    %v2113 = vadd.f32 0.0, %v2112
    %v2114 = vpop.f32.mrb[0].mxu0
    %v2115 = vadd.f32 0.0, %v2114
    %v2116 = vpop.f32.mrb[0].mxu0
    %v2117 = vpop.f32.mrb[0].mxu0
    %2118 = vdwg.mxu0
    %2119 = vmatprep.subr.bf16.mxu0 %v369
    %2120 = vmatpush1.bf16.msra.mxu0 %v368
    %2121 = vmatprep.subr.bf16.mxu0 %v373
    %2122 = vmatpush1.bf16.msra.mxu0 %v372
    %2123 = vmatprep.subr.bf16.mxu0 %v377
    %2124 = vmatpush1.bf16.msra.mxu0 %v376
    %2125 = vmatprep.subr.bf16.mxu0 %v381
    %2126 = vmatpush1.bf16.msra.mxu0 %v380
    %2127 = vmatprep.subr.bf16.mxu0 %v385
    %2128 = vmatpush1.bf16.msra.mxu0 %v384
    %2129 = vmatprep.subr.bf16.mxu0 %v389
    %2130 = vmatpush1.bf16.msra.mxu0 %v388
    %2131 = vmatprep.subr.bf16.mxu0 %v393
    %2132 = vmatpush1.bf16.msra.mxu0 %v392
    %2133 = vmatprep.subr.bf16.mxu0 %v397
    %2134 = vmatpush1.bf16.msra.mxu0 %v396
    %2135 = vmatprep.subr.bf16.mxu0 0
    %2136 = vmatpush1.bf16.msra.mxu0 0
    %2137 = vmatprep.subr.bf16.mxu0 0
    %2138 = vmatpush1.bf16.msra.mxu0 0
    %2139 = vmatprep.subr.bf16.mxu0 0
    %2140 = vmatpush1.bf16.msra.mxu0 0
    %2141 = vmatprep.subr.bf16.mxu0 0
    %2142 = vmatpush1.bf16.msra.mxu0 0
    %2143 = vmatprep.subr.bf16.mxu0 0
    %2144 = vmatpush1.bf16.msra.mxu0 0
    %2145 = vmatprep.subr.bf16.mxu0 0
    %2146 = vmatpush1.bf16.msra.mxu0 0
    %2147 = vmatprep.subr.bf16.mxu0 0
    %2148 = vmatpush1.bf16.msra.mxu0 0
    %2149 = vmatprep.subr.bf16.mxu0 0
    %2150 = vmatpush1.bf16.msra.mxu0 0
    %2151 = vmatprep.mubr.bf16.mxu0 0
    %2152 = vmatmul.mubr.bf16.gmra.mrb[0].mxu0 %v2004
    %v2153 = vpop.f32.mrb[0].mxu0
    %v2154 = vadd.f32 0.0, %v2153
    %v2155 = vpop.f32.mrb[0].mxu0
    %v2156 = vadd.f32 0.0, %v2155
    %v2157 = vpop.f32.mrb[0].mxu0
    %v2158 = vpop.f32.mrb[0].mxu0
    %2159 = vdwg.mxu0
    %v2164 = vrot.slane %v2113, 2
    %v2165 = vrot.slane %v2115, 2
    %v2166 = vrot.slane %v2154, 2
    %v2167 = vrot.slane %v2156, 2
    %v2172 = vadd.f32 %v190, %v2164
    %v2173 = vadd.f32 %v192, %v2165
    %v2174 = vadd.f32 %v231, %v2166
    %v2175 = vadd.f32 %v233, %v2167
    %v2176 = vmul.f32 %v2172, 0.5
    %v2177 = vmul.f32 %v2173, 0.5
    %v2178 = vmul.f32 %v2174, 0.5
    %v2179 = vmul.f32 %v2175, 0.5
    %v2180 = vsel %vm97, %v2176, %v2172
    %v2181 = vsel %vm98, %v2177, %v2173
    %v2182 = vsel %vm99, %v2178, %v2174
    %v2183 = vsel %vm100, %v2179, %v2175
    %v2184 = vtanh.pop %v2180
    %v2185 = vtanh.pop %v2181
    %v2186 = vtanh.pop %v2182
    %v2187 = vtanh.pop %v2183
    %v2188 = vmul.f32 %v2184, 0.5
    %v2189 = vmul.f32 %v2185, 0.5
    %v2190 = vmul.f32 %v2186, 0.5
    %v2191 = vmul.f32 %v2187, 0.5
    %v2192 = vadd.f32 %v2188, 0.5
    %v2193 = vadd.f32 %v2189, 0.5
    %v2194 = vadd.f32 %v2190, 0.5
    %v2195 = vadd.f32 %v2191, 0.5
    %v2196 = vsel %vm97, %v2192, %v2184
    %v2197 = vsel %vm98, %v2193, %v2185
    %v2198 = vsel %vm99, %v2194, %v2186
    %v2199 = vsel %vm100, %v2195, %v2187
    %v2201 = vrot.slane %v1952, 7
    %v2203 = vmul.f32 %v2197, %v2201
    %v2204 = vmul.f32 %v2196, %v2199
    %v2205 = vadd.f32 %v2203, %v2204
    %v2206 = vtanh.pop %v2205
    %v2207 = vmul.f32 %v2198, %v2206
    %v2208 = vpack.c.bf16 %v2207, %v2207
    %v2209 = vpack.c.bf16 %v2077, %v2077
    %v2211 = vsel %vm610, %v2209, 0
    %2213 = vmatprep.subr.bf16.mxu0 %v595
    %2214 = vmatpush1.bf16.msra.mxu0 %v594
    %2215 = vmatprep.subr.bf16.mxu0 %v597
    %2216 = vmatpush1.bf16.msra.mxu0 %v596
    %2217 = vmatprep.subr.bf16.mxu0 %v599
    %2218 = vmatpush1.bf16.msra.mxu0 %v598
    %2219 = vmatprep.subr.bf16.mxu0 %v601
    %2220 = vmatpush1.bf16.msra.mxu0 %v600
    %2221 = vmatprep.subr.bf16.mxu0 0
    %2222 = vmatpush1.bf16.msra.mxu0 0
    %2223 = vmatprep.subr.bf16.mxu0 0
    %2224 = vmatpush1.bf16.msra.mxu0 0
    %2225 = vmatprep.subr.bf16.mxu0 0
    %2226 = vmatpush1.bf16.msra.mxu0 0
    %2227 = vmatprep.subr.bf16.mxu0 0
    %2228 = vmatpush1.bf16.msra.mxu0 0
    %2229 = vmatprep.subr.bf16.mxu0 0
    %2230 = vmatpush1.bf16.msra.mxu0 0
    %2231 = vmatprep.subr.bf16.mxu0 0
    %2232 = vmatpush1.bf16.msra.mxu0 0
    %2233 = vmatprep.subr.bf16.mxu0 0
    %2234 = vmatpush1.bf16.msra.mxu0 0
    %2235 = vmatprep.subr.bf16.mxu0 0
    %2236 = vmatpush1.bf16.msra.mxu0 0
    %2237 = vmatprep.subr.bf16.mxu0 0
    %2238 = vmatpush1.bf16.msra.mxu0 0
    %2239 = vmatprep.subr.bf16.mxu0 0
    %2240 = vmatpush1.bf16.msra.mxu0 0
    %2241 = vmatprep.subr.bf16.mxu0 0
    %2242 = vmatpush1.bf16.msra.mxu0 0
    %2243 = vmatprep.subr.bf16.mxu0 0
    %2244 = vmatpush1.bf16.msra.mxu0 0
    %2245 = vmatprep.mubr.bf16.mxu0 0
    %2246 = vmatmul.mubr.bf16.gmra.mrb[0].mxu0 %v2211
    %v2247 = vpop.f32.mrb[0].mxu0
    %v2248 = vadd.f32 0.0, %v2247
    %v2249 = vpop.f32.mrb[0].mxu0
    %v2250 = vadd.f32 0.0, %v2249
    %v2251 = vpop.f32.mrb[0].mxu0
    %v2252 = vpop.f32.mrb[0].mxu0
    %2253 = vdwg.mxu0
    %v2255 = vrot.slane %v2208, 3
    %2257 = vmatprep.subr.bf16.mxu0 %v704
    %2258 = vmatpush1.bf16.msra.mxu0 %v703
    %2259 = vmatprep.subr.bf16.mxu0 %v706
    %2260 = vmatpush1.bf16.msra.mxu0 %v705
    %2261 = vmatprep.subr.bf16.mxu0 %v708
    %2262 = vmatpush1.bf16.msra.mxu0 %v707
    %2263 = vmatprep.subr.bf16.mxu0 %v710
    %2264 = vmatpush1.bf16.msra.mxu0 %v709
    %2265 = vmatprep.subr.bf16.mxu0 %v712
    %2266 = vmatpush1.bf16.msra.mxu0 %v711
    %2267 = vmatprep.subr.bf16.mxu0 %v714
    %2268 = vmatpush1.bf16.msra.mxu0 %v713
    %2269 = vmatprep.subr.bf16.mxu0 %v716
    %2270 = vmatpush1.bf16.msra.mxu0 %v715
    %2271 = vmatprep.subr.bf16.mxu0 %v718
    %2272 = vmatpush1.bf16.msra.mxu0 %v717
    %2273 = vmatprep.subr.bf16.mxu0 0
    %2274 = vmatpush1.bf16.msra.mxu0 0
    %2275 = vmatprep.subr.bf16.mxu0 0
    %2276 = vmatpush1.bf16.msra.mxu0 0
    %2277 = vmatprep.subr.bf16.mxu0 0
    %2278 = vmatpush1.bf16.msra.mxu0 0
    %2279 = vmatprep.subr.bf16.mxu0 0
    %2280 = vmatpush1.bf16.msra.mxu0 0
    %2281 = vmatprep.subr.bf16.mxu0 0
    %2282 = vmatpush1.bf16.msra.mxu0 0
    %2283 = vmatprep.subr.bf16.mxu0 0
    %2284 = vmatpush1.bf16.msra.mxu0 0
    %2285 = vmatprep.subr.bf16.mxu0 0
    %2286 = vmatpush1.bf16.msra.mxu0 0
    %2287 = vmatprep.subr.bf16.mxu0 0
    %2288 = vmatpush1.bf16.msra.mxu0 0
    %2289 = vmatprep.mubr.bf16.mxu0 0
    %2290 = vmatmul.mubr.bf16.gmra.mrb[0].mxu0 %v2255
    %v2291 = vpop.f32.mrb[0].mxu0
    %v2292 = vadd.f32 %v2248, %v2291
    %v2293 = vpop.f32.mrb[0].mxu0
    %v2294 = vadd.f32 %v2250, %v2293
    %v2295 = vpop.f32.mrb[0].mxu0
    %v2296 = vpop.f32.mrb[0].mxu0
    %2297 = vdwg.mxu0
    %v2298 = vadd.f32 %v2292, %v780
    %v2299 = vadd.f32 %v2294, %v784
    %v2300 = vmul.f32 %v2298, 0.5
    %v2301 = vmul.f32 %v2299, 0.5
    %v2302 = vsel %vm101, %v2300, %v2298
    %v2303 = vsel %vm102, %v2301, %v2299
    %v2304 = vtanh.pop %v2302
    %v2305 = vtanh.pop %v2303
    %v2306 = vmul.f32 %v2304, 0.5
    %v2307 = vmul.f32 %v2305, 0.5
    %v2308 = vadd.f32 %v2306, 0.5
    %v2309 = vadd.f32 %v2307, 0.5
    %v2310 = vsel %vm101, %v2308, %v2304
    %v2311 = vsel %vm102, %v2309, %v2305
    %v2312 = vmul.f32 %v2310, %v2071
    %2314 = vrot.lane.b32.xlu0 %v2311, 64
    %v2315 = vpop.permute.xlu0 %2314
    %v2317 = vmul.f32 %v2310, %v2315
    %2319 = vrot.lane.b32.xlu0 %v2317, 64
    %v2320 = vpop.permute.xlu0 %2319
    %v2322 = vadd.f32 %v2312, %v2320
    %v2323 = vtanh.pop %v2322
    %2325 = vrot.lane.b32.xlu0 %v2323, 64
    %v2326 = vpop.permute.xlu0 %2325
    %v2328 = vmul.f32 %v2311, %v2326
    %2329 = vmatprep.subr.bf16.mxu0 %v367
    %2330 = vmatpush1.bf16.msra.mxu0 %v366
    %2331 = vmatprep.subr.bf16.mxu0 %v371
    %2332 = vmatpush1.bf16.msra.mxu0 %v370
    %2333 = vmatprep.subr.bf16.mxu0 %v375
    %2334 = vmatpush1.bf16.msra.mxu0 %v374
    %2335 = vmatprep.subr.bf16.mxu0 %v379
    %2336 = vmatpush1.bf16.msra.mxu0 %v378
    %2337 = vmatprep.subr.bf16.mxu0 %v383
    %2338 = vmatpush1.bf16.msra.mxu0 %v382
    %2339 = vmatprep.subr.bf16.mxu0 %v387
    %2340 = vmatpush1.bf16.msra.mxu0 %v386
    %2341 = vmatprep.subr.bf16.mxu0 %v391
    %2342 = vmatpush1.bf16.msra.mxu0 %v390
    %2343 = vmatprep.subr.bf16.mxu0 %v395
    %2344 = vmatpush1.bf16.msra.mxu0 %v394
    %2345 = vmatprep.subr.bf16.mxu0 0
    %2346 = vmatpush1.bf16.msra.mxu0 0
    %2347 = vmatprep.subr.bf16.mxu0 0
    %2348 = vmatpush1.bf16.msra.mxu0 0
    %2349 = vmatprep.subr.bf16.mxu0 0
    %2350 = vmatpush1.bf16.msra.mxu0 0
    %2351 = vmatprep.subr.bf16.mxu0 0
    %2352 = vmatpush1.bf16.msra.mxu0 0
    %2353 = vmatprep.subr.bf16.mxu0 0
    %2354 = vmatpush1.bf16.msra.mxu0 0
    %2355 = vmatprep.subr.bf16.mxu0 0
    %2356 = vmatpush1.bf16.msra.mxu0 0
    %2357 = vmatprep.subr.bf16.mxu0 0
    %2358 = vmatpush1.bf16.msra.mxu0 0
    %2359 = vmatprep.subr.bf16.mxu0 0
    %2360 = vmatpush1.bf16.msra.mxu0 0
    %2361 = vmatprep.mubr.bf16.mxu0 0
    %2362 = vmatmul.mubr.bf16.gmra.mrb[0].mxu0 %v2255
    %v2363 = vpop.f32.mrb[0].mxu0
    %v2364 = vadd.f32 0.0, %v2363
    %v2365 = vpop.f32.mrb[0].mxu0
    %v2366 = vadd.f32 0.0, %v2365
    %v2367 = vpop.f32.mrb[0].mxu0
    %v2368 = vpop.f32.mrb[0].mxu0
    %2369 = vdwg.mxu0
    %2370 = vmatprep.subr.bf16.mxu0 %v369
    %2371 = vmatpush1.bf16.msra.mxu0 %v368
    %2372 = vmatprep.subr.bf16.mxu0 %v373
    %2373 = vmatpush1.bf16.msra.mxu0 %v372
    %2374 = vmatprep.subr.bf16.mxu0 %v377
    %2375 = vmatpush1.bf16.msra.mxu0 %v376
    %2376 = vmatprep.subr.bf16.mxu0 %v381
    %2377 = vmatpush1.bf16.msra.mxu0 %v380
    %2378 = vmatprep.subr.bf16.mxu0 %v385
    %2379 = vmatpush1.bf16.msra.mxu0 %v384
    %2380 = vmatprep.subr.bf16.mxu0 %v389
    %2381 = vmatpush1.bf16.msra.mxu0 %v388
    %2382 = vmatprep.subr.bf16.mxu0 %v393
    %2383 = vmatpush1.bf16.msra.mxu0 %v392
    %2384 = vmatprep.subr.bf16.mxu0 %v397
    %2385 = vmatpush1.bf16.msra.mxu0 %v396
    %2386 = vmatprep.subr.bf16.mxu0 0
    %2387 = vmatpush1.bf16.msra.mxu0 0
    %2388 = vmatprep.subr.bf16.mxu0 0
    %2389 = vmatpush1.bf16.msra.mxu0 0
    %2390 = vmatprep.subr.bf16.mxu0 0
    %2391 = vmatpush1.bf16.msra.mxu0 0
    %2392 = vmatprep.subr.bf16.mxu0 0
    %2393 = vmatpush1.bf16.msra.mxu0 0
    %2394 = vmatprep.subr.bf16.mxu0 0
    %2395 = vmatpush1.bf16.msra.mxu0 0
    %2396 = vmatprep.subr.bf16.mxu0 0
    %2397 = vmatpush1.bf16.msra.mxu0 0
    %2398 = vmatprep.subr.bf16.mxu0 0
    %2399 = vmatpush1.bf16.msra.mxu0 0
    %2400 = vmatprep.subr.bf16.mxu0 0
    %2401 = vmatpush1.bf16.msra.mxu0 0
    %2402 = vmatprep.mubr.bf16.mxu0 0
    %2403 = vmatmul.mubr.bf16.gmra.mrb[0].mxu0 %v2255
    %v2404 = vpop.f32.mrb[0].mxu0
    %v2405 = vadd.f32 0.0, %v2404
    %v2406 = vpop.f32.mrb[0].mxu0
    %v2407 = vadd.f32 0.0, %v2406
    %v2408 = vpop.f32.mrb[0].mxu0
    %v2409 = vpop.f32.mrb[0].mxu0
    %2410 = vdwg.mxu0
    %v2415 = vrot.slane %v2364, 1
    %v2416 = vrot.slane %v2366, 1
    %v2417 = vrot.slane %v2405, 1
    %v2418 = vrot.slane %v2407, 1
    %v2423 = vadd.f32 %v190, %v2415
    %v2424 = vadd.f32 %v192, %v2416
    %v2425 = vadd.f32 %v231, %v2417
    %v2426 = vadd.f32 %v233, %v2418
    %v2427 = vmul.f32 %v2423, 0.5
    %v2428 = vmul.f32 %v2424, 0.5
    %v2429 = vmul.f32 %v2425, 0.5
    %v2430 = vmul.f32 %v2426, 0.5
    %v2431 = vsel %vm97, %v2427, %v2423
    %v2432 = vsel %vm98, %v2428, %v2424
    %v2433 = vsel %vm99, %v2429, %v2425
    %v2434 = vsel %vm100, %v2430, %v2426
    %v2435 = vtanh.pop %v2431
    %v2436 = vtanh.pop %v2432
    %v2437 = vtanh.pop %v2433
    %v2438 = vtanh.pop %v2434
    %v2439 = vmul.f32 %v2435, 0.5
    %v2440 = vmul.f32 %v2436, 0.5
    %v2441 = vmul.f32 %v2437, 0.5
    %v2442 = vmul.f32 %v2438, 0.5
    %v2443 = vadd.f32 %v2439, 0.5
    %v2444 = vadd.f32 %v2440, 0.5
    %v2445 = vadd.f32 %v2441, 0.5
    %v2446 = vadd.f32 %v2442, 0.5
    %v2447 = vsel %vm97, %v2443, %v2435
    %v2448 = vsel %vm98, %v2444, %v2436
    %v2449 = vsel %vm99, %v2445, %v2437
    %v2450 = vsel %vm100, %v2446, %v2438
    %v2452 = vrot.slane %v2205, 7
    %v2454 = vmul.f32 %v2448, %v2452
    %v2455 = vmul.f32 %v2447, %v2450
    %v2456 = vadd.f32 %v2454, %v2455
    %v2457 = vtanh.pop %v2456
    %v2458 = vmul.f32 %v2449, %v2457
    %v2459 = vpack.c.bf16 %v2458, %v2458
    %v2460 = vpack.c.bf16 %v2328, %v2328
    %v2462 = vsel %vm610, %v2460, 0
    %2464 = vmatprep.subr.bf16.mxu0 %v595
    %2465 = vmatpush1.bf16.msra.mxu0 %v594
    %2466 = vmatprep.subr.bf16.mxu0 %v597
    %2467 = vmatpush1.bf16.msra.mxu0 %v596
    %2468 = vmatprep.subr.bf16.mxu0 %v599
    %2469 = vmatpush1.bf16.msra.mxu0 %v598
    %2470 = vmatprep.subr.bf16.mxu0 %v601
    %2471 = vmatpush1.bf16.msra.mxu0 %v600
    %2472 = vmatprep.subr.bf16.mxu0 0
    %2473 = vmatpush1.bf16.msra.mxu0 0
    %2474 = vmatprep.subr.bf16.mxu0 0
    %2475 = vmatpush1.bf16.msra.mxu0 0
    %2476 = vmatprep.subr.bf16.mxu0 0
    %2477 = vmatpush1.bf16.msra.mxu0 0
    %2478 = vmatprep.subr.bf16.mxu0 0
    %2479 = vmatpush1.bf16.msra.mxu0 0
    %2480 = vmatprep.subr.bf16.mxu0 0
    %2481 = vmatpush1.bf16.msra.mxu0 0
    %2482 = vmatprep.subr.bf16.mxu0 0
    %2483 = vmatpush1.bf16.msra.mxu0 0
    %2484 = vmatprep.subr.bf16.mxu0 0
    %2485 = vmatpush1.bf16.msra.mxu0 0
    %2486 = vmatprep.subr.bf16.mxu0 0
    %2487 = vmatpush1.bf16.msra.mxu0 0
    %2488 = vmatprep.subr.bf16.mxu0 0
    %2489 = vmatpush1.bf16.msra.mxu0 0
    %2490 = vmatprep.subr.bf16.mxu0 0
    %2491 = vmatpush1.bf16.msra.mxu0 0
    %2492 = vmatprep.subr.bf16.mxu0 0
    %2493 = vmatpush1.bf16.msra.mxu0 0
    %2494 = vmatprep.subr.bf16.mxu0 0
    %2495 = vmatpush1.bf16.msra.mxu0 0
    %2496 = vmatprep.mubr.bf16.mxu0 0
    %2497 = vmatmul.mubr.bf16.gmra.mrb[0].mxu0 %v2462
    %v2498 = vpop.f32.mrb[0].mxu0
    %v2499 = vadd.f32 0.0, %v2498
    %v2500 = vpop.f32.mrb[0].mxu0
    %v2501 = vadd.f32 0.0, %v2500
    %v2502 = vpop.f32.mrb[0].mxu0
    %v2503 = vpop.f32.mrb[0].mxu0
    %2504 = vdwg.mxu0
    %v2506 = vshrl.u32 %v2459, 16
    %v2508 = vrot.slane %v2506, 3
    %2510 = vmatprep.subr.bf16.mxu0 %v704
    %2511 = vmatpush1.bf16.msra.mxu0 %v703
    %2512 = vmatprep.subr.bf16.mxu0 %v706
    %2513 = vmatpush1.bf16.msra.mxu0 %v705
    %2514 = vmatprep.subr.bf16.mxu0 %v708
    %2515 = vmatpush1.bf16.msra.mxu0 %v707
    %2516 = vmatprep.subr.bf16.mxu0 %v710
    %2517 = vmatpush1.bf16.msra.mxu0 %v709
    %2518 = vmatprep.subr.bf16.mxu0 %v712
    %2519 = vmatpush1.bf16.msra.mxu0 %v711
    %2520 = vmatprep.subr.bf16.mxu0 %v714
    %2521 = vmatpush1.bf16.msra.mxu0 %v713
    %2522 = vmatprep.subr.bf16.mxu0 %v716
    %2523 = vmatpush1.bf16.msra.mxu0 %v715
    %2524 = vmatprep.subr.bf16.mxu0 %v718
    %2525 = vmatpush1.bf16.msra.mxu0 %v717
    %2526 = vmatprep.subr.bf16.mxu0 0
    %2527 = vmatpush1.bf16.msra.mxu0 0
    %2528 = vmatprep.subr.bf16.mxu0 0
    %2529 = vmatpush1.bf16.msra.mxu0 0
    %2530 = vmatprep.subr.bf16.mxu0 0
    %2531 = vmatpush1.bf16.msra.mxu0 0
    %2532 = vmatprep.subr.bf16.mxu0 0
    %2533 = vmatpush1.bf16.msra.mxu0 0
    %2534 = vmatprep.subr.bf16.mxu0 0
    %2535 = vmatpush1.bf16.msra.mxu0 0
    %2536 = vmatprep.subr.bf16.mxu0 0
    %2537 = vmatpush1.bf16.msra.mxu0 0
    %2538 = vmatprep.subr.bf16.mxu0 0
    %2539 = vmatpush1.bf16.msra.mxu0 0
    %2540 = vmatprep.subr.bf16.mxu0 0
    %2541 = vmatpush1.bf16.msra.mxu0 0
    %2542 = vmatprep.mubr.bf16.mxu0 0
    %2543 = vmatmul.mubr.bf16.gmra.mrb[0].mxu0 %v2508
    %v2544 = vpop.f32.mrb[0].mxu0
    %v2545 = vadd.f32 %v2499, %v2544
    %v2546 = vpop.f32.mrb[0].mxu0
    %v2547 = vadd.f32 %v2501, %v2546
    %v2548 = vpop.f32.mrb[0].mxu0
    %v2549 = vpop.f32.mrb[0].mxu0
    %2550 = vdwg.mxu0
    %v2551 = vadd.f32 %v2545, %v780
    %v2552 = vadd.f32 %v2547, %v784
    %v2553 = vmul.f32 %v2551, 0.5
    %v2554 = vmul.f32 %v2552, 0.5
    %v2555 = vsel %vm101, %v2553, %v2551
    %v2556 = vsel %vm102, %v2554, %v2552
    %v2557 = vtanh.pop %v2555
    %v2558 = vtanh.pop %v2556
    %v2559 = vmul.f32 %v2557, 0.5
    %v2560 = vmul.f32 %v2558, 0.5
    %v2561 = vadd.f32 %v2559, 0.5
    %v2562 = vadd.f32 %v2560, 0.5
    %v2563 = vsel %vm101, %v2561, %v2557
    %v2564 = vsel %vm102, %v2562, %v2558
    %v2565 = vmul.f32 %v2563, %v2322
    %2567 = vrot.lane.b32.xlu0 %v2564, 64
    %v2568 = vpop.permute.xlu0 %2567
    %v2570 = vmul.f32 %v2563, %v2568
    %2572 = vrot.lane.b32.xlu0 %v2570, 64
    %v2573 = vpop.permute.xlu0 %2572
    %v2575 = vadd.f32 %v2565, %v2573
    %v2576 = vtanh.pop %v2575
    %2578 = vrot.lane.b32.xlu0 %v2576, 64
    %v2579 = vpop.permute.xlu0 %2578
    %v2581 = vmul.f32 %v2564, %v2579
    %vm2582 = vcmask 516096
    %2583 = vst.msk [vmem:[#allocation11] sm:$0x1] %vm2582, %v2581
    // Predicated region
    $region50: #{tpu_custom_call.1} parent=1 // pred_check
      _
    $region51: #{tpu_custom_call.1} parent=1 // pred_check_branch
      %2585 = sbr.rel (0) target = $region53
    $region52: #{tpu_custom_call.1} parent=1 // pred_region
      %s2587 = ssub.s32 16, 16
      %2588 = vsyncadd [#allocation4], %s2587
      %s2590 = sshll.u32 [#allocation11], 4
      %s2591 = int_to_ptr.vmem [resolvable:$true] %s2590
      %2593 = dma.vmem_to_hbm [thread:$0]  %s2591, 16, %s7, [#allocation4]
    $region53: #{tpu_custom_call.1} parent=1 // pred_fallthru
      _
    // Predicated region
    $region54: #{tpu_custom_call.1} parent=1 // pred_check
      _
    $region55: #{tpu_custom_call.1} parent=1 // pred_check_branch
      %2595 = sbr.rel (0) target = $region57
    $region56: #{tpu_custom_call.1} parent=1 // pred_region
      %2596 = dma.done [#allocation4], 16
    $region57: #{tpu_custom_call.1} parent=1 // pred_fallthru
      _
    %2597 = vsyncpa [#allocation3], 1
    %2598 = vsyncpa [#allocation6], 1
    %2599 = vsyncpa [#allocation9], 1
    %2600 = vsyncpa [#allocation4], 1

</llo_original>
